<compile_context>
chip_gen: v6e
topology: v6e:2x2x1
jax: 0.10.0
libtpu: 0.0.40
codegen_flags: <defaults>
</compile_context>

<pallas_src>
import functools

import jax
import jax.numpy as jnp
from jax.experimental import pallas as pl
from jax.experimental.pallas import tpu as pltpu

EPS = 1e-5  # PyTorch BatchNorm2d default eps


def _compiler_params():
    # Batch grid axis is embarrassingly parallel (per-image partial BN stats),
    # so mark it "parallel" for megacore sharding on v7x; explicit VMEM budget
    # leaves headroom on v7x's 64 MiB physical VMEM.
    return pltpu.CompilerParams(
        dimension_semantics=("parallel",),
        vmem_limit_bytes=32 * 1024 * 1024,
    )


# ----------------------------- Pallas kernels ------------------------------ #

def pool_conv_kernel(views_ref, w_ref, y_ref, s_ref, q_ref, pad_ref, *, ksize, pool_k):
    # views_ref: (1, K2*Ho, Wo, Cin) — the K2 = pool_k^2 strided sub-grids of this
    #            image stacked along H; maxpool == elementwise max of the sub-grids.
    # w_ref:     (KK, Cin, Cout) per-tap conv weights (KK = ksize^2, tap order ky,kx).
    # y_ref:     (1, Ho*Wo, Cout) pre-BN conv1 output.
    # s_ref/q_ref: (1, 1, Cout) per-image sum / sum-of-squares (BN partials).
    # pad_ref:   VMEM scratch (Ho+2p, Wo+2p, Cin) holding the zero-padded activation.
    _, KHo, Wo, Cin = views_ref.shape
    K2 = pool_k * pool_k
    Ho = KHo // K2
    Cout = w_ref.shape[2]
    p = ksize // 2

    # MaxPool fused into the conv input load: pure elementwise VPU maxima.
    xp = views_ref[0, 0:Ho]
    for k in range(1, K2):
        xp = jnp.maximum(xp, views_ref[0, k * Ho:(k + 1) * Ho])        # (Ho, Wo, Cin)

    # 'same' zero padding lives in VMEM scratch; only the interior is overwritten.
    pad_ref[...] = jnp.zeros_like(pad_ref)
    pad_ref[p:p + Ho, p:p + Wo, :] = xp

    # Conv = ksize^2 accumulating shifted matmuls (no HBM im2col materialization).
    acc = jnp.zeros((Ho * Wo, Cout), jnp.float32)
    for t in range(ksize * ksize):
        dy, dx = t // ksize, t % ksize
        tap = pad_ref[dy:dy + Ho, dx:dx + Wo, :].reshape(Ho * Wo, Cin)
        acc = acc + jnp.dot(tap, w_ref[t], preferred_element_type=jnp.float32)

    y_ref[0] = acc
    # Per-image BN partials (combined across the parallel batch grid in the wrapper).
    s_ref[0] = jnp.sum(acc, axis=0, keepdims=True)
    q_ref[0] = jnp.sum(acc * acc, axis=0, keepdims=True)


def bn_act_conv_kernel(y_ref, ab_ref, w_ref, o_ref, s_ref, q_ref, pad_ref, *, ksize):
    # y_ref:  (1, Ho*Wo, C1) pre-BN output of the previous conv.
    # ab_ref: (2, C1) fused BN scale (row 0) and shift (row 1): y*scale + shift.
    # w_ref:  (KK, C1, C2) per-tap conv2 weights.
    # o_ref:  (1, Ho*Wo, C2) pre-BN conv2 output;  s_ref/q_ref: (1, 1, C2) partials.
    Hp, Wp, C1 = pad_ref.shape
    C2 = w_ref.shape[2]
    p = ksize // 2
    Ho, Wo = Hp - 2 * p, Wp - 2 * p

    # BatchNorm (precomputed affine) + ReLU of the previous conv, fused here.
    # TODO(synk): the nn.PReLU activation option of the module would need an extra
    #             per-channel slope input instead of the plain maximum-with-zero.
    z = jnp.maximum(y_ref[0] * ab_ref[0:1, :] + ab_ref[1:2, :], 0.0)   # (Ho*Wo, C1)

    pad_ref[...] = jnp.zeros_like(pad_ref)
    pad_ref[p:p + Ho, p:p + Wo, :] = z.reshape(Ho, Wo, C1)

    acc = jnp.zeros((Ho * Wo, C2), jnp.float32)
    for t in range(ksize * ksize):
        dy, dx = t // ksize, t % ksize
        tap = pad_ref[dy:dy + Ho, dx:dx + Wo, :].reshape(Ho * Wo, C1)
        acc = acc + jnp.dot(tap, w_ref[t], preferred_element_type=jnp.float32)

    o_ref[0] = acc
    s_ref[0] = jnp.sum(acc, axis=0, keepdims=True)
    q_ref[0] = jnp.sum(acc * acc, axis=0, keepdims=True)


def bn_act_kernel(y_ref, ab_ref, o_ref):
    # Final BatchNorm + ReLU (elementwise, per-channel affine broadcast).
    o_ref[0] = jnp.maximum(y_ref[0] * ab_ref[0:1, :] + ab_ref[1:2, :], 0.0)


# ------------------------------ JAX wrappers ------------------------------- #

def _conv_taps(w_oihw):
    """OIHW conv weights -> (KH*KW, Cin, Cout) per-tap matrices (tap order ky, kx)."""
    Cout, Cin, KH, KW = w_oihw.shape
    return (jnp.transpose(w_oihw, (2, 3, 1, 0))
            .reshape(KH * KW, Cin, Cout).astype(jnp.float32))


def _bn_scale_shift(ssum, ssq, gamma, beta, count):
    """Combine per-image partials into fused BN scale/shift: y_norm = y*scale + shift."""
    s = jnp.sum(ssum, axis=0)                     # (1, C)
    q = jnp.sum(ssq, axis=0)                      # (1, C)
    mean = s / count
    var = q / count - mean * mean                 # biased batch variance, single pass
    scale = gamma.reshape(1, -1).astype(jnp.float32) * jax.lax.rsqrt(var + EPS)
    shift = beta.reshape(1, -1).astype(jnp.float32) - mean * scale
    return jnp.concatenate([scale, shift], axis=0)   # (2, C)


def pool_conv1(x_nhwc, w_taps, pool_k, ksize):
    N, H, W, Cin = x_nhwc.shape
    assert H % pool_k == 0 and W % pool_k == 0
    Ho, Wo = H // pool_k, W // pool_k
    KK, _, Cout = w_taps.shape
    p = ksize // 2
    K2 = pool_k * pool_k

    # Strided sub-grids of the pooling window (cheap XLA glue, total bytes == input);
    # the pooling max itself is fused into the conv kernel's input load.
    views = jnp.concatenate(
        [x_nhwc[:, i::pool_k, j::pool_k, :] for i in range(pool_k) for j in range(pool_k)],
        axis=1)                                   # (N, K2*Ho, Wo, Cin)

    kern = functools.partial(pool_conv_kernel, ksize=ksize, pool_k=pool_k)
    y, s, q = pl.pallas_call(
        kern,
        grid=(N,),
        in_specs=[
            pl.BlockSpec((1, K2 * Ho, Wo, Cin), lambda b: (b, 0, 0, 0)),
            pl.BlockSpec((KK, Cin, Cout), lambda b: (0, 0, 0)),
        ],
        out_specs=[
            pl.BlockSpec((1, Ho * Wo, Cout), lambda b: (b, 0, 0)),
            pl.BlockSpec((1, 1, Cout), lambda b: (b, 0, 0)),
            pl.BlockSpec((1, 1, Cout), lambda b: (b, 0, 0)),
        ],
        out_shape=(
            jax.ShapeDtypeStruct((N, Ho * Wo, Cout), jnp.float32),
            jax.ShapeDtypeStruct((N, 1, Cout), jnp.float32),
            jax.ShapeDtypeStruct((N, 1, Cout), jnp.float32),
        ),
        scratch_shapes=[pltpu.VMEM((Ho + 2 * p, Wo + 2 * p, Cin), jnp.float32)],
        compiler_params=_compiler_params(),
    )(views, w_taps)
    return y, s, q, (Ho, Wo)


def bn_relu_conv2(y1, ab1, w_taps, Ho, Wo, ksize):
    N, HW, C1 = y1.shape
    KK, _, C2 = w_taps.shape
    p = ksize // 2

    kern = functools.partial(bn_act_conv_kernel, ksize=ksize)
    y, s, q = pl.pallas_call(
        kern,
        grid=(N,),
        in_specs=[
            pl.BlockSpec((1, HW, C1), lambda b: (b, 0, 0)),
            pl.BlockSpec((2, C1), lambda b: (0, 0)),
            pl.BlockSpec((KK, C1, C2), lambda b: (0, 0, 0)),
        ],
        out_specs=[
            pl.BlockSpec((1, HW, C2), lambda b: (b, 0, 0)),
            pl.BlockSpec((1, 1, C2), lambda b: (b, 0, 0)),
            pl.BlockSpec((1, 1, C2), lambda b: (b, 0, 0)),
        ],
        out_shape=(
            jax.ShapeDtypeStruct((N, HW, C2), jnp.float32),
            jax.ShapeDtypeStruct((N, 1, C2), jnp.float32),
            jax.ShapeDtypeStruct((N, 1, C2), jnp.float32),
        ),
        scratch_shapes=[pltpu.VMEM((Ho + 2 * p, Wo + 2 * p, C1), jnp.float32)],
        compiler_params=_compiler_params(),
    )(y1, ab1, w_taps)
    return y, s, q


def bn_relu(y2, ab2):
    N, HW, C = y2.shape
    return pl.pallas_call(
        bn_act_kernel,
        grid=(N,),
        in_specs=[
            pl.BlockSpec((1, HW, C), lambda b: (b, 0, 0)),
            pl.BlockSpec((2, C), lambda b: (0, 0)),
        ],
        out_specs=pl.BlockSpec((1, HW, C), lambda b: (b, 0, 0)),
        out_shape=jax.ShapeDtypeStruct((N, HW, C), jnp.float32),
        compiler_params=_compiler_params(),
    )(y2, ab2)


def compression_layer_forward(x_nchw, params, level, pool_kernel_size, ksize=3):
    """CompressionLayer.forward. Accepts/returns NCHW (PyTorch convention)."""
    assert ksize % 2 == 1, "padding='same' path implemented for odd kernel sizes"
    N = x_nchw.shape[0]
    pool_k = pool_kernel_size if level > 0 else 1       # level==0 has no MaxPool
    x = jnp.transpose(x_nchw, (0, 2, 3, 1)).astype(jnp.float32)   # NCHW -> NHWC

    w1 = _conv_taps(params["w1"])
    w2 = _conv_taps(params["w2"])

    y1, s1, q1, (Ho, Wo) = pool_conv1(x, w1, pool_k, ksize)
    cnt = float(N * Ho * Wo)
    ab1 = _bn_scale_shift(s1, q1, params["g1"], params["b1"], cnt)

    y2, s2, q2 = bn_relu_conv2(y1, ab1, w2, Ho, Wo, ksize)
    ab2 = _bn_scale_shift(s2, q2, params["g2"], params["b2"], cnt)

    out = bn_relu(y2, ab2)                               # (N, Ho*Wo, C2)
    C2 = out.shape[-1]
    return jnp.transpose(out.reshape(N, Ho, Wo, C2), (0, 3, 1, 2))   # NHWC -> NCHW


# ------------------------- pure-JAX reference check ------------------------ #

def reference_forward(x_nchw, params, level, k):
    x = x_nchw
    if level > 0:
        x = jax.lax.reduce_window(x, -jnp.inf, jax.lax.max,
                                  (1, 1, k, k), (1, 1, k, k), "VALID")

    def block(x, w, g, b):
        y = jax.lax.conv_general_dilated(
            x, w, (1, 1), "SAME", dimension_numbers=("NCHW", "OIHW", "NCHW"))
        mean = jnp.mean(y, axis=(0, 2, 3), keepdims=True)
        var = jnp.mean((y - mean) ** 2, axis=(0, 2, 3), keepdims=True)
        y = (y - mean) * jax.lax.rsqrt(var + EPS)
        y = y * g.reshape(1, -1, 1, 1) + b.reshape(1, -1, 1, 1)
        return jnp.maximum(y, 0.0)

    x = block(x, params["w1"], params["g1"], params["b1"])
    x = block(x, params["w2"], params["g2"], params["b2"])
    return x


# ----------------------------------- main ----------------------------------- #

if __name__ == "__main__":
    key = jax.random.PRNGKey(0)
    level, chan_multi, pool_k, ksize = 1, 4, 2, 3
    prev_chan = 1 if level == 0 else chan_multi * 2 ** (level - 1)   # 4
    curr_chan = chan_multi * 2 ** level                              # 8
    N, H, W = 2, 16, 16

    ks = jax.random.split(key, 7)
    x = jax.random.normal(ks[0], (N, prev_chan, H, W), jnp.float32)
    params = dict(
        w1=0.2 * jax.random.normal(ks[1], (curr_chan, prev_chan, ksize, ksize), jnp.float32),
        g1=1.0 + 0.1 * jax.random.normal(ks[2], (curr_chan,), jnp.float32),
        b1=0.1 * jax.random.normal(ks[3], (curr_chan,), jnp.float32),
        w2=0.2 * jax.random.normal(ks[4], (curr_chan, curr_chan, ksize, ksize), jnp.float32),
        g2=1.0 + 0.1 * jax.random.normal(ks[5], (curr_chan,), jnp.float32),
        b2=0.1 * jax.random.normal(ks[6], (curr_chan,), jnp.float32),
    )

    fwd = jax.jit(functools.partial(compression_layer_forward,
                                    level=level, pool_kernel_size=pool_k, ksize=ksize))
    out = jax.block_until_ready(fwd(x, params))
    assert out.shape == (N, curr_chan, H // pool_k, W // pool_k), out.shape

    ref = reference_forward(x, params, level, pool_k)
    err = float(jnp.max(jnp.abs(out - ref)))
    assert err < 1e-2, f"mismatch vs reference: {err}"

    print("KERNEL_OK")
</pallas_src>

<mosaic_0001>
module attributes {stable_mosaic.version = 11 : i64} {
  func.func @pool_conv_kernel(%arg0: i32, %arg1: memref<1x32x8x4xf32, #tpu.memory_space<vmem>>, %arg2: memref<9x4x8xf32, #tpu.memory_space<vmem>>, %arg3: memref<1x64x8xf32, #tpu.memory_space<vmem>>, %arg4: memref<1x1x8xf32, #tpu.memory_space<vmem>>, %arg5: memref<1x1x8xf32, #tpu.memory_space<vmem>>, %arg6: memref<10x10x4xf32, #tpu.memory_space<vmem>>) attributes {dimension_semantics = [#tpu.dimension_semantics<parallel>], iteration_bounds = array<i64: 2>, scalar_prefetch = 0 : i64, scratch_operands = 1 : i64, tpu.core_type = #tpu.core_type<tc>, window_params = [{transform_indices = @transform_0, window_bounds = array<i64: 1, 32, 8, 4>}, {pipeline_mode = #tpu.pipeline_mode<synchronous>, transform_indices = @transform_1, window_bounds = array<i64: 9, 4, 8>}, {transform_indices = @transform_2, window_bounds = array<i64: 1, 64, 8>}, {transform_indices = @transform_3, window_bounds = array<i64: 1, 1, 8>}, {transform_indices = @transform_4, window_bounds = array<i64: 1, 1, 8>}]} {
    %c0 = arith.constant 0 : index
    %c0_0 = arith.constant 0 : index
    %c0_1 = arith.constant 0 : index
    %c0_2 = arith.constant 0 : index
    %0 = vector.load %arg1[%c0, %c0_0, %c0_1, %c0_2] : memref<1x32x8x4xf32, #tpu.memory_space<vmem>>, vector<1x8x8x4xf32>
    %1 = vector.shape_cast %0 : vector<1x8x8x4xf32> to vector<8x8x4xf32>
    %c0_3 = arith.constant 0 : index
    %c8 = arith.constant 8 : index
    %c0_4 = arith.constant 0 : index
    %c0_5 = arith.constant 0 : index
    %2 = vector.load %arg1[%c0_3, %c8, %c0_4, %c0_5] : memref<1x32x8x4xf32, #tpu.memory_space<vmem>>, vector<1x8x8x4xf32>
    %3 = vector.shape_cast %2 : vector<1x8x8x4xf32> to vector<8x8x4xf32>
    %4 = arith.maximumf %1, %3 : vector<8x8x4xf32>
    %c0_6 = arith.constant 0 : index
    %c16 = arith.constant 16 : index
    %c0_7 = arith.constant 0 : index
    %c0_8 = arith.constant 0 : index
    %5 = vector.load %arg1[%c0_6, %c16, %c0_7, %c0_8] : memref<1x32x8x4xf32, #tpu.memory_space<vmem>>, vector<1x8x8x4xf32>
    %6 = vector.shape_cast %5 : vector<1x8x8x4xf32> to vector<8x8x4xf32>
    %7 = arith.maximumf %4, %6 : vector<8x8x4xf32>
    %c0_9 = arith.constant 0 : index
    %c24 = arith.constant 24 : index
    %c0_10 = arith.constant 0 : index
    %c0_11 = arith.constant 0 : index
    %8 = vector.load %arg1[%c0_9, %c24, %c0_10, %c0_11] : memref<1x32x8x4xf32, #tpu.memory_space<vmem>>, vector<1x8x8x4xf32>
    %9 = vector.shape_cast %8 : vector<1x8x8x4xf32> to vector<8x8x4xf32>
    %10 = arith.maximumf %7, %9 : vector<8x8x4xf32>
    %cst = arith.constant 0.000000e+00 : f32
    %11 = vector.broadcast %cst : f32 to vector<10x10x4xf32>
    %c0_12 = arith.constant 0 : index
    %c0_13 = arith.constant 0 : index
    %c0_14 = arith.constant 0 : index
    %12 = vector.load %arg6[%c0_12, %c0_13, %c0_14] : memref<10x10x4xf32, #tpu.memory_space<vmem>>, vector<10x10x4xf32>
    tpu.vector_store %arg6[%c0_12, %c0_13, %c0_14], %11 {strides = array<i32>} : memref<10x10x4xf32, #tpu.memory_space<vmem>>, vector<10x10x4xf32>,
    %c1 = arith.constant 1 : index
    %c1_15 = arith.constant 1 : index
    %c0_16 = arith.constant 0 : index
    %13 = vector.load %arg6[%c1, %c1_15, %c0_16] : memref<10x10x4xf32, #tpu.memory_space<vmem>>, vector<8x8x4xf32>
    tpu.vector_store %arg6[%c1, %c1_15, %c0_16], %10 {strides = array<i32>} : memref<10x10x4xf32, #tpu.memory_space<vmem>>, vector<8x8x4xf32>,
    %cst_17 = arith.constant 0.000000e+00 : f32
    %14 = vector.broadcast %cst_17 : f32 to vector<64x8xf32>
    %c0_18 = arith.constant 0 : index
    %c0_19 = arith.constant 0 : index
    %c0_20 = arith.constant 0 : index
    %15 = vector.load %arg6[%c0_18, %c0_19, %c0_20] : memref<10x10x4xf32, #tpu.memory_space<vmem>>, vector<8x8x4xf32>
    %16 = vector.shape_cast %15 : vector<8x8x4xf32> to vector<64x4xf32>
    %c0_21 = arith.constant 0 : index
    %c0_22 = arith.constant 0 : index
    %c0_23 = arith.constant 0 : index
    %17 = vector.load %arg2[%c0_21, %c0_22, %c0_23] : memref<9x4x8xf32, #tpu.memory_space<vmem>>, vector<1x4x8xf32>
    %18 = vector.shape_cast %17 : vector<1x4x8xf32> to vector<4x8xf32>
    %cst_24 = arith.constant dense<0.000000e+00> : vector<64x8xf32>
    %19 = tpu.matmul %16, %18, %cst_24 {dimension_numbers = #tpu.dot_dimension_numbers<[1], [0], [0], [1], [0, 0, 1, 1], [], []>} : vector<64x4xf32>, vector<4x8xf32>, vector<64x8xf32> -> vector<64x8xf32>
    %20 = arith.addf %14, %19 : vector<64x8xf32>
    %c0_25 = arith.constant 0 : index
    %c1_26 = arith.constant 1 : index
    %c0_27 = arith.constant 0 : index
    %21 = vector.load %arg6[%c0_25, %c1_26, %c0_27] : memref<10x10x4xf32, #tpu.memory_space<vmem>>, vector<8x8x4xf32>
    %22 = vector.shape_cast %21 : vector<8x8x4xf32> to vector<64x4xf32>
    %c1_28 = arith.constant 1 : index
    %c0_29 = arith.constant 0 : index
    %c0_30 = arith.constant 0 : index
    %23 = vector.load %arg2[%c1_28, %c0_29, %c0_30] : memref<9x4x8xf32, #tpu.memory_space<vmem>>, vector<1x4x8xf32>
    %24 = vector.shape_cast %23 : vector<1x4x8xf32> to vector<4x8xf32>
    %cst_31 = arith.constant dense<0.000000e+00> : vector<64x8xf32>
    %25 = tpu.matmul %22, %24, %cst_31 {dimension_numbers = #tpu.dot_dimension_numbers<[1], [0], [0], [1], [0, 0, 1, 1], [], []>} : vector<64x4xf32>, vector<4x8xf32>, vector<64x8xf32> -> vector<64x8xf32>
    %26 = arith.addf %20, %25 : vector<64x8xf32>
    %c0_32 = arith.constant 0 : index
    %c2 = arith.constant 2 : index
    %c0_33 = arith.constant 0 : index
    %27 = vector.load %arg6[%c0_32, %c2, %c0_33] : memref<10x10x4xf32, #tpu.memory_space<vmem>>, vector<8x8x4xf32>
    %28 = vector.shape_cast %27 : vector<8x8x4xf32> to vector<64x4xf32>
    %c2_34 = arith.constant 2 : index
    %c0_35 = arith.constant 0 : index
    %c0_36 = arith.constant 0 : index
    %29 = vector.load %arg2[%c2_34, %c0_35, %c0_36] : memref<9x4x8xf32, #tpu.memory_space<vmem>>, vector<1x4x8xf32>
    %30 = vector.shape_cast %29 : vector<1x4x8xf32> to vector<4x8xf32>
    %cst_37 = arith.constant dense<0.000000e+00> : vector<64x8xf32>
    %31 = tpu.matmul %28, %30, %cst_37 {dimension_numbers = #tpu.dot_dimension_numbers<[1], [0], [0], [1], [0, 0, 1, 1], [], []>} : vector<64x4xf32>, vector<4x8xf32>, vector<64x8xf32> -> vector<64x8xf32>
    %32 = arith.addf %26, %31 : vector<64x8xf32>
    %c1_38 = arith.constant 1 : index
    %c0_39 = arith.constant 0 : index
    %c0_40 = arith.constant 0 : index
    %33 = vector.load %arg6[%c1_38, %c0_39, %c0_40] : memref<10x10x4xf32, #tpu.memory_space<vmem>>, vector<8x8x4xf32>
    %34 = vector.shape_cast %33 : vector<8x8x4xf32> to vector<64x4xf32>
    %c3 = arith.constant 3 : index
    %c0_41 = arith.constant 0 : index
    %c0_42 = arith.constant 0 : index
    %35 = vector.load %arg2[%c3, %c0_41, %c0_42] : memref<9x4x8xf32, #tpu.memory_space<vmem>>, vector<1x4x8xf32>
    %36 = vector.shape_cast %35 : vector<1x4x8xf32> to vector<4x8xf32>
    %cst_43 = arith.constant dense<0.000000e+00> : vector<64x8xf32>
    %37 = tpu.matmul %34, %36, %cst_43 {dimension_numbers = #tpu.dot_dimension_numbers<[1], [0], [0], [1], [0, 0, 1, 1], [], []>} : vector<64x4xf32>, vector<4x8xf32>, vector<64x8xf32> -> vector<64x8xf32>
    %38 = arith.addf %32, %37 : vector<64x8xf32>
    %c1_44 = arith.constant 1 : index
    %c1_45 = arith.constant 1 : index
    %c0_46 = arith.constant 0 : index
    %39 = vector.load %arg6[%c1_44, %c1_45, %c0_46] : memref<10x10x4xf32, #tpu.memory_space<vmem>>, vector<8x8x4xf32>
    %40 = vector.shape_cast %39 : vector<8x8x4xf32> to vector<64x4xf32>
    %c4 = arith.constant 4 : index
    %c0_47 = arith.constant 0 : index
    %c0_48 = arith.constant 0 : index
    %41 = vector.load %arg2[%c4, %c0_47, %c0_48] : memref<9x4x8xf32, #tpu.memory_space<vmem>>, vector<1x4x8xf32>
    %42 = vector.shape_cast %41 : vector<1x4x8xf32> to vector<4x8xf32>
    %cst_49 = arith.constant dense<0.000000e+00> : vector<64x8xf32>
    %43 = tpu.matmul %40, %42, %cst_49 {dimension_numbers = #tpu.dot_dimension_numbers<[1], [0], [0], [1], [0, 0, 1, 1], [], []>} : vector<64x4xf32>, vector<4x8xf32>, vector<64x8xf32> -> vector<64x8xf32>
    %44 = arith.addf %38, %43 : vector<64x8xf32>
    %c1_50 = arith.constant 1 : index
    %c2_51 = arith.constant 2 : index
    %c0_52 = arith.constant 0 : index
    %45 = vector.load %arg6[%c1_50, %c2_51, %c0_52] : memref<10x10x4xf32, #tpu.memory_space<vmem>>, vector<8x8x4xf32>
    %46 = vector.shape_cast %45 : vector<8x8x4xf32> to vector<64x4xf32>
    %c5 = arith.constant 5 : index
    %c0_53 = arith.constant 0 : index
    %c0_54 = arith.constant 0 : index
    %47 = vector.load %arg2[%c5, %c0_53, %c0_54] : memref<9x4x8xf32, #tpu.memory_space<vmem>>, vector<1x4x8xf32>
    %48 = vector.shape_cast %47 : vector<1x4x8xf32> to vector<4x8xf32>
    %cst_55 = arith.constant dense<0.000000e+00> : vector<64x8xf32>
    %49 = tpu.matmul %46, %48, %cst_55 {dimension_numbers = #tpu.dot_dimension_numbers<[1], [0], [0], [1], [0, 0, 1, 1], [], []>} : vector<64x4xf32>, vector<4x8xf32>, vector<64x8xf32> -> vector<64x8xf32>
    %50 = arith.addf %44, %49 : vector<64x8xf32>
    %c2_56 = arith.constant 2 : index
    %c0_57 = arith.constant 0 : index
    %c0_58 = arith.constant 0 : index
    %51 = vector.load %arg6[%c2_56, %c0_57, %c0_58] : memref<10x10x4xf32, #tpu.memory_space<vmem>>, vector<8x8x4xf32>
    %52 = vector.shape_cast %51 : vector<8x8x4xf32> to vector<64x4xf32>
    %c6 = arith.constant 6 : index
    %c0_59 = arith.constant 0 : index
    %c0_60 = arith.constant 0 : index
    %53 = vector.load %arg2[%c6, %c0_59, %c0_60] : memref<9x4x8xf32, #tpu.memory_space<vmem>>, vector<1x4x8xf32>
    %54 = vector.shape_cast %53 : vector<1x4x8xf32> to vector<4x8xf32>
    %cst_61 = arith.constant dense<0.000000e+00> : vector<64x8xf32>
    %55 = tpu.matmul %52, %54, %cst_61 {dimension_numbers = #tpu.dot_dimension_numbers<[1], [0], [0], [1], [0, 0, 1, 1], [], []>} : vector<64x4xf32>, vector<4x8xf32>, vector<64x8xf32> -> vector<64x8xf32>
    %56 = arith.addf %50, %55 : vector<64x8xf32>
    %c2_62 = arith.constant 2 : index
    %c1_63 = arith.constant 1 : index
    %c0_64 = arith.constant 0 : index
    %57 = vector.load %arg6[%c2_62, %c1_63, %c0_64] : memref<10x10x4xf32, #tpu.memory_space<vmem>>, vector<8x8x4xf32>
    %58 = vector.shape_cast %57 : vector<8x8x4xf32> to vector<64x4xf32>
    %c7 = arith.constant 7 : index
    %c0_65 = arith.constant 0 : index
    %c0_66 = arith.constant 0 : index
    %59 = vector.load %arg2[%c7, %c0_65, %c0_66] : memref<9x4x8xf32, #tpu.memory_space<vmem>>, vector<1x4x8xf32>
    %60 = vector.shape_cast %59 : vector<1x4x8xf32> to vector<4x8xf32>
    %cst_67 = arith.constant dense<0.000000e+00> : vector<64x8xf32>
    %61 = tpu.matmul %58, %60, %cst_67 {dimension_numbers = #tpu.dot_dimension_numbers<[1], [0], [0], [1], [0, 0, 1, 1], [], []>} : vector<64x4xf32>, vector<4x8xf32>, vector<64x8xf32> -> vector<64x8xf32>
    %62 = arith.addf %56, %61 : vector<64x8xf32>
    %c2_68 = arith.constant 2 : index
    %c2_69 = arith.constant 2 : index
    %c0_70 = arith.constant 0 : index
    %63 = vector.load %arg6[%c2_68, %c2_69, %c0_70] : memref<10x10x4xf32, #tpu.memory_space<vmem>>, vector<8x8x4xf32>
    %64 = vector.shape_cast %63 : vector<8x8x4xf32> to vector<64x4xf32>
    %c8_71 = arith.constant 8 : index
    %c0_72 = arith.constant 0 : index
    %c0_73 = arith.constant 0 : index
    %65 = vector.load %arg2[%c8_71, %c0_72, %c0_73] : memref<9x4x8xf32, #tpu.memory_space<vmem>>, vector<1x4x8xf32>
    %66 = vector.shape_cast %65 : vector<1x4x8xf32> to vector<4x8xf32>
    %cst_74 = arith.constant dense<0.000000e+00> : vector<64x8xf32>
    %67 = tpu.matmul %64, %66, %cst_74 {dimension_numbers = #tpu.dot_dimension_numbers<[1], [0], [0], [1], [0, 0, 1, 1], [], []>} : vector<64x4xf32>, vector<4x8xf32>, vector<64x8xf32> -> vector<64x8xf32>
    %68 = arith.addf %62, %67 : vector<64x8xf32>
    %c0_75 = arith.constant 0 : index
    %c0_76 = arith.constant 0 : index
    %c0_77 = arith.constant 0 : index
    %69 = vector.load %arg3[%c0_75, %c0_76, %c0_77] : memref<1x64x8xf32, #tpu.memory_space<vmem>>, vector<1x64x8xf32>
    %70 = vector.shape_cast %69 : vector<1x64x8xf32> to vector<64x8xf32>
    %71 = vector.shape_cast %68 : vector<64x8xf32> to vector<1x64x8xf32>
    tpu.vector_store %arg3[%c0_75, %c0_76, %c0_77], %71 {strides = array<i32>} : memref<1x64x8xf32, #tpu.memory_space<vmem>>, vector<1x64x8xf32>,
    %cst_78 = arith.constant dense<0.000000e+00> : vector<8xf32>
    %72 = vector.multi_reduction <add>, %68, %cst_78 [0] : vector<64x8xf32> to vector<8xf32>
    %73 = vector.shape_cast %72 : vector<8xf32> to vector<1x8xf32>
    %c0_79 = arith.constant 0 : index
    %c0_80 = arith.constant 0 : index
    %c0_81 = arith.constant 0 : index
    %74 = vector.load %arg4[%c0_79, %c0_80, %c0_81] : memref<1x1x8xf32, #tpu.memory_space<vmem>>, vector<1x1x8xf32>
    %75 = vector.shape_cast %74 : vector<1x1x8xf32> to vector<1x8xf32>
    %76 = vector.shape_cast %73 : vector<1x8xf32> to vector<1x1x8xf32>
    tpu.vector_store %arg4[%c0_79, %c0_80, %c0_81], %76 {strides = array<i32>} : memref<1x1x8xf32, #tpu.memory_space<vmem>>, vector<1x1x8xf32>,
    %77 = arith.mulf %68, %68 : vector<64x8xf32>
    %cst_82 = arith.constant dense<0.000000e+00> : vector<8xf32>
    %78 = vector.multi_reduction <add>, %77, %cst_82 [0] : vector<64x8xf32> to vector<8xf32>
    %79 = vector.shape_cast %78 : vector<8xf32> to vector<1x8xf32>
    %c0_83 = arith.constant 0 : index
    %c0_84 = arith.constant 0 : index
    %c0_85 = arith.constant 0 : index
    %80 = vector.load %arg5[%c0_83, %c0_84, %c0_85] : memref<1x1x8xf32, #tpu.memory_space<vmem>>, vector<1x1x8xf32>
    %81 = vector.shape_cast %80 : vector<1x1x8xf32> to vector<1x8xf32>
    %82 = vector.shape_cast %79 : vector<1x8xf32> to vector<1x1x8xf32>
    tpu.vector_store %arg5[%c0_83, %c0_84, %c0_85], %82 {strides = array<i32>} : memref<1x1x8xf32, #tpu.memory_space<vmem>>, vector<1x1x8xf32>,
    return
  }
  func.func @transform_0(%arg0: i32) -> (i32, i32, i32, i32) {
    %c0_i32 = arith.constant 0 : i32
    %c0_i32_0 = arith.constant 0 : i32
    %c0_i32_1 = arith.constant 0 : i32
    %c0_i32_2 = arith.constant 0 : i32
    return %arg0, %c0_i32, %c0_i32_0, %c0_i32_1 : i32, i32, i32, i32
  }
  func.func @transform_1(%arg0: i32) -> (i32, i32, i32) {
    %c0_i32 = arith.constant 0 : i32
    %c0_i32_0 = arith.constant 0 : i32
    %c0_i32_1 = arith.constant 0 : i32
    %c0_i32_2 = arith.constant 0 : i32
    return %c0_i32, %c0_i32_0, %c0_i32_1 : i32, i32, i32
  }
  func.func @transform_2(%arg0: i32) -> (i32, i32, i32) {
    %c0_i32 = arith.constant 0 : i32
    %c0_i32_0 = arith.constant 0 : i32
    %c0_i32_1 = arith.constant 0 : i32
    return %arg0, %c0_i32, %c0_i32_0 : i32, i32, i32
  }
  func.func @transform_3(%arg0: i32) -> (i32, i32, i32) {
    %c0_i32 = arith.constant 0 : i32
    %c0_i32_0 = arith.constant 0 : i32
    %c0_i32_1 = arith.constant 0 : i32
    return %arg0, %c0_i32, %c0_i32_0 : i32, i32, i32
  }
  func.func @transform_4(%arg0: i32) -> (i32, i32, i32) {
    %c0_i32 = arith.constant 0 : i32
    %c0_i32_0 = arith.constant 0 : i32
    %c0_i32_1 = arith.constant 0 : i32
    return %arg0, %c0_i32, %c0_i32_0 : i32, i32, i32
  }
}

module attributes {stable_mosaic.version = 11 : i64} {
  func.func @bn_act_kernel(%arg0: i32, %arg1: memref<1x64x8xf32, #tpu.memory_space<vmem>>, %arg2: memref<2x8xf32, #tpu.memory_space<vmem>>, %arg3: memref<1x64x8xf32, #tpu.memory_space<vmem>>) attributes {dimension_semantics = [#tpu.dimension_semantics<parallel>], iteration_bounds = array<i64: 2>, scalar_prefetch = 0 : i64, scratch_operands = 0 : i64, tpu.core_type = #tpu.core_type<tc>, window_params = [{transform_indices = @transform_0, window_bounds = array<i64: 1, 64, 8>}, {pipeline_mode = #tpu.pipeline_mode<synchronous>, transform_indices = @transform_1, window_bounds = array<i64: 2, 8>}, {transform_indices = @transform_2, window_bounds = array<i64: 1, 64, 8>}]} {
    %c0 = arith.constant 0 : index
    %c0_0 = arith.constant 0 : index
    %c0_1 = arith.constant 0 : index
    %0 = vector.load %arg1[%c0, %c0_0, %c0_1] : memref<1x64x8xf32, #tpu.memory_space<vmem>>, vector<1x64x8xf32>
    %1 = vector.shape_cast %0 : vector<1x64x8xf32> to vector<64x8xf32>
    %c0_2 = arith.constant 0 : index
    %c0_3 = arith.constant 0 : index
    %2 = vector.load %arg2[%c0_2, %c0_3] : memref<2x8xf32, #tpu.memory_space<vmem>>, vector<1x8xf32>
    %3 = vector.broadcast %2 : vector<1x8xf32> to vector<64x8xf32>
    %4 = arith.mulf %1, %3 : vector<64x8xf32>
    %c1 = arith.constant 1 : index
    %c0_4 = arith.constant 0 : index
    %5 = vector.load %arg2[%c1, %c0_4] : memref<2x8xf32, #tpu.memory_space<vmem>>, vector<1x8xf32>
    %6 = vector.broadcast %5 : vector<1x8xf32> to vector<64x8xf32>
    %7 = arith.addf %4, %6 : vector<64x8xf32>
    %cst = arith.constant 0.000000e+00 : f32
    %8 = vector.broadcast %cst : f32 to vector<64x8xf32>
    %9 = arith.maximumf %7, %8 : vector<64x8xf32>
    %c0_5 = arith.constant 0 : index
    %c0_6 = arith.constant 0 : index
    %c0_7 = arith.constant 0 : index
    %10 = vector.load %arg3[%c0_5, %c0_6, %c0_7] : memref<1x64x8xf32, #tpu.memory_space<vmem>>, vector<1x64x8xf32>
    %11 = vector.shape_cast %10 : vector<1x64x8xf32> to vector<64x8xf32>
    %12 = vector.shape_cast %9 : vector<64x8xf32> to vector<1x64x8xf32>
    tpu.vector_store %arg3[%c0_5, %c0_6, %c0_7], %12 {strides = array<i32>} : memref<1x64x8xf32, #tpu.memory_space<vmem>>, vector<1x64x8xf32>,
    return
  }
  func.func @transform_0(%arg0: i32) -> (i32, i32, i32) {
    %c0_i32 = arith.constant 0 : i32
    %c0_i32_0 = arith.constant 0 : i32
    %c0_i32_1 = arith.constant 0 : i32
    return %arg0, %c0_i32, %c0_i32_0 : i32, i32, i32
  }
  func.func @transform_1(%arg0: i32) -> (i32, i32) {
    %c0_i32 = arith.constant 0 : i32
    %c0_i32_0 = arith.constant 0 : i32
    %c0_i32_1 = arith.constant 0 : i32
    return %c0_i32, %c0_i32_0 : i32, i32
  }
  func.func @transform_2(%arg0: i32) -> (i32, i32, i32) {
    %c0_i32 = arith.constant 0 : i32
    %c0_i32_0 = arith.constant 0 : i32
    %c0_i32_1 = arith.constant 0 : i32
    return %arg0, %c0_i32, %c0_i32_0 : i32, i32, i32
  }
}

module attributes {stable_mosaic.version = 11 : i64} {
  func.func @bn_act_conv_kernel(%arg0: i32, %arg1: memref<1x64x8xf32, #tpu.memory_space<vmem>>, %arg2: memref<2x8xf32, #tpu.memory_space<vmem>>, %arg3: memref<9x8x8xf32, #tpu.memory_space<vmem>>, %arg4: memref<1x64x8xf32, #tpu.memory_space<vmem>>, %arg5: memref<1x1x8xf32, #tpu.memory_space<vmem>>, %arg6: memref<1x1x8xf32, #tpu.memory_space<vmem>>, %arg7: memref<10x10x8xf32, #tpu.memory_space<vmem>>) attributes {dimension_semantics = [#tpu.dimension_semantics<parallel>], iteration_bounds = array<i64: 2>, scalar_prefetch = 0 : i64, scratch_operands = 1 : i64, tpu.core_type = #tpu.core_type<tc>, window_params = [{transform_indices = @transform_0, window_bounds = array<i64: 1, 64, 8>}, {pipeline_mode = #tpu.pipeline_mode<synchronous>, transform_indices = @transform_1, window_bounds = array<i64: 2, 8>}, {pipeline_mode = #tpu.pipeline_mode<synchronous>, transform_indices = @transform_2, window_bounds = array<i64: 9, 8, 8>}, {transform_indices = @transform_3, window_bounds = array<i64: 1, 64, 8>}, {transform_indices = @transform_4, window_bounds = array<i64: 1, 1, 8>}, {transform_indices = @transform_5, window_bounds = array<i64: 1, 1, 8>}]} {
    %c0 = arith.constant 0 : index
    %c0_0 = arith.constant 0 : index
    %c0_1 = arith.constant 0 : index
    %0 = vector.load %arg1[%c0, %c0_0, %c0_1] : memref<1x64x8xf32, #tpu.memory_space<vmem>>, vector<1x64x8xf32>
    %1 = vector.shape_cast %0 : vector<1x64x8xf32> to vector<64x8xf32>
    %c0_2 = arith.constant 0 : index
    %c0_3 = arith.constant 0 : index
    %2 = vector.load %arg2[%c0_2, %c0_3] : memref<2x8xf32, #tpu.memory_space<vmem>>, vector<1x8xf32>
    %3 = vector.broadcast %2 : vector<1x8xf32> to vector<64x8xf32>
    %4 = arith.mulf %1, %3 : vector<64x8xf32>
    %c1 = arith.constant 1 : index
    %c0_4 = arith.constant 0 : index
    %5 = vector.load %arg2[%c1, %c0_4] : memref<2x8xf32, #tpu.memory_space<vmem>>, vector<1x8xf32>
    %6 = vector.broadcast %5 : vector<1x8xf32> to vector<64x8xf32>
    %7 = arith.addf %4, %6 : vector<64x8xf32>
    %cst = arith.constant 0.000000e+00 : f32
    %8 = vector.broadcast %cst : f32 to vector<64x8xf32>
    %9 = arith.maximumf %7, %8 : vector<64x8xf32>
    %cst_5 = arith.constant 0.000000e+00 : f32
    %10 = vector.broadcast %cst_5 : f32 to vector<10x10x8xf32>
    %c0_6 = arith.constant 0 : index
    %c0_7 = arith.constant 0 : index
    %c0_8 = arith.constant 0 : index
    %11 = vector.load %arg7[%c0_6, %c0_7, %c0_8] : memref<10x10x8xf32, #tpu.memory_space<vmem>>, vector<10x10x8xf32>
    tpu.vector_store %arg7[%c0_6, %c0_7, %c0_8], %10 {strides = array<i32>} : memref<10x10x8xf32, #tpu.memory_space<vmem>>, vector<10x10x8xf32>,
    %12 = vector.shape_cast %9 : vector<64x8xf32> to vector<8x8x8xf32>
    %c1_9 = arith.constant 1 : index
    %c1_10 = arith.constant 1 : index
    %c0_11 = arith.constant 0 : index
    %13 = vector.load %arg7[%c1_9, %c1_10, %c0_11] : memref<10x10x8xf32, #tpu.memory_space<vmem>>, vector<8x8x8xf32>
    tpu.vector_store %arg7[%c1_9, %c1_10, %c0_11], %12 {strides = array<i32>} : memref<10x10x8xf32, #tpu.memory_space<vmem>>, vector<8x8x8xf32>,
    %cst_12 = arith.constant 0.000000e+00 : f32
    %14 = vector.broadcast %cst_12 : f32 to vector<64x8xf32>
    %c0_13 = arith.constant 0 : index
    %c0_14 = arith.constant 0 : index
    %c0_15 = arith.constant 0 : index
    %15 = vector.load %arg7[%c0_13, %c0_14, %c0_15] : memref<10x10x8xf32, #tpu.memory_space<vmem>>, vector<8x8x8xf32>
    %16 = vector.shape_cast %15 : vector<8x8x8xf32> to vector<64x8xf32>
    %c0_16 = arith.constant 0 : index
    %c0_17 = arith.constant 0 : index
    %c0_18 = arith.constant 0 : index
    %17 = vector.load %arg3[%c0_16, %c0_17, %c0_18] : memref<9x8x8xf32, #tpu.memory_space<vmem>>, vector<1x8x8xf32>
    %18 = vector.shape_cast %17 : vector<1x8x8xf32> to vector<8x8xf32>
    %cst_19 = arith.constant dense<0.000000e+00> : vector<64x8xf32>
    %19 = tpu.matmul %16, %18, %cst_19 {dimension_numbers = #tpu.dot_dimension_numbers<[1], [0], [0], [1], [0, 0, 1, 1], [], []>} : vector<64x8xf32>, vector<8x8xf32>, vector<64x8xf32> -> vector<64x8xf32>
    %20 = arith.addf %14, %19 : vector<64x8xf32>
    %c0_20 = arith.constant 0 : index
    %c1_21 = arith.constant 1 : index
    %c0_22 = arith.constant 0 : index
    %21 = vector.load %arg7[%c0_20, %c1_21, %c0_22] : memref<10x10x8xf32, #tpu.memory_space<vmem>>, vector<8x8x8xf32>
    %22 = vector.shape_cast %21 : vector<8x8x8xf32> to vector<64x8xf32>
    %c1_23 = arith.constant 1 : index
    %c0_24 = arith.constant 0 : index
    %c0_25 = arith.constant 0 : index
    %23 = vector.load %arg3[%c1_23, %c0_24, %c0_25] : memref<9x8x8xf32, #tpu.memory_space<vmem>>, vector<1x8x8xf32>
    %24 = vector.shape_cast %23 : vector<1x8x8xf32> to vector<8x8xf32>
    %cst_26 = arith.constant dense<0.000000e+00> : vector<64x8xf32>
    %25 = tpu.matmul %22, %24, %cst_26 {dimension_numbers = #tpu.dot_dimension_numbers<[1], [0], [0], [1], [0, 0, 1, 1], [], []>} : vector<64x8xf32>, vector<8x8xf32>, vector<64x8xf32> -> vector<64x8xf32>
    %26 = arith.addf %20, %25 : vector<64x8xf32>
    %c0_27 = arith.constant 0 : index
    %c2 = arith.constant 2 : index
    %c0_28 = arith.constant 0 : index
    %27 = vector.load %arg7[%c0_27, %c2, %c0_28] : memref<10x10x8xf32, #tpu.memory_space<vmem>>, vector<8x8x8xf32>
    %28 = vector.shape_cast %27 : vector<8x8x8xf32> to vector<64x8xf32>
    %c2_29 = arith.constant 2 : index
    %c0_30 = arith.constant 0 : index
    %c0_31 = arith.constant 0 : index
    %29 = vector.load %arg3[%c2_29, %c0_30, %c0_31] : memref<9x8x8xf32, #tpu.memory_space<vmem>>, vector<1x8x8xf32>
    %30 = vector.shape_cast %29 : vector<1x8x8xf32> to vector<8x8xf32>
    %cst_32 = arith.constant dense<0.000000e+00> : vector<64x8xf32>
    %31 = tpu.matmul %28, %30, %cst_32 {dimension_numbers = #tpu.dot_dimension_numbers<[1], [0], [0], [1], [0, 0, 1, 1], [], []>} : vector<64x8xf32>, vector<8x8xf32>, vector<64x8xf32> -> vector<64x8xf32>
    %32 = arith.addf %26, %31 : vector<64x8xf32>
    %c1_33 = arith.constant 1 : index
    %c0_34 = arith.constant 0 : index
    %c0_35 = arith.constant 0 : index
    %33 = vector.load %arg7[%c1_33, %c0_34, %c0_35] : memref<10x10x8xf32, #tpu.memory_space<vmem>>, vector<8x8x8xf32>
    %34 = vector.shape_cast %33 : vector<8x8x8xf32> to vector<64x8xf32>
    %c3 = arith.constant 3 : index
    %c0_36 = arith.constant 0 : index
    %c0_37 = arith.constant 0 : index
    %35 = vector.load %arg3[%c3, %c0_36, %c0_37] : memref<9x8x8xf32, #tpu.memory_space<vmem>>, vector<1x8x8xf32>
    %36 = vector.shape_cast %35 : vector<1x8x8xf32> to vector<8x8xf32>
    %cst_38 = arith.constant dense<0.000000e+00> : vector<64x8xf32>
    %37 = tpu.matmul %34, %36, %cst_38 {dimension_numbers = #tpu.dot_dimension_numbers<[1], [0], [0], [1], [0, 0, 1, 1], [], []>} : vector<64x8xf32>, vector<8x8xf32>, vector<64x8xf32> -> vector<64x8xf32>
    %38 = arith.addf %32, %37 : vector<64x8xf32>
    %c1_39 = arith.constant 1 : index
    %c1_40 = arith.constant 1 : index
    %c0_41 = arith.constant 0 : index
    %39 = vector.load %arg7[%c1_39, %c1_40, %c0_41] : memref<10x10x8xf32, #tpu.memory_space<vmem>>, vector<8x8x8xf32>
    %40 = vector.shape_cast %39 : vector<8x8x8xf32> to vector<64x8xf32>
    %c4 = arith.constant 4 : index
    %c0_42 = arith.constant 0 : index
    %c0_43 = arith.constant 0 : index
    %41 = vector.load %arg3[%c4, %c0_42, %c0_43] : memref<9x8x8xf32, #tpu.memory_space<vmem>>, vector<1x8x8xf32>
    %42 = vector.shape_cast %41 : vector<1x8x8xf32> to vector<8x8xf32>
    %cst_44 = arith.constant dense<0.000000e+00> : vector<64x8xf32>
    %43 = tpu.matmul %40, %42, %cst_44 {dimension_numbers = #tpu.dot_dimension_numbers<[1], [0], [0], [1], [0, 0, 1, 1], [], []>} : vector<64x8xf32>, vector<8x8xf32>, vector<64x8xf32> -> vector<64x8xf32>
    %44 = arith.addf %38, %43 : vector<64x8xf32>
    %c1_45 = arith.constant 1 : index
    %c2_46 = arith.constant 2 : index
    %c0_47 = arith.constant 0 : index
    %45 = vector.load %arg7[%c1_45, %c2_46, %c0_47] : memref<10x10x8xf32, #tpu.memory_space<vmem>>, vector<8x8x8xf32>
    %46 = vector.shape_cast %45 : vector<8x8x8xf32> to vector<64x8xf32>
    %c5 = arith.constant 5 : index
    %c0_48 = arith.constant 0 : index
    %c0_49 = arith.constant 0 : index
    %47 = vector.load %arg3[%c5, %c0_48, %c0_49] : memref<9x8x8xf32, #tpu.memory_space<vmem>>, vector<1x8x8xf32>
    %48 = vector.shape_cast %47 : vector<1x8x8xf32> to vector<8x8xf32>
    %cst_50 = arith.constant dense<0.000000e+00> : vector<64x8xf32>
    %49 = tpu.matmul %46, %48, %cst_50 {dimension_numbers = #tpu.dot_dimension_numbers<[1], [0], [0], [1], [0, 0, 1, 1], [], []>} : vector<64x8xf32>, vector<8x8xf32>, vector<64x8xf32> -> vector<64x8xf32>
    %50 = arith.addf %44, %49 : vector<64x8xf32>
    %c2_51 = arith.constant 2 : index
    %c0_52 = arith.constant 0 : index
    %c0_53 = arith.constant 0 : index
    %51 = vector.load %arg7[%c2_51, %c0_52, %c0_53] : memref<10x10x8xf32, #tpu.memory_space<vmem>>, vector<8x8x8xf32>
    %52 = vector.shape_cast %51 : vector<8x8x8xf32> to vector<64x8xf32>
    %c6 = arith.constant 6 : index
    %c0_54 = arith.constant 0 : index
    %c0_55 = arith.constant 0 : index
    %53 = vector.load %arg3[%c6, %c0_54, %c0_55] : memref<9x8x8xf32, #tpu.memory_space<vmem>>, vector<1x8x8xf32>
    %54 = vector.shape_cast %53 : vector<1x8x8xf32> to vector<8x8xf32>
    %cst_56 = arith.constant dense<0.000000e+00> : vector<64x8xf32>
    %55 = tpu.matmul %52, %54, %cst_56 {dimension_numbers = #tpu.dot_dimension_numbers<[1], [0], [0], [1], [0, 0, 1, 1], [], []>} : vector<64x8xf32>, vector<8x8xf32>, vector<64x8xf32> -> vector<64x8xf32>
    %56 = arith.addf %50, %55 : vector<64x8xf32>
    %c2_57 = arith.constant 2 : index
    %c1_58 = arith.constant 1 : index
    %c0_59 = arith.constant 0 : index
    %57 = vector.load %arg7[%c2_57, %c1_58, %c0_59] : memref<10x10x8xf32, #tpu.memory_space<vmem>>, vector<8x8x8xf32>
    %58 = vector.shape_cast %57 : vector<8x8x8xf32> to vector<64x8xf32>
    %c7 = arith.constant 7 : index
    %c0_60 = arith.constant 0 : index
    %c0_61 = arith.constant 0 : index
    %59 = vector.load %arg3[%c7, %c0_60, %c0_61] : memref<9x8x8xf32, #tpu.memory_space<vmem>>, vector<1x8x8xf32>
    %60 = vector.shape_cast %59 : vector<1x8x8xf32> to vector<8x8xf32>
    %cst_62 = arith.constant dense<0.000000e+00> : vector<64x8xf32>
    %61 = tpu.matmul %58, %60, %cst_62 {dimension_numbers = #tpu.dot_dimension_numbers<[1], [0], [0], [1], [0, 0, 1, 1], [], []>} : vector<64x8xf32>, vector<8x8xf32>, vector<64x8xf32> -> vector<64x8xf32>
    %62 = arith.addf %56, %61 : vector<64x8xf32>
    %c2_63 = arith.constant 2 : index
    %c2_64 = arith.constant 2 : index
    %c0_65 = arith.constant 0 : index
    %63 = vector.load %arg7[%c2_63, %c2_64, %c0_65] : memref<10x10x8xf32, #tpu.memory_space<vmem>>, vector<8x8x8xf32>
    %64 = vector.shape_cast %63 : vector<8x8x8xf32> to vector<64x8xf32>
    %c8 = arith.constant 8 : index
    %c0_66 = arith.constant 0 : index
    %c0_67 = arith.constant 0 : index
    %65 = vector.load %arg3[%c8, %c0_66, %c0_67] : memref<9x8x8xf32, #tpu.memory_space<vmem>>, vector<1x8x8xf32>
    %66 = vector.shape_cast %65 : vector<1x8x8xf32> to vector<8x8xf32>
    %cst_68 = arith.constant dense<0.000000e+00> : vector<64x8xf32>
    %67 = tpu.matmul %64, %66, %cst_68 {dimension_numbers = #tpu.dot_dimension_numbers<[1], [0], [0], [1], [0, 0, 1, 1], [], []>} : vector<64x8xf32>, vector<8x8xf32>, vector<64x8xf32> -> vector<64x8xf32>
    %68 = arith.addf %62, %67 : vector<64x8xf32>
    %c0_69 = arith.constant 0 : index
    %c0_70 = arith.constant 0 : index
    %c0_71 = arith.constant 0 : index
    %69 = vector.load %arg4[%c0_69, %c0_70, %c0_71] : memref<1x64x8xf32, #tpu.memory_space<vmem>>, vector<1x64x8xf32>
    %70 = vector.shape_cast %69 : vector<1x64x8xf32> to vector<64x8xf32>
    %71 = vector.shape_cast %68 : vector<64x8xf32> to vector<1x64x8xf32>
    tpu.vector_store %arg4[%c0_69, %c0_70, %c0_71], %71 {strides = array<i32>} : memref<1x64x8xf32, #tpu.memory_space<vmem>>, vector<1x64x8xf32>,
    %cst_72 = arith.constant dense<0.000000e+00> : vector<8xf32>
    %72 = vector.multi_reduction <add>, %68, %cst_72 [0] : vector<64x8xf32> to vector<8xf32>
    %73 = vector.shape_cast %72 : vector<8xf32> to vector<1x8xf32>
    %c0_73 = arith.constant 0 : index
    %c0_74 = arith.constant 0 : index
    %c0_75 = arith.constant 0 : index
    %74 = vector.load %arg5[%c0_73, %c0_74, %c0_75] : memref<1x1x8xf32, #tpu.memory_space<vmem>>, vector<1x1x8xf32>
    %75 = vector.shape_cast %74 : vector<1x1x8xf32> to vector<1x8xf32>
    %76 = vector.shape_cast %73 : vector<1x8xf32> to vector<1x1x8xf32>
    tpu.vector_store %arg5[%c0_73, %c0_74, %c0_75], %76 {strides = array<i32>} : memref<1x1x8xf32, #tpu.memory_space<vmem>>, vector<1x1x8xf32>,
    %77 = arith.mulf %68, %68 : vector<64x8xf32>
    %cst_76 = arith.constant dense<0.000000e+00> : vector<8xf32>
    %78 = vector.multi_reduction <add>, %77, %cst_76 [0] : vector<64x8xf32> to vector<8xf32>
    %79 = vector.shape_cast %78 : vector<8xf32> to vector<1x8xf32>
    %c0_77 = arith.constant 0 : index
    %c0_78 = arith.constant 0 : index
    %c0_79 = arith.constant 0 : index
    %80 = vector.load %arg6[%c0_77, %c0_78, %c0_79] : memref<1x1x8xf32, #tpu.memory_space<vmem>>, vector<1x1x8xf32>
    %81 = vector.shape_cast %80 : vector<1x1x8xf32> to vector<1x8xf32>
    %82 = vector.shape_cast %79 : vector<1x8xf32> to vector<1x1x8xf32>
    tpu.vector_store %arg6[%c0_77, %c0_78, %c0_79], %82 {strides = array<i32>} : memref<1x1x8xf32, #tpu.memory_space<vmem>>, vector<1x1x8xf32>,
    return
  }
  func.func @transform_0(%arg0: i32) -> (i32, i32, i32) {
    %c0_i32 = arith.constant 0 : i32
    %c0_i32_0 = arith.constant 0 : i32
    %c0_i32_1 = arith.constant 0 : i32
    return %arg0, %c0_i32, %c0_i32_0 : i32, i32, i32
  }
  func.func @transform_1(%arg0: i32) -> (i32, i32) {
    %c0_i32 = arith.constant 0 : i32
    %c0_i32_0 = arith.constant 0 : i32
    %c0_i32_1 = arith.constant 0 : i32
    return %c0_i32, %c0_i32_0 : i32, i32
  }
  func.func @transform_2(%arg0: i32) -> (i32, i32, i32) {
    %c0_i32 = arith.constant 0 : i32
    %c0_i32_0 = arith.constant 0 : i32
    %c0_i32_1 = arith.constant 0 : i32
    %c0_i32_2 = arith.constant 0 : i32
    return %c0_i32, %c0_i32_0, %c0_i32_1 : i32, i32, i32
  }
  func.func @transform_3(%arg0: i32) -> (i32, i32, i32) {
    %c0_i32 = arith.constant 0 : i32
    %c0_i32_0 = arith.constant 0 : i32
    %c0_i32_1 = arith.constant 0 : i32
    return %arg0, %c0_i32, %c0_i32_0 : i32, i32, i32
  }
  func.func @transform_4(%arg0: i32) -> (i32, i32, i32) {
    %c0_i32 = arith.constant 0 : i32
    %c0_i32_0 = arith.constant 0 : i32
    %c0_i32_1 = arith.constant 0 : i32
    return %arg0, %c0_i32, %c0_i32_0 : i32, i32, i32
  }
  func.func @transform_5(%arg0: i32) -> (i32, i32, i32) {
    %c0_i32 = arith.constant 0 : i32
    %c0_i32_0 = arith.constant 0 : i32
    %c0_i32_1 = arith.constant 0 : i32
    return %arg0, %c0_i32, %c0_i32_0 : i32, i32, i32
  }
}

</mosaic_0001>

<llo_original>
// kernel: compression_layer_forward.5
$region0: #{compression_layer_forward.5}
  #allocation0 [shape = 'u32[]', space=smem, size = 0x4, offset = 0x4, fixed_abs, tag = 'smem constant byte address 0x4 - core index']
  #allocation1 [shape = 'u32[144,128]{1,0:T(1,128)}', space=vmem, size = 0x12000, scoped, tag = 'internal scratch']
  %s0 = inlined_call_operand.vmem [shape: f32[2,64,8], index: 0, kind: input, shape index: {}]
  %s1 = inlined_call_operand.vmem [shape: f32[2,8], index: 1, kind: input, shape index: {}]
  %s2 = inlined_call_operand.vmem [shape: f32[2,64,8], index: 2, kind: output, shape index: {}]
  %s3 = sld [smem:[#allocation0]]
  $region41: #{compression_layer_forward.5} parent=0
    _
  %s5 = ssub.s32 1, %s3
  %s6 = scalar_select 0, %s5, %s3
  loop: start=0, step=1, limit=4
  $region2: #{compression_layer_forward.5} parent=0 // loop_pre_header
    _
  $region3: #{compression_layer_forward.5} parent=0 // loop_header
    %s8 = sphi 0, %s12
    %p9 = scmp.ge.s32.totalorder %s8, 4
    %s18 = sphi 0, %s20
    %s21 = sphi 0, %s18
    %s22 = sphi 0, %s21
    %s38 = sphi 0, %s22
    %s42 = sphi 0, %s42
    %s44 = sphi 0, %s42
    %s45 = sphi 0, %s44
    %s59 = sphi 0, %s45
    %s65 = sphi 0, %s67
    %s68 = sphi 0, %s65
    %s69 = sphi 0, %s68
    %s85 = sphi 0, %s69
  $region4: #{compression_layer_forward.5} parent=0 // loop_header_branch
    %11 = sbr.rel (%p9) target = $region8
  $region5: #{compression_layer_forward.5} parent=0 // loop_body
    %s13 = ssub.s32 %s8, 1
    %s14 = ssub.s32 %s8, 2
    %s15 = sadd.s32 %s8, 1
    %s16 = ssub.s32 %s8, %s15
    %p17 = scmp.eq.s32.totalorder %s16, 0
    %s19 = sadd.s32 %s18, 1
    %s20 = scalar_select %p17, %s18, %s19
    %p23 = pneg %p17
    %p24 = scmp.eq.s32.totalorder %s8, 1
    %p25 = por %p23, %p24
    %p26 = scmp.ne.s32.totalorder %s18, %s21
    %p27 = scmp.eq.s32.totalorder %s8, 0
    %p28 = por %p26, %p27
    %p29 = scmp.ne.s32.totalorder %s18, %s21
    %p30 = scmp.eq.s32.totalorder %s13, 1
    %p31 = por %p29, %p30
    %p32 = scmp.ne.s32.totalorder %s21, %s22
    %p33 = scmp.eq.s32.totalorder %s13, 0
    %p34 = por %p32, %p33
    %p35 = scmp.ne.s32.totalorder %s21, %s22
    %p36 = scmp.eq.s32.totalorder %s14, 1
    %p37 = por %p35, %p36
    %p39 = scmp.ne.s32.totalorder %s22, %s38
    %p40 = scmp.eq.s32.totalorder %s14, 0
    %p41 = por %p39, %p40
    %s43 = sadd.s32 %s42, 1
    %p46 = scmp.eq.s32.totalorder %s8, 1
    %p47 = scmp.ne.s32.totalorder %s42, %s44
    %p48 = scmp.eq.s32.totalorder %s8, 0
    %p49 = por %p47, %p48
    %p50 = scmp.ne.s32.totalorder %s42, %s44
    %p51 = scmp.eq.s32.totalorder %s13, 1
    %p52 = por %p50, %p51
    %p53 = scmp.ne.s32.totalorder %s44, %s45
    %p54 = scmp.eq.s32.totalorder %s13, 0
    %p55 = por %p53, %p54
    %p56 = scmp.ne.s32.totalorder %s44, %s45
    %p57 = scmp.eq.s32.totalorder %s14, 1
    %p58 = por %p56, %p57
    %p60 = scmp.ne.s32.totalorder %s45, %s59
    %p61 = scmp.eq.s32.totalorder %s14, 0
    %p62 = por %p60, %p61
    %s63 = ssub.s32 %s8, %s15
    %p64 = scmp.eq.s32.totalorder %s63, 0
    %s66 = sadd.s32 %s65, 1
    %s67 = scalar_select %p64, %s65, %s66
    %p70 = pneg %p64
    %p71 = scmp.eq.s32.totalorder %s8, 1
    %p72 = por %p70, %p71
    %p73 = scmp.ne.s32.totalorder %s65, %s68
    %p74 = scmp.eq.s32.totalorder %s8, 0
    %p75 = por %p73, %p74
    %p76 = scmp.ne.s32.totalorder %s65, %s68
    %p77 = scmp.eq.s32.totalorder %s13, 1
    %p78 = por %p76, %p77
    %p79 = scmp.ne.s32.totalorder %s68, %s69
    %p80 = scmp.eq.s32.totalorder %s13, 0
    %p81 = por %p79, %p80
    %p82 = scmp.ne.s32.totalorder %s68, %s69
    %p83 = scmp.eq.s32.totalorder %s14, 1
    %p84 = por %p82, %p83
    %p86 = scmp.ne.s32.totalorder %s69, %s85
    %p87 = scmp.eq.s32.totalorder %s14, 0
    %p88 = por %p86, %p87
    %p89 = scmp.le.s32.totalorder 1, %s8
    %p90 = scmp.lt.s32.totalorder %s8, 3
    %p91 = pnand %p89, %p90
    %p92 = pneg %p91
    // Predicated region
    $region9: #{compression_layer_forward.5} parent=5 // pred_check
      _
    $region10: #{compression_layer_forward.5} parent=5 // pred_check_branch
      %94 = sbr.rel (%p91) target = $region12
    $region11: #{compression_layer_forward.5} parent=5 // pred_region
      %s95 = ssub.s32 %s8, 1
      // Predicated region
      $region13: #{compression_layer_forward.5} parent=11 // pred_check
        %p96 = pneg %p55
      $region14: #{compression_layer_forward.5} parent=11 // pred_check_branch
        %98 = sbr.rel (%p96) target = $region16
      $region15: #{compression_layer_forward.5} parent=11 // pred_region
        _
      $region16: #{compression_layer_forward.5} parent=11 // pred_fallthru
        _
    $region12: #{compression_layer_forward.5} parent=5 // pred_fallthru
      _
    %p99 = scmp.lt.s32.totalorder %s8, 2
    // Predicated region
    $region17: #{compression_layer_forward.5} parent=5 // pred_check
      %p100 = pneg %p99
    $region18: #{compression_layer_forward.5} parent=5 // pred_check_branch
      %102 = sbr.rel (%p100) target = $region20
    $region19: #{compression_layer_forward.5} parent=5 // pred_region
      // Predicated region
      $region21: #{compression_layer_forward.5} parent=19 // pred_check
        %p103 = pneg %p28
      $region22: #{compression_layer_forward.5} parent=19 // pred_check_branch
        %105 = sbr.rel (%p103) target = $region24
      $region23: #{compression_layer_forward.5} parent=19 // pred_region
        %p106 = scmp.lt.s32.totalorder %s8, 1
        %s107 = scalar_select %p106, %s8, 1
        %s108 = smul.addr %s107, 8
        %s109 = smul.addr %s108, 8
        %s110 = scalar_lea.vmem %s0, %s109
      $region24: #{compression_layer_forward.5} parent=19 // pred_fallthru
        _
    $region20: #{compression_layer_forward.5} parent=5 // pred_fallthru
      _
    %p111 = scmp.le.s32.totalorder 1, %s8
    %p112 = scmp.lt.s32.totalorder %s8, 3
    %p113 = pnand %p111, %p112
    %p114 = pneg %p113
    // Predicated region
    $region25: #{compression_layer_forward.5} parent=5 // pred_check
      _
    $region26: #{compression_layer_forward.5} parent=5 // pred_check_branch
      %116 = sbr.rel (%p113) target = $region28
    $region27: #{compression_layer_forward.5} parent=5 // pred_region
      %s117 = ssub.s32 %s8, 1
      %p118 = scmp.lt.s32.totalorder %s13, 1
      %s119 = scalar_select %p118, %s13, 1
      %s120 = smul.addr %s119, 8
      %s121 = smul.addr %s120, 8
      %s122 = scalar_lea.vmem %s0, %s121
      %p123 = pneg %p34
      %p124 = pneg %p31
      %p125 = pneg %p55
      %p126 = pneg %p52
      %p127 = pneg %p81
      %p128 = pneg %p78
      %p129 = scmp.lt.s32.totalorder %s13, 1
      %s130 = scalar_select %p129, %s13, 1
      %s131 = smul.addr %s130, 8
      %s132 = smul.addr %s131, 8
      %s133 = scalar_lea.vmem %s2, %s132
      %p134 = scmp.lt.s32.totalorder %s13, 1
      %s135 = scalar_select %p134, %s13, 1
      %s136 = smul.addr %s135, 8
      %s137 = smul.addr %s136, 8
      %s138 = scalar_lea.vmem %s0, %s137
      %p139 = scmp.lt.s32.totalorder %s13, 1
      %s140 = scalar_select %p139, %s13, 1
      %s141 = smul.addr %s140, 8
      %s142 = smul.addr %s141, 8
      %s143 = scalar_lea.vmem %s2, %s142
      %v144 = vld [vmem:[%s138] sm:$0xff]
      %v145 = vld [vmem:[%s138 + $0x8] sm:$0xff]
      %v146 = vld [vmem:[%s138 + $0x10] sm:$0xff]
      %v147 = vld [vmem:[%s138 + $0x18] sm:$0xff]
      %v148 = vld [vmem:[%s138 + $0x20] sm:$0xff]
      %v149 = vld [vmem:[%s138 + $0x28] sm:$0xff]
      %v150 = vld [vmem:[%s138 + $0x30] sm:$0xff]
      %v151 = vld [vmem:[%s138 + $0x38] sm:$0xff]
      %v152 = vld [vmem:[%s1] sm:$0x1]
      %v153 = vlaneseq
      %v154 = vshrl.u32 %v153, 7
      %v155 = vsub.s32 0, %v154
      %v156 = vrot.slane %v152, %v155
      %v157 = vmul.f32 %v144, %v156
      %v158 = vmul.f32 %v145, %v156
      %v159 = vmul.f32 %v146, %v156
      %v160 = vmul.f32 %v147, %v156
      %v161 = vmul.f32 %v148, %v156
      %v162 = vmul.f32 %v149, %v156
      %v163 = vmul.f32 %v150, %v156
      %v164 = vmul.f32 %v151, %v156
      %v165 = vld [vmem:[%s1 + $0x1] sm:$0x1]
      %v166 = vlaneseq
      %v167 = vshrl.u32 %v166, 7
      %v168 = vsub.s32 0, %v167
      %v169 = vrot.slane %v165, %v168
      %v170 = vadd.f32 %v157, %v169
      %v171 = vadd.f32 %v158, %v169
      %v172 = vadd.f32 %v159, %v169
      %v173 = vadd.f32 %v160, %v169
      %v174 = vadd.f32 %v161, %v169
      %v175 = vadd.f32 %v162, %v169
      %v176 = vadd.f32 %v163, %v169
      %v177 = vadd.f32 %v164, %v169
      %v178 = vmax.f32 %v170, 0.0
      %v179 = vmax.f32 %v171, 0.0
      %v180 = vmax.f32 %v172, 0.0
      %v181 = vmax.f32 %v173, 0.0
      %v182 = vmax.f32 %v174, 0.0
      %v183 = vmax.f32 %v175, 0.0
      %v184 = vmax.f32 %v176, 0.0
      %v185 = vmax.f32 %v177, 0.0
      %vm186 = vcmask 64512
      %187 = vst.msk [vmem:[%s143] sm:$0xff] %vm186, %v178
      %188 = vst.msk [vmem:[%s143 + $0x8] sm:$0xff] %vm186, %v179
      %189 = vst.msk [vmem:[%s143 + $0x10] sm:$0xff] %vm186, %v180
      %190 = vst.msk [vmem:[%s143 + $0x18] sm:$0xff] %vm186, %v181
      %191 = vst.msk [vmem:[%s143 + $0x20] sm:$0xff] %vm186, %v182
      %192 = vst.msk [vmem:[%s143 + $0x28] sm:$0xff] %vm186, %v183
      %193 = vst.msk [vmem:[%s143 + $0x30] sm:$0xff] %vm186, %v184
      %194 = vst.msk [vmem:[%s143 + $0x38] sm:$0xff] %vm186, %v185
      %p195 = scmp.lt.s32.totalorder %s13, 1
      %s196 = scalar_select %p195, %s13, 1
      %s197 = smul.addr %s196, 8
      %s198 = smul.addr %s197, 8
      %s199 = scalar_lea.vmem %s2, %s198
      // Predicated region
      $region29: #{compression_layer_forward.5} parent=27 // pred_check
        %p200 = pneg %p78
      $region30: #{compression_layer_forward.5} parent=27 // pred_check_branch
        %202 = sbr.rel (%p200) target = $region32
      $region31: #{compression_layer_forward.5} parent=27 // pred_region
        _
      $region32: #{compression_layer_forward.5} parent=27 // pred_fallthru
        _
    $region28: #{compression_layer_forward.5} parent=5 // pred_fallthru
      _
    %p203 = scmp.le.s32.totalorder 2, %s8
    // Predicated region
    $region33: #{compression_layer_forward.5} parent=5 // pred_check
      %p204 = pneg %p203
    $region34: #{compression_layer_forward.5} parent=5 // pred_check_branch
      %206 = sbr.rel (%p204) target = $region36
    $region35: #{compression_layer_forward.5} parent=5 // pred_region
      %s207 = ssub.s32 %s8, 2
      // Predicated region
      $region37: #{compression_layer_forward.5} parent=35 // pred_check
        %p208 = pneg %p84
      $region38: #{compression_layer_forward.5} parent=35 // pred_check_branch
        %210 = sbr.rel (%p208) target = $region40
      $region39: #{compression_layer_forward.5} parent=35 // pred_region
        %p211 = scmp.lt.s32.totalorder %s14, 1
        %s212 = scalar_select %p211, %s14, 1
        %s213 = smul.addr %s212, 8
        %s214 = smul.addr %s213, 8
        %s215 = scalar_lea.vmem %s2, %s214
      $region40: #{compression_layer_forward.5} parent=35 // pred_fallthru
        _
    $region36: #{compression_layer_forward.5} parent=5 // pred_fallthru
      _
  $region6: #{compression_layer_forward.5} parent=0 // loop_footer
    %s12 = sadd.s32 1, %s8
  $region7: #{compression_layer_forward.5} parent=0 // loop_footer_branch
    %7 = sbr.rel target = $region3
  $region8: #{compression_layer_forward.5} parent=0 // loop_exit
    _

// kernel: compression_layer_forward.4
$region0: #{compression_layer_forward.4}
  #allocation0 [shape = 'u32[]', space=smem, size = 0x4, offset = 0x4, fixed_abs, tag = 'smem constant byte address 0x4 - core index']
  #allocation1 [shape = 'u32[144,128]{1,0:T(1,128)}', space=vmem, size = 0x12000, scoped, tag = 'internal scratch']
  #allocation2 [shape = 'f32[10,10,8]{2,1,0:T(8,128)}', space=vmem, size = 0x14000, scoped, tag = 'scratch operand']
  %s0 = inlined_call_operand.vmem [shape: f32[2,64,8], index: 0, kind: input, shape index: {}]
  %s1 = inlined_call_operand.vmem [shape: f32[2,8], index: 1, kind: input, shape index: {}]
  %s2 = inlined_call_operand.vmem [shape: f32[9,8,8], index: 2, kind: input, shape index: {}]
  %s3 = inlined_call_operand.vmem [shape: f32[2,64,8], index: 3, kind: output, shape index: {0}]
  %s4 = inlined_call_operand.vmem [shape: f32[2,1,8], index: 4, kind: output, shape index: {1}]
  %s5 = inlined_call_operand.vmem [shape: f32[2,1,8], index: 5, kind: output, shape index: {2}]
  %6 = xla_tuple %s3, %s4, %s5
  %s7 = sld [smem:[#allocation0]]
  $region61: #{compression_layer_forward.4} parent=0
    _
  %s9 = ssub.s32 1, %s7
  %s10 = scalar_select 0, %s9, %s7
  loop: start=0, step=1, limit=4
  $region2: #{compression_layer_forward.4} parent=0 // loop_pre_header
    _
  $region3: #{compression_layer_forward.4} parent=0 // loop_header
    %s12 = sphi 0, %s16
    %p13 = scmp.ge.s32.totalorder %s12, 4
    %s22 = sphi 0, %s24
    %s25 = sphi 0, %s22
    %s26 = sphi 0, %s25
    %s42 = sphi 0, %s26
    %s46 = sphi 0, %s46
    %s48 = sphi 0, %s46
    %s49 = sphi 0, %s48
    %s63 = sphi 0, %s49
    %s67 = sphi 0, %s67
    %s69 = sphi 0, %s67
    %s70 = sphi 0, %s69
    %s84 = sphi 0, %s70
    %s90 = sphi 0, %s92
    %s93 = sphi 0, %s90
    %s94 = sphi 0, %s93
    %s110 = sphi 0, %s94
    %s116 = sphi 0, %s118
    %s119 = sphi 0, %s116
    %s120 = sphi 0, %s119
    %s136 = sphi 0, %s120
    %s142 = sphi 0, %s144
    %s145 = sphi 0, %s142
    %s146 = sphi 0, %s145
    %s162 = sphi 0, %s146
  $region4: #{compression_layer_forward.4} parent=0 // loop_header_branch
    %15 = sbr.rel (%p13) target = $region8
  $region5: #{compression_layer_forward.4} parent=0 // loop_body
    %s17 = ssub.s32 %s12, 1
    %s18 = ssub.s32 %s12, 2
    %s19 = sadd.s32 %s12, 1
    %s20 = ssub.s32 %s12, %s19
    %p21 = scmp.eq.s32.totalorder %s20, 0
    %s23 = sadd.s32 %s22, 1
    %s24 = scalar_select %p21, %s22, %s23
    %p27 = pneg %p21
    %p28 = scmp.eq.s32.totalorder %s12, 1
    %p29 = por %p27, %p28
    %p30 = scmp.ne.s32.totalorder %s22, %s25
    %p31 = scmp.eq.s32.totalorder %s12, 0
    %p32 = por %p30, %p31
    %p33 = scmp.ne.s32.totalorder %s22, %s25
    %p34 = scmp.eq.s32.totalorder %s17, 1
    %p35 = por %p33, %p34
    %p36 = scmp.ne.s32.totalorder %s25, %s26
    %p37 = scmp.eq.s32.totalorder %s17, 0
    %p38 = por %p36, %p37
    %p39 = scmp.ne.s32.totalorder %s25, %s26
    %p40 = scmp.eq.s32.totalorder %s18, 1
    %p41 = por %p39, %p40
    %p43 = scmp.ne.s32.totalorder %s26, %s42
    %p44 = scmp.eq.s32.totalorder %s18, 0
    %p45 = por %p43, %p44
    %s47 = sadd.s32 %s46, 1
    %p50 = scmp.eq.s32.totalorder %s12, 1
    %p51 = scmp.ne.s32.totalorder %s46, %s48
    %p52 = scmp.eq.s32.totalorder %s12, 0
    %p53 = por %p51, %p52
    %p54 = scmp.ne.s32.totalorder %s46, %s48
    %p55 = scmp.eq.s32.totalorder %s17, 1
    %p56 = por %p54, %p55
    %p57 = scmp.ne.s32.totalorder %s48, %s49
    %p58 = scmp.eq.s32.totalorder %s17, 0
    %p59 = por %p57, %p58
    %p60 = scmp.ne.s32.totalorder %s48, %s49
    %p61 = scmp.eq.s32.totalorder %s18, 1
    %p62 = por %p60, %p61
    %p64 = scmp.ne.s32.totalorder %s49, %s63
    %p65 = scmp.eq.s32.totalorder %s18, 0
    %p66 = por %p64, %p65
    %s68 = sadd.s32 %s67, 1
    %p71 = scmp.eq.s32.totalorder %s12, 1
    %p72 = scmp.ne.s32.totalorder %s67, %s69
    %p73 = scmp.eq.s32.totalorder %s12, 0
    %p74 = por %p72, %p73
    %p75 = scmp.ne.s32.totalorder %s67, %s69
    %p76 = scmp.eq.s32.totalorder %s17, 1
    %p77 = por %p75, %p76
    %p78 = scmp.ne.s32.totalorder %s69, %s70
    %p79 = scmp.eq.s32.totalorder %s17, 0
    %p80 = por %p78, %p79
    %p81 = scmp.ne.s32.totalorder %s69, %s70
    %p82 = scmp.eq.s32.totalorder %s18, 1
    %p83 = por %p81, %p82
    %p85 = scmp.ne.s32.totalorder %s70, %s84
    %p86 = scmp.eq.s32.totalorder %s18, 0
    %p87 = por %p85, %p86
    %s88 = ssub.s32 %s12, %s19
    %p89 = scmp.eq.s32.totalorder %s88, 0
    %s91 = sadd.s32 %s90, 1
    %s92 = scalar_select %p89, %s90, %s91
    %p95 = pneg %p89
    %p96 = scmp.eq.s32.totalorder %s12, 1
    %p97 = por %p95, %p96
    %p98 = scmp.ne.s32.totalorder %s90, %s93
    %p99 = scmp.eq.s32.totalorder %s12, 0
    %p100 = por %p98, %p99
    %p101 = scmp.ne.s32.totalorder %s90, %s93
    %p102 = scmp.eq.s32.totalorder %s17, 1
    %p103 = por %p101, %p102
    %p104 = scmp.ne.s32.totalorder %s93, %s94
    %p105 = scmp.eq.s32.totalorder %s17, 0
    %p106 = por %p104, %p105
    %p107 = scmp.ne.s32.totalorder %s93, %s94
    %p108 = scmp.eq.s32.totalorder %s18, 1
    %p109 = por %p107, %p108
    %p111 = scmp.ne.s32.totalorder %s94, %s110
    %p112 = scmp.eq.s32.totalorder %s18, 0
    %p113 = por %p111, %p112
    %s114 = ssub.s32 %s12, %s19
    %p115 = scmp.eq.s32.totalorder %s114, 0
    %s117 = sadd.s32 %s116, 1
    %s118 = scalar_select %p115, %s116, %s117
    %p121 = pneg %p115
    %p122 = scmp.eq.s32.totalorder %s12, 1
    %p123 = por %p121, %p122
    %p124 = scmp.ne.s32.totalorder %s116, %s119
    %p125 = scmp.eq.s32.totalorder %s12, 0
    %p126 = por %p124, %p125
    %p127 = scmp.ne.s32.totalorder %s116, %s119
    %p128 = scmp.eq.s32.totalorder %s17, 1
    %p129 = por %p127, %p128
    %p130 = scmp.ne.s32.totalorder %s119, %s120
    %p131 = scmp.eq.s32.totalorder %s17, 0
    %p132 = por %p130, %p131
    %p133 = scmp.ne.s32.totalorder %s119, %s120
    %p134 = scmp.eq.s32.totalorder %s18, 1
    %p135 = por %p133, %p134
    %p137 = scmp.ne.s32.totalorder %s120, %s136
    %p138 = scmp.eq.s32.totalorder %s18, 0
    %p139 = por %p137, %p138
    %s140 = ssub.s32 %s12, %s19
    %p141 = scmp.eq.s32.totalorder %s140, 0
    %s143 = sadd.s32 %s142, 1
    %s144 = scalar_select %p141, %s142, %s143
    %p147 = pneg %p141
    %p148 = scmp.eq.s32.totalorder %s12, 1
    %p149 = por %p147, %p148
    %p150 = scmp.ne.s32.totalorder %s142, %s145
    %p151 = scmp.eq.s32.totalorder %s12, 0
    %p152 = por %p150, %p151
    %p153 = scmp.ne.s32.totalorder %s142, %s145
    %p154 = scmp.eq.s32.totalorder %s17, 1
    %p155 = por %p153, %p154
    %p156 = scmp.ne.s32.totalorder %s145, %s146
    %p157 = scmp.eq.s32.totalorder %s17, 0
    %p158 = por %p156, %p157
    %p159 = scmp.ne.s32.totalorder %s145, %s146
    %p160 = scmp.eq.s32.totalorder %s18, 1
    %p161 = por %p159, %p160
    %p163 = scmp.ne.s32.totalorder %s146, %s162
    %p164 = scmp.eq.s32.totalorder %s18, 0
    %p165 = por %p163, %p164
    %p166 = scmp.le.s32.totalorder 1, %s12
    %p167 = scmp.lt.s32.totalorder %s12, 3
    %p168 = pnand %p166, %p167
    %p169 = pneg %p168
    // Predicated region
    $region9: #{compression_layer_forward.4} parent=5 // pred_check
      _
    $region10: #{compression_layer_forward.4} parent=5 // pred_check_branch
      %171 = sbr.rel (%p168) target = $region12
    $region11: #{compression_layer_forward.4} parent=5 // pred_region
      %s172 = ssub.s32 %s12, 1
      // Predicated region
      $region13: #{compression_layer_forward.4} parent=11 // pred_check
        %p173 = pneg %p59
      $region14: #{compression_layer_forward.4} parent=11 // pred_check_branch
        %175 = sbr.rel (%p173) target = $region16
      $region15: #{compression_layer_forward.4} parent=11 // pred_region
        _
      $region16: #{compression_layer_forward.4} parent=11 // pred_fallthru
        _
      // Predicated region
      $region17: #{compression_layer_forward.4} parent=11 // pred_check
        %p176 = pneg %p80
      $region18: #{compression_layer_forward.4} parent=11 // pred_check_branch
        %178 = sbr.rel (%p176) target = $region20
      $region19: #{compression_layer_forward.4} parent=11 // pred_region
        _
      $region20: #{compression_layer_forward.4} parent=11 // pred_fallthru
        _
    $region12: #{compression_layer_forward.4} parent=5 // pred_fallthru
      _
    %p179 = scmp.lt.s32.totalorder %s12, 2
    // Predicated region
    $region21: #{compression_layer_forward.4} parent=5 // pred_check
      %p180 = pneg %p179
    $region22: #{compression_layer_forward.4} parent=5 // pred_check_branch
      %182 = sbr.rel (%p180) target = $region24
    $region23: #{compression_layer_forward.4} parent=5 // pred_region
      // Predicated region
      $region25: #{compression_layer_forward.4} parent=23 // pred_check
        %p183 = pneg %p32
      $region26: #{compression_layer_forward.4} parent=23 // pred_check_branch
        %185 = sbr.rel (%p183) target = $region28
      $region27: #{compression_layer_forward.4} parent=23 // pred_region
        %p186 = scmp.lt.s32.totalorder %s12, 1
        %s187 = scalar_select %p186, %s12, 1
        %s188 = smul.addr %s187, 8
        %s189 = smul.addr %s188, 8
        %s190 = scalar_lea.vmem %s0, %s189
      $region28: #{compression_layer_forward.4} parent=23 // pred_fallthru
        _
    $region24: #{compression_layer_forward.4} parent=5 // pred_fallthru
      _
    %p191 = scmp.le.s32.totalorder 1, %s12
    %p192 = scmp.lt.s32.totalorder %s12, 3
    %p193 = pnand %p191, %p192
    %p194 = pneg %p193
    // Predicated region
    $region29: #{compression_layer_forward.4} parent=5 // pred_check
      _
    $region30: #{compression_layer_forward.4} parent=5 // pred_check_branch
      %196 = sbr.rel (%p193) target = $region32
    $region31: #{compression_layer_forward.4} parent=5 // pred_region
      %s197 = ssub.s32 %s12, 1
      %p198 = scmp.lt.s32.totalorder %s17, 1
      %s199 = scalar_select %p198, %s17, 1
      %s200 = smul.addr %s199, 8
      %s201 = smul.addr %s200, 8
      %s202 = scalar_lea.vmem %s0, %s201
      %p203 = pneg %p38
      %p204 = pneg %p35
      %p205 = pneg %p59
      %p206 = pneg %p56
      %p207 = pneg %p80
      %p208 = pneg %p77
      %p209 = pneg %p106
      %p210 = pneg %p103
      %p211 = scmp.lt.s32.totalorder %s17, 1
      %s212 = scalar_select %p211, %s17, 1
      %s213 = smul.addr %s212, 8
      %s214 = smul.addr %s213, 8
      %s215 = scalar_lea.vmem %s3, %s214
      %p216 = pneg %p132
      %p217 = pneg %p129
      %p218 = scmp.lt.s32.totalorder %s17, 1
      %s219 = scalar_select %p218, %s17, 1
      %s220 = scalar_lea.vmem %s4, %s219
      %p221 = pneg %p158
      %p222 = pneg %p155
      %p223 = scmp.lt.s32.totalorder %s17, 1
      %s224 = scalar_select %p223, %s17, 1
      %s225 = scalar_lea.vmem %s5, %s224
      %p226 = scmp.lt.s32.totalorder %s17, 1
      %s227 = scalar_select %p226, %s17, 1
      %s228 = smul.addr %s227, 8
      %s229 = smul.addr %s228, 8
      %s230 = scalar_lea.vmem %s0, %s229
      %p231 = scmp.lt.s32.totalorder %s17, 1
      %s232 = scalar_select %p231, %s17, 1
      %s233 = smul.addr %s232, 8
      %s234 = smul.addr %s233, 8
      %s235 = scalar_lea.vmem %s3, %s234
      %p236 = scmp.lt.s32.totalorder %s17, 1
      %s237 = scalar_select %p236, %s17, 1
      %s238 = scalar_lea.vmem %s4, %s237
      %p239 = scmp.lt.s32.totalorder %s17, 1
      %s240 = scalar_select %p239, %s17, 1
      %s241 = scalar_lea.vmem %s5, %s240
      %v242 = vld [vmem:[%s230] sm:$0xff]
      %v243 = vld [vmem:[%s230 + $0x8] sm:$0xff]
      %v244 = vld [vmem:[%s230 + $0x10] sm:$0xff]
      %v245 = vld [vmem:[%s230 + $0x18] sm:$0xff]
      %v246 = vld [vmem:[%s230 + $0x20] sm:$0xff]
      %v247 = vld [vmem:[%s230 + $0x28] sm:$0xff]
      %v248 = vld [vmem:[%s230 + $0x30] sm:$0xff]
      %v249 = vld [vmem:[%s230 + $0x38] sm:$0xff]
      %v250 = vld [vmem:[%s1] sm:$0x1]
      %v251 = vlaneseq
      %v252 = vshrl.u32 %v251, 7
      %v253 = vsub.s32 0, %v252
      %v254 = vrot.slane %v250, %v253
      %v255 = vmul.f32 %v242, %v254
      %v256 = vmul.f32 %v243, %v254
      %v257 = vmul.f32 %v244, %v254
      %v258 = vmul.f32 %v245, %v254
      %v259 = vmul.f32 %v246, %v254
      %v260 = vmul.f32 %v247, %v254
      %v261 = vmul.f32 %v248, %v254
      %v262 = vmul.f32 %v249, %v254
      %v263 = vld [vmem:[%s1 + $0x1] sm:$0x1]
      %v264 = vlaneseq
      %v265 = vshrl.u32 %v264, 7
      %v266 = vsub.s32 0, %v265
      %v267 = vrot.slane %v263, %v266
      %v268 = vadd.f32 %v255, %v267
      %v269 = vadd.f32 %v256, %v267
      %v270 = vadd.f32 %v257, %v267
      %v271 = vadd.f32 %v258, %v267
      %v272 = vadd.f32 %v259, %v267
      %v273 = vadd.f32 %v260, %v267
      %v274 = vadd.f32 %v261, %v267
      %v275 = vadd.f32 %v262, %v267
      %v276 = vmax.f32 %v268, 0.0
      %v277 = vmax.f32 %v269, 0.0
      %v278 = vmax.f32 %v270, 0.0
      %v279 = vmax.f32 %v271, 0.0
      %v280 = vmax.f32 %v272, 0.0
      %v281 = vmax.f32 %v273, 0.0
      %v282 = vmax.f32 %v274, 0.0
      %v283 = vmax.f32 %v275, 0.0
      %vm284 = vcmask 64512
      %285 = vst.msk [vmem:[#allocation2] sm:$0xff] %vm284, 0.0
      %vm286 = vcmask 58368
      %287 = vst.msk [vmem:[#allocation2 + $0x8] sm:$0x3] %vm286, 0.0
      %288 = vst.msk [vmem:[#allocation2 + $0x10] sm:$0xff] %vm284, 0.0
      %289 = vst.msk [vmem:[#allocation2 + $0x18] sm:$0x3] %vm286, 0.0
      %290 = vst.msk [vmem:[#allocation2 + $0x20] sm:$0xff] %vm284, 0.0
      %291 = vst.msk [vmem:[#allocation2 + $0x28] sm:$0x3] %vm286, 0.0
      %292 = vst.msk [vmem:[#allocation2 + $0x30] sm:$0xff] %vm284, 0.0
      %293 = vst.msk [vmem:[#allocation2 + $0x38] sm:$0x3] %vm286, 0.0
      %294 = vst.msk [vmem:[#allocation2 + $0x40] sm:$0xff] %vm284, 0.0
      %295 = vst.msk [vmem:[#allocation2 + $0x48] sm:$0x3] %vm286, 0.0
      %296 = vst.msk [vmem:[#allocation2 + $0x50] sm:$0xff] %vm284, 0.0
      %297 = vst.msk [vmem:[#allocation2 + $0x58] sm:$0x3] %vm286, 0.0
      %298 = vst.msk [vmem:[#allocation2 + $0x60] sm:$0xff] %vm284, 0.0
      %299 = vst.msk [vmem:[#allocation2 + $0x68] sm:$0x3] %vm286, 0.0
      %300 = vst.msk [vmem:[#allocation2 + $0x70] sm:$0xff] %vm284, 0.0
      %301 = vst.msk [vmem:[#allocation2 + $0x78] sm:$0x3] %vm286, 0.0
      %302 = vst.msk [vmem:[#allocation2 + $0x80] sm:$0xff] %vm284, 0.0
      %303 = vst.msk [vmem:[#allocation2 + $0x88] sm:$0x3] %vm286, 0.0
      %304 = vst.msk [vmem:[#allocation2 + $0x90] sm:$0xff] %vm284, 0.0
      %305 = vst.msk [vmem:[#allocation2 + $0x98] sm:$0x3] %vm286, 0.0
      %s306 = scalar_lea.vmem [#allocation2], 16
      %307 = vst.msk [vmem:[%s306 + $0x1] sm:$0xff] %vm284, %v276
      %308 = vst.msk [vmem:[%s306 + $0x11] sm:$0xff] %vm284, %v277
      %309 = vst.msk [vmem:[%s306 + $0x21] sm:$0xff] %vm284, %v278
      %310 = vst.msk [vmem:[%s306 + $0x31] sm:$0xff] %vm284, %v279
      %311 = vst.msk [vmem:[%s306 + $0x41] sm:$0xff] %vm284, %v280
      %312 = vst.msk [vmem:[%s306 + $0x51] sm:$0xff] %vm284, %v281
      %313 = vst.msk [vmem:[%s306 + $0x61] sm:$0xff] %vm284, %v282
      %314 = vst.msk [vmem:[%s306 + $0x71] sm:$0xff] %vm284, %v283
      %v315 = vld [vmem:[#allocation2] sm:$0xff]
      %v316 = vld [vmem:[#allocation2 + $0x10] sm:$0xff]
      %v317 = vld [vmem:[#allocation2 + $0x20] sm:$0xff]
      %v318 = vld [vmem:[#allocation2 + $0x30] sm:$0xff]
      %v319 = vld [vmem:[#allocation2 + $0x40] sm:$0xff]
      %v320 = vld [vmem:[#allocation2 + $0x50] sm:$0xff]
      %v321 = vld [vmem:[#allocation2 + $0x60] sm:$0xff]
      %v322 = vld [vmem:[#allocation2 + $0x70] sm:$0xff]
      %v323 = vld [vmem:[%s2] sm:$0xff]
      %v324 = vld [vmem:[#allocation2 + $0x1] sm:$0xff]
      %v325 = vld [vmem:[#allocation2 + $0x11] sm:$0xff]
      %v326 = vld [vmem:[#allocation2 + $0x21] sm:$0xff]
      %v327 = vld [vmem:[#allocation2 + $0x31] sm:$0xff]
      %v328 = vld [vmem:[#allocation2 + $0x41] sm:$0xff]
      %v329 = vld [vmem:[#allocation2 + $0x51] sm:$0xff]
      %v330 = vld [vmem:[#allocation2 + $0x61] sm:$0xff]
      %v331 = vld [vmem:[#allocation2 + $0x71] sm:$0xff]
      %s332 = scalar_lea.vmem %s2, 8
      %v333 = vld [vmem:[%s332] sm:$0xff]
      %v335 = vsel %vm284, %v324, 0
      %v338 = vsel %vm284, %v325, 0
      %v341 = vsel %vm284, %v326, 0
      %v344 = vsel %vm284, %v327, 0
      %v347 = vsel %vm284, %v328, 0
      %v350 = vsel %vm284, %v329, 0
      %v353 = vsel %vm284, %v330, 0
      %v356 = vsel %vm284, %v331, 0
      %358 = vmatprep.subr.mxu0 0.0
      %359 = vmatpush1.msra.mxu0 0.0
      %360 = vmatprep.subr.mxu0 0.0
      %361 = vmatpush1.msra.mxu0 0.0
      %362 = vmatprep.subr.mxu0 0.0
      %363 = vmatpush1.msra.mxu0 0.0
      %364 = vmatprep.subr.mxu0 0.0
      %365 = vmatpush1.msra.mxu0 0.0
      %366 = vmatprep.subr.mxu0 0.0
      %367 = vmatpush1.msra.mxu0 0.0
      %368 = vmatprep.subr.mxu0 0.0
      %369 = vmatpush1.msra.mxu0 0.0
      %370 = vmatprep.subr.mxu0 0.0
      %371 = vmatpush1.msra.mxu0 0.0
      %372 = vmatprep.subr.mxu0 0.0
      %373 = vmatpush1.msra.mxu0 0.0
      %374 = vmatprep.subr.mxu0 0.0
      %375 = vmatpush1.msra.mxu0 0.0
      %376 = vmatprep.subr.mxu0 0.0
      %377 = vmatpush1.msra.mxu0 0.0
      %378 = vmatprep.subr.mxu0 0.0
      %379 = vmatpush1.msra.mxu0 0.0
      %380 = vmatprep.subr.mxu0 0.0
      %381 = vmatpush1.msra.mxu0 0.0
      %382 = vmatprep.subr.mxu0 0.0
      %383 = vmatpush1.msra.mxu0 0.0
      %384 = vmatprep.subr.mxu0 0.0
      %385 = vmatpush1.msra.mxu0 0.0
      %386 = vmatprep.subr.mxu0 0.0
      %387 = vmatpush1.msra.mxu0 0.0
      %388 = vmatprep.subr.mxu0 0.0
      %389 = vmatpush1.msra.mxu0 %v333
      %390 = vmatprep.subr.mxu0 0.0
      %391 = vmatpush2.msra.mxu0 0.0
      %392 = vmatprep.subr.mxu0 0.0
      %393 = vmatpush2.msra.mxu0 0.0
      %394 = vmatprep.subr.mxu0 0.0
      %395 = vmatpush2.msra.mxu0 0.0
      %396 = vmatprep.subr.mxu0 0.0
      %397 = vmatpush2.msra.mxu0 0.0
      %398 = vmatprep.subr.mxu0 0.0
      %399 = vmatpush2.msra.mxu0 0.0
      %400 = vmatprep.subr.mxu0 0.0
      %401 = vmatpush2.msra.mxu0 0.0
      %402 = vmatprep.subr.mxu0 0.0
      %403 = vmatpush2.msra.mxu0 0.0
      %404 = vmatprep.subr.mxu0 0.0
      %405 = vmatpush2.msra.mxu0 0.0
      %406 = vmatprep.subr.mxu0 0.0
      %407 = vmatpush2.msra.mxu0 0.0
      %408 = vmatprep.subr.mxu0 0.0
      %409 = vmatpush2.msra.mxu0 0.0
      %410 = vmatprep.subr.mxu0 0.0
      %411 = vmatpush2.msra.mxu0 0.0
      %412 = vmatprep.subr.mxu0 0.0
      %413 = vmatpush2.msra.mxu0 0.0
      %414 = vmatprep.subr.mxu0 0.0
      %415 = vmatpush2.msra.mxu0 0.0
      %416 = vmatprep.subr.mxu0 0.0
      %417 = vmatpush2.msra.mxu0 0.0
      %418 = vmatprep.subr.mxu0 0.0
      %419 = vmatpush2.msra.mxu0 0.0
      %420 = vmatprep.subr.mxu0 0.0
      %421 = vmatpush2.msra.mxu0 0.0
      %422 = vmatprep.mubr.f32.mxu0 0.0
      %423 = vmatmul.mubr.f32.gmra.mxu0 %v335
      %v424 = vpop.f32.mrf.mxu0
      %v425 = vadd.f32 0.0, %v424
      %v426 = vpop.f32.mrf.mxu0
      %427 = vmatprep.mubr.f32.mxu0 0.0
      %428 = vmatmul.mubr.f32.gmra.mxu0 %v338
      %v429 = vpop.f32.mrf.mxu0
      %v430 = vadd.f32 0.0, %v429
      %v431 = vpop.f32.mrf.mxu0
      %432 = vmatprep.mubr.f32.mxu0 0.0
      %433 = vmatmul.mubr.f32.gmra.mxu0 %v341
      %v434 = vpop.f32.mrf.mxu0
      %v435 = vadd.f32 0.0, %v434
      %v436 = vpop.f32.mrf.mxu0
      %437 = vmatprep.mubr.f32.mxu0 0.0
      %438 = vmatmul.mubr.f32.gmra.mxu0 %v344
      %v439 = vpop.f32.mrf.mxu0
      %v440 = vadd.f32 0.0, %v439
      %v441 = vpop.f32.mrf.mxu0
      %442 = vmatprep.mubr.f32.mxu0 0.0
      %443 = vmatmul.mubr.f32.gmra.mxu0 %v347
      %v444 = vpop.f32.mrf.mxu0
      %v445 = vadd.f32 0.0, %v444
      %v446 = vpop.f32.mrf.mxu0
      %447 = vmatprep.mubr.f32.mxu0 0.0
      %448 = vmatmul.mubr.f32.gmra.mxu0 %v350
      %v449 = vpop.f32.mrf.mxu0
      %v450 = vadd.f32 0.0, %v449
      %v451 = vpop.f32.mrf.mxu0
      %452 = vmatprep.mubr.f32.mxu0 0.0
      %453 = vmatmul.mubr.f32.gmra.mxu0 %v353
      %v454 = vpop.f32.mrf.mxu0
      %v455 = vadd.f32 0.0, %v454
      %v456 = vpop.f32.mrf.mxu0
      %457 = vmatprep.mubr.f32.mxu0 0.0
      %458 = vmatmul.mubr.f32.gmra.mxu0 %v356
      %v459 = vpop.f32.mrf.mxu0
      %v460 = vadd.f32 0.0, %v459
      %v461 = vpop.f32.mrf.mxu0
      %462 = vdwg.mxu0
      %v464 = vsel %vm284, %v315, 0
      %v467 = vsel %vm284, %v316, 0
      %v470 = vsel %vm284, %v317, 0
      %v473 = vsel %vm284, %v318, 0
      %v476 = vsel %vm284, %v319, 0
      %v479 = vsel %vm284, %v320, 0
      %v482 = vsel %vm284, %v321, 0
      %v485 = vsel %vm284, %v322, 0
      %487 = vmatprep.subr.mxu0 0.0
      %488 = vmatpush1.msra.mxu0 0.0
      %489 = vmatprep.subr.mxu0 0.0
      %490 = vmatpush1.msra.mxu0 0.0
      %491 = vmatprep.subr.mxu0 0.0
      %492 = vmatpush1.msra.mxu0 0.0
      %493 = vmatprep.subr.mxu0 0.0
      %494 = vmatpush1.msra.mxu0 0.0
      %495 = vmatprep.subr.mxu0 0.0
      %496 = vmatpush1.msra.mxu0 0.0
      %497 = vmatprep.subr.mxu0 0.0
      %498 = vmatpush1.msra.mxu0 0.0
      %499 = vmatprep.subr.mxu0 0.0
      %500 = vmatpush1.msra.mxu0 0.0
      %501 = vmatprep.subr.mxu0 0.0
      %502 = vmatpush1.msra.mxu0 0.0
      %503 = vmatprep.subr.mxu0 0.0
      %504 = vmatpush1.msra.mxu0 0.0
      %505 = vmatprep.subr.mxu0 0.0
      %506 = vmatpush1.msra.mxu0 0.0
      %507 = vmatprep.subr.mxu0 0.0
      %508 = vmatpush1.msra.mxu0 0.0
      %509 = vmatprep.subr.mxu0 0.0
      %510 = vmatpush1.msra.mxu0 0.0
      %511 = vmatprep.subr.mxu0 0.0
      %512 = vmatpush1.msra.mxu0 0.0
      %513 = vmatprep.subr.mxu0 0.0
      %514 = vmatpush1.msra.mxu0 0.0
      %515 = vmatprep.subr.mxu0 0.0
      %516 = vmatpush1.msra.mxu0 0.0
      %517 = vmatprep.subr.mxu0 0.0
      %518 = vmatpush1.msra.mxu0 %v323
      %519 = vmatprep.subr.mxu0 0.0
      %520 = vmatpush2.msra.mxu0 0.0
      %521 = vmatprep.subr.mxu0 0.0
      %522 = vmatpush2.msra.mxu0 0.0
      %523 = vmatprep.subr.mxu0 0.0
      %524 = vmatpush2.msra.mxu0 0.0
      %525 = vmatprep.subr.mxu0 0.0
      %526 = vmatpush2.msra.mxu0 0.0
      %527 = vmatprep.subr.mxu0 0.0
      %528 = vmatpush2.msra.mxu0 0.0
      %529 = vmatprep.subr.mxu0 0.0
      %530 = vmatpush2.msra.mxu0 0.0
      %531 = vmatprep.subr.mxu0 0.0
      %532 = vmatpush2.msra.mxu0 0.0
      %533 = vmatprep.subr.mxu0 0.0
      %534 = vmatpush2.msra.mxu0 0.0
      %535 = vmatprep.subr.mxu0 0.0
      %536 = vmatpush2.msra.mxu0 0.0
      %537 = vmatprep.subr.mxu0 0.0
      %538 = vmatpush2.msra.mxu0 0.0
      %539 = vmatprep.subr.mxu0 0.0
      %540 = vmatpush2.msra.mxu0 0.0
      %541 = vmatprep.subr.mxu0 0.0
      %542 = vmatpush2.msra.mxu0 0.0
      %543 = vmatprep.subr.mxu0 0.0
      %544 = vmatpush2.msra.mxu0 0.0
      %545 = vmatprep.subr.mxu0 0.0
      %546 = vmatpush2.msra.mxu0 0.0
      %547 = vmatprep.subr.mxu0 0.0
      %548 = vmatpush2.msra.mxu0 0.0
      %549 = vmatprep.subr.mxu0 0.0
      %550 = vmatpush2.msra.mxu0 0.0
      %551 = vmatprep.mubr.f32.mxu0 0.0
      %552 = vmatmul.mubr.f32.gmra.mxu0 %v464
      %v553 = vpop.f32.mrf.mxu0
      %v554 = vadd.f32 %v425, %v553
      %v555 = vpop.f32.mrf.mxu0
      %556 = vmatprep.mubr.f32.mxu0 0.0
      %557 = vmatmul.mubr.f32.gmra.mxu0 %v467
      %v558 = vpop.f32.mrf.mxu0
      %v559 = vadd.f32 %v430, %v558
      %v560 = vpop.f32.mrf.mxu0
      %561 = vmatprep.mubr.f32.mxu0 0.0
      %562 = vmatmul.mubr.f32.gmra.mxu0 %v470
      %v563 = vpop.f32.mrf.mxu0
      %v564 = vadd.f32 %v435, %v563
      %v565 = vpop.f32.mrf.mxu0
      %566 = vmatprep.mubr.f32.mxu0 0.0
      %567 = vmatmul.mubr.f32.gmra.mxu0 %v473
      %v568 = vpop.f32.mrf.mxu0
      %v569 = vadd.f32 %v440, %v568
      %v570 = vpop.f32.mrf.mxu0
      %571 = vmatprep.mubr.f32.mxu0 0.0
      %572 = vmatmul.mubr.f32.gmra.mxu0 %v476
      %v573 = vpop.f32.mrf.mxu0
      %v574 = vadd.f32 %v445, %v573
      %v575 = vpop.f32.mrf.mxu0
      %576 = vmatprep.mubr.f32.mxu0 0.0
      %577 = vmatmul.mubr.f32.gmra.mxu0 %v479
      %v578 = vpop.f32.mrf.mxu0
      %v579 = vadd.f32 %v450, %v578
      %v580 = vpop.f32.mrf.mxu0
      %581 = vmatprep.mubr.f32.mxu0 0.0
      %582 = vmatmul.mubr.f32.gmra.mxu0 %v482
      %v583 = vpop.f32.mrf.mxu0
      %v584 = vadd.f32 %v455, %v583
      %v585 = vpop.f32.mrf.mxu0
      %586 = vmatprep.mubr.f32.mxu0 0.0
      %587 = vmatmul.mubr.f32.gmra.mxu0 %v485
      %v588 = vpop.f32.mrf.mxu0
      %v589 = vadd.f32 %v460, %v588
      %v590 = vpop.f32.mrf.mxu0
      %591 = vdwg.mxu0
      %v592 = vld [vmem:[#allocation2 + $0x2] sm:$0xff]
      %v593 = vld [vmem:[#allocation2 + $0x12] sm:$0xff]
      %v594 = vld [vmem:[#allocation2 + $0x22] sm:$0xff]
      %v595 = vld [vmem:[#allocation2 + $0x32] sm:$0xff]
      %v596 = vld [vmem:[#allocation2 + $0x42] sm:$0xff]
      %v597 = vld [vmem:[#allocation2 + $0x52] sm:$0xff]
      %v598 = vld [vmem:[#allocation2 + $0x62] sm:$0xff]
      %v599 = vld [vmem:[#allocation2 + $0x72] sm:$0xff]
      %s600 = scalar_lea.vmem %s2, 16
      %v601 = vld [vmem:[%s600] sm:$0xff]
      %v603 = vsel %vm284, %v592, 0
      %v606 = vsel %vm284, %v593, 0
      %v609 = vsel %vm284, %v594, 0
      %v612 = vsel %vm284, %v595, 0
      %v615 = vsel %vm284, %v596, 0
      %v618 = vsel %vm284, %v597, 0
      %v621 = vsel %vm284, %v598, 0
      %v624 = vsel %vm284, %v599, 0
      %626 = vmatprep.subr.mxu0 0.0
      %627 = vmatpush1.msra.mxu0 0.0
      %628 = vmatprep.subr.mxu0 0.0
      %629 = vmatpush1.msra.mxu0 0.0
      %630 = vmatprep.subr.mxu0 0.0
      %631 = vmatpush1.msra.mxu0 0.0
      %632 = vmatprep.subr.mxu0 0.0
      %633 = vmatpush1.msra.mxu0 0.0
      %634 = vmatprep.subr.mxu0 0.0
      %635 = vmatpush1.msra.mxu0 0.0
      %636 = vmatprep.subr.mxu0 0.0
      %637 = vmatpush1.msra.mxu0 0.0
      %638 = vmatprep.subr.mxu0 0.0
      %639 = vmatpush1.msra.mxu0 0.0
      %640 = vmatprep.subr.mxu0 0.0
      %641 = vmatpush1.msra.mxu0 0.0
      %642 = vmatprep.subr.mxu0 0.0
      %643 = vmatpush1.msra.mxu0 0.0
      %644 = vmatprep.subr.mxu0 0.0
      %645 = vmatpush1.msra.mxu0 0.0
      %646 = vmatprep.subr.mxu0 0.0
      %647 = vmatpush1.msra.mxu0 0.0
      %648 = vmatprep.subr.mxu0 0.0
      %649 = vmatpush1.msra.mxu0 0.0
      %650 = vmatprep.subr.mxu0 0.0
      %651 = vmatpush1.msra.mxu0 0.0
      %652 = vmatprep.subr.mxu0 0.0
      %653 = vmatpush1.msra.mxu0 0.0
      %654 = vmatprep.subr.mxu0 0.0
      %655 = vmatpush1.msra.mxu0 0.0
      %656 = vmatprep.subr.mxu0 0.0
      %657 = vmatpush1.msra.mxu0 %v601
      %658 = vmatprep.subr.mxu0 0.0
      %659 = vmatpush2.msra.mxu0 0.0
      %660 = vmatprep.subr.mxu0 0.0
      %661 = vmatpush2.msra.mxu0 0.0
      %662 = vmatprep.subr.mxu0 0.0
      %663 = vmatpush2.msra.mxu0 0.0
      %664 = vmatprep.subr.mxu0 0.0
      %665 = vmatpush2.msra.mxu0 0.0
      %666 = vmatprep.subr.mxu0 0.0
      %667 = vmatpush2.msra.mxu0 0.0
      %668 = vmatprep.subr.mxu0 0.0
      %669 = vmatpush2.msra.mxu0 0.0
      %670 = vmatprep.subr.mxu0 0.0
      %671 = vmatpush2.msra.mxu0 0.0
      %672 = vmatprep.subr.mxu0 0.0
      %673 = vmatpush2.msra.mxu0 0.0
      %674 = vmatprep.subr.mxu0 0.0
      %675 = vmatpush2.msra.mxu0 0.0
      %676 = vmatprep.subr.mxu0 0.0
      %677 = vmatpush2.msra.mxu0 0.0
      %678 = vmatprep.subr.mxu0 0.0
      %679 = vmatpush2.msra.mxu0 0.0
      %680 = vmatprep.subr.mxu0 0.0
      %681 = vmatpush2.msra.mxu0 0.0
      %682 = vmatprep.subr.mxu0 0.0
      %683 = vmatpush2.msra.mxu0 0.0
      %684 = vmatprep.subr.mxu0 0.0
      %685 = vmatpush2.msra.mxu0 0.0
      %686 = vmatprep.subr.mxu0 0.0
      %687 = vmatpush2.msra.mxu0 0.0
      %688 = vmatprep.subr.mxu0 0.0
      %689 = vmatpush2.msra.mxu0 0.0
      %690 = vmatprep.mubr.f32.mxu0 0.0
      %691 = vmatmul.mubr.f32.gmra.mxu0 %v603
      %v692 = vpop.f32.mrf.mxu0
      %v693 = vadd.f32 0.0, %v692
      %v694 = vpop.f32.mrf.mxu0
      %695 = vmatprep.mubr.f32.mxu0 0.0
      %696 = vmatmul.mubr.f32.gmra.mxu0 %v606
      %v697 = vpop.f32.mrf.mxu0
      %v698 = vadd.f32 0.0, %v697
      %v699 = vpop.f32.mrf.mxu0
      %700 = vmatprep.mubr.f32.mxu0 0.0
      %701 = vmatmul.mubr.f32.gmra.mxu0 %v609
      %v702 = vpop.f32.mrf.mxu0
      %v703 = vadd.f32 0.0, %v702
      %v704 = vpop.f32.mrf.mxu0
      %705 = vmatprep.mubr.f32.mxu0 0.0
      %706 = vmatmul.mubr.f32.gmra.mxu0 %v612
      %v707 = vpop.f32.mrf.mxu0
      %v708 = vadd.f32 0.0, %v707
      %v709 = vpop.f32.mrf.mxu0
      %710 = vmatprep.mubr.f32.mxu0 0.0
      %711 = vmatmul.mubr.f32.gmra.mxu0 %v615
      %v712 = vpop.f32.mrf.mxu0
      %v713 = vadd.f32 0.0, %v712
      %v714 = vpop.f32.mrf.mxu0
      %715 = vmatprep.mubr.f32.mxu0 0.0
      %716 = vmatmul.mubr.f32.gmra.mxu0 %v618
      %v717 = vpop.f32.mrf.mxu0
      %v718 = vadd.f32 0.0, %v717
      %v719 = vpop.f32.mrf.mxu0
      %720 = vmatprep.mubr.f32.mxu0 0.0
      %721 = vmatmul.mubr.f32.gmra.mxu0 %v621
      %v722 = vpop.f32.mrf.mxu0
      %v723 = vadd.f32 0.0, %v722
      %v724 = vpop.f32.mrf.mxu0
      %725 = vmatprep.mubr.f32.mxu0 0.0
      %726 = vmatmul.mubr.f32.gmra.mxu0 %v624
      %v727 = vpop.f32.mrf.mxu0
      %v728 = vadd.f32 0.0, %v727
      %v729 = vpop.f32.mrf.mxu0
      %730 = vdwg.mxu0
      %v731 = vadd.f32 %v554, %v693
      %v732 = vadd.f32 %v559, %v698
      %v733 = vadd.f32 %v564, %v703
      %v734 = vadd.f32 %v569, %v708
      %v735 = vadd.f32 %v574, %v713
      %v736 = vadd.f32 %v579, %v718
      %v737 = vadd.f32 %v584, %v723
      %v738 = vadd.f32 %v589, %v728
      %v739 = vld [vmem:[%s306] sm:$0xff]
      %v740 = vld [vmem:[%s306 + $0x10] sm:$0xff]
      %v741 = vld [vmem:[%s306 + $0x20] sm:$0xff]
      %v742 = vld [vmem:[%s306 + $0x30] sm:$0xff]
      %v743 = vld [vmem:[%s306 + $0x40] sm:$0xff]
      %v744 = vld [vmem:[%s306 + $0x50] sm:$0xff]
      %v745 = vld [vmem:[%s306 + $0x60] sm:$0xff]
      %v746 = vld [vmem:[%s306 + $0x70] sm:$0xff]
      %s747 = scalar_lea.vmem %s2, 24
      %v748 = vld [vmem:[%s747] sm:$0xff]
      %v750 = vsel %vm284, %v739, 0
      %v753 = vsel %vm284, %v740, 0
      %v756 = vsel %vm284, %v741, 0
      %v759 = vsel %vm284, %v742, 0
      %v762 = vsel %vm284, %v743, 0
      %v765 = vsel %vm284, %v744, 0
      %v768 = vsel %vm284, %v745, 0
      %v771 = vsel %vm284, %v746, 0
      %773 = vmatprep.subr.mxu0 0.0
      %774 = vmatpush1.msra.mxu0 0.0
      %775 = vmatprep.subr.mxu0 0.0
      %776 = vmatpush1.msra.mxu0 0.0
      %777 = vmatprep.subr.mxu0 0.0
      %778 = vmatpush1.msra.mxu0 0.0
      %779 = vmatprep.subr.mxu0 0.0
      %780 = vmatpush1.msra.mxu0 0.0
      %781 = vmatprep.subr.mxu0 0.0
      %782 = vmatpush1.msra.mxu0 0.0
      %783 = vmatprep.subr.mxu0 0.0
      %784 = vmatpush1.msra.mxu0 0.0
      %785 = vmatprep.subr.mxu0 0.0
      %786 = vmatpush1.msra.mxu0 0.0
      %787 = vmatprep.subr.mxu0 0.0
      %788 = vmatpush1.msra.mxu0 0.0
      %789 = vmatprep.subr.mxu0 0.0
      %790 = vmatpush1.msra.mxu0 0.0
      %791 = vmatprep.subr.mxu0 0.0
      %792 = vmatpush1.msra.mxu0 0.0
      %793 = vmatprep.subr.mxu0 0.0
      %794 = vmatpush1.msra.mxu0 0.0
      %795 = vmatprep.subr.mxu0 0.0
      %796 = vmatpush1.msra.mxu0 0.0
      %797 = vmatprep.subr.mxu0 0.0
      %798 = vmatpush1.msra.mxu0 0.0
      %799 = vmatprep.subr.mxu0 0.0
      %800 = vmatpush1.msra.mxu0 0.0
      %801 = vmatprep.subr.mxu0 0.0
      %802 = vmatpush1.msra.mxu0 0.0
      %803 = vmatprep.subr.mxu0 0.0
      %804 = vmatpush1.msra.mxu0 %v748
      %805 = vmatprep.subr.mxu0 0.0
      %806 = vmatpush2.msra.mxu0 0.0
      %807 = vmatprep.subr.mxu0 0.0
      %808 = vmatpush2.msra.mxu0 0.0
      %809 = vmatprep.subr.mxu0 0.0
      %810 = vmatpush2.msra.mxu0 0.0
      %811 = vmatprep.subr.mxu0 0.0
      %812 = vmatpush2.msra.mxu0 0.0
      %813 = vmatprep.subr.mxu0 0.0
      %814 = vmatpush2.msra.mxu0 0.0
      %815 = vmatprep.subr.mxu0 0.0
      %816 = vmatpush2.msra.mxu0 0.0
      %817 = vmatprep.subr.mxu0 0.0
      %818 = vmatpush2.msra.mxu0 0.0
      %819 = vmatprep.subr.mxu0 0.0
      %820 = vmatpush2.msra.mxu0 0.0
      %821 = vmatprep.subr.mxu0 0.0
      %822 = vmatpush2.msra.mxu0 0.0
      %823 = vmatprep.subr.mxu0 0.0
      %824 = vmatpush2.msra.mxu0 0.0
      %825 = vmatprep.subr.mxu0 0.0
      %826 = vmatpush2.msra.mxu0 0.0
      %827 = vmatprep.subr.mxu0 0.0
      %828 = vmatpush2.msra.mxu0 0.0
      %829 = vmatprep.subr.mxu0 0.0
      %830 = vmatpush2.msra.mxu0 0.0
      %831 = vmatprep.subr.mxu0 0.0
      %832 = vmatpush2.msra.mxu0 0.0
      %833 = vmatprep.subr.mxu0 0.0
      %834 = vmatpush2.msra.mxu0 0.0
      %835 = vmatprep.subr.mxu0 0.0
      %836 = vmatpush2.msra.mxu0 0.0
      %837 = vmatprep.mubr.f32.mxu0 0.0
      %838 = vmatmul.mubr.f32.gmra.mxu0 %v750
      %v839 = vpop.f32.mrf.mxu0
      %v840 = vadd.f32 0.0, %v839
      %v841 = vpop.f32.mrf.mxu0
      %842 = vmatprep.mubr.f32.mxu0 0.0
      %843 = vmatmul.mubr.f32.gmra.mxu0 %v753
      %v844 = vpop.f32.mrf.mxu0
      %v845 = vadd.f32 0.0, %v844
      %v846 = vpop.f32.mrf.mxu0
      %847 = vmatprep.mubr.f32.mxu0 0.0
      %848 = vmatmul.mubr.f32.gmra.mxu0 %v756
      %v849 = vpop.f32.mrf.mxu0
      %v850 = vadd.f32 0.0, %v849
      %v851 = vpop.f32.mrf.mxu0
      %852 = vmatprep.mubr.f32.mxu0 0.0
      %853 = vmatmul.mubr.f32.gmra.mxu0 %v759
      %v854 = vpop.f32.mrf.mxu0
      %v855 = vadd.f32 0.0, %v854
      %v856 = vpop.f32.mrf.mxu0
      %857 = vmatprep.mubr.f32.mxu0 0.0
      %858 = vmatmul.mubr.f32.gmra.mxu0 %v762
      %v859 = vpop.f32.mrf.mxu0
      %v860 = vadd.f32 0.0, %v859
      %v861 = vpop.f32.mrf.mxu0
      %862 = vmatprep.mubr.f32.mxu0 0.0
      %863 = vmatmul.mubr.f32.gmra.mxu0 %v765
      %v864 = vpop.f32.mrf.mxu0
      %v865 = vadd.f32 0.0, %v864
      %v866 = vpop.f32.mrf.mxu0
      %867 = vmatprep.mubr.f32.mxu0 0.0
      %868 = vmatmul.mubr.f32.gmra.mxu0 %v768
      %v869 = vpop.f32.mrf.mxu0
      %v870 = vadd.f32 0.0, %v869
      %v871 = vpop.f32.mrf.mxu0
      %872 = vmatprep.mubr.f32.mxu0 0.0
      %873 = vmatmul.mubr.f32.gmra.mxu0 %v771
      %v874 = vpop.f32.mrf.mxu0
      %v875 = vadd.f32 0.0, %v874
      %v876 = vpop.f32.mrf.mxu0
      %877 = vdwg.mxu0
      %v878 = vadd.f32 %v731, %v840
      %v879 = vadd.f32 %v732, %v845
      %v880 = vadd.f32 %v733, %v850
      %v881 = vadd.f32 %v734, %v855
      %v882 = vadd.f32 %v735, %v860
      %v883 = vadd.f32 %v736, %v865
      %v884 = vadd.f32 %v737, %v870
      %v885 = vadd.f32 %v738, %v875
      %v886 = vld [vmem:[%s306 + $0x1] sm:$0xff]
      %v887 = vld [vmem:[%s306 + $0x11] sm:$0xff]
      %v888 = vld [vmem:[%s306 + $0x21] sm:$0xff]
      %v889 = vld [vmem:[%s306 + $0x31] sm:$0xff]
      %v890 = vld [vmem:[%s306 + $0x41] sm:$0xff]
      %v891 = vld [vmem:[%s306 + $0x51] sm:$0xff]
      %v892 = vld [vmem:[%s306 + $0x61] sm:$0xff]
      %v893 = vld [vmem:[%s306 + $0x71] sm:$0xff]
      %s894 = scalar_lea.vmem %s2, 32
      %v895 = vld [vmem:[%s894] sm:$0xff]
      %v897 = vsel %vm284, %v886, 0
      %v900 = vsel %vm284, %v887, 0
      %v903 = vsel %vm284, %v888, 0
      %v906 = vsel %vm284, %v889, 0
      %v909 = vsel %vm284, %v890, 0
      %v912 = vsel %vm284, %v891, 0
      %v915 = vsel %vm284, %v892, 0
      %v918 = vsel %vm284, %v893, 0
      %920 = vmatprep.subr.mxu0 0.0
      %921 = vmatpush1.msra.mxu0 0.0
      %922 = vmatprep.subr.mxu0 0.0
      %923 = vmatpush1.msra.mxu0 0.0
      %924 = vmatprep.subr.mxu0 0.0
      %925 = vmatpush1.msra.mxu0 0.0
      %926 = vmatprep.subr.mxu0 0.0
      %927 = vmatpush1.msra.mxu0 0.0
      %928 = vmatprep.subr.mxu0 0.0
      %929 = vmatpush1.msra.mxu0 0.0
      %930 = vmatprep.subr.mxu0 0.0
      %931 = vmatpush1.msra.mxu0 0.0
      %932 = vmatprep.subr.mxu0 0.0
      %933 = vmatpush1.msra.mxu0 0.0
      %934 = vmatprep.subr.mxu0 0.0
      %935 = vmatpush1.msra.mxu0 0.0
      %936 = vmatprep.subr.mxu0 0.0
      %937 = vmatpush1.msra.mxu0 0.0
      %938 = vmatprep.subr.mxu0 0.0
      %939 = vmatpush1.msra.mxu0 0.0
      %940 = vmatprep.subr.mxu0 0.0
      %941 = vmatpush1.msra.mxu0 0.0
      %942 = vmatprep.subr.mxu0 0.0
      %943 = vmatpush1.msra.mxu0 0.0
      %944 = vmatprep.subr.mxu0 0.0
      %945 = vmatpush1.msra.mxu0 0.0
      %946 = vmatprep.subr.mxu0 0.0
      %947 = vmatpush1.msra.mxu0 0.0
      %948 = vmatprep.subr.mxu0 0.0
      %949 = vmatpush1.msra.mxu0 0.0
      %950 = vmatprep.subr.mxu0 0.0
      %951 = vmatpush1.msra.mxu0 %v895
      %952 = vmatprep.subr.mxu0 0.0
      %953 = vmatpush2.msra.mxu0 0.0
      %954 = vmatprep.subr.mxu0 0.0
      %955 = vmatpush2.msra.mxu0 0.0
      %956 = vmatprep.subr.mxu0 0.0
      %957 = vmatpush2.msra.mxu0 0.0
      %958 = vmatprep.subr.mxu0 0.0
      %959 = vmatpush2.msra.mxu0 0.0
      %960 = vmatprep.subr.mxu0 0.0
      %961 = vmatpush2.msra.mxu0 0.0
      %962 = vmatprep.subr.mxu0 0.0
      %963 = vmatpush2.msra.mxu0 0.0
      %964 = vmatprep.subr.mxu0 0.0
      %965 = vmatpush2.msra.mxu0 0.0
      %966 = vmatprep.subr.mxu0 0.0
      %967 = vmatpush2.msra.mxu0 0.0
      %968 = vmatprep.subr.mxu0 0.0
      %969 = vmatpush2.msra.mxu0 0.0
      %970 = vmatprep.subr.mxu0 0.0
      %971 = vmatpush2.msra.mxu0 0.0
      %972 = vmatprep.subr.mxu0 0.0
      %973 = vmatpush2.msra.mxu0 0.0
      %974 = vmatprep.subr.mxu0 0.0
      %975 = vmatpush2.msra.mxu0 0.0
      %976 = vmatprep.subr.mxu0 0.0
      %977 = vmatpush2.msra.mxu0 0.0
      %978 = vmatprep.subr.mxu0 0.0
      %979 = vmatpush2.msra.mxu0 0.0
      %980 = vmatprep.subr.mxu0 0.0
      %981 = vmatpush2.msra.mxu0 0.0
      %982 = vmatprep.subr.mxu0 0.0
      %983 = vmatpush2.msra.mxu0 0.0
      %984 = vmatprep.mubr.f32.mxu0 0.0
      %985 = vmatmul.mubr.f32.gmra.mxu0 %v897
      %v986 = vpop.f32.mrf.mxu0
      %v987 = vadd.f32 0.0, %v986
      %v988 = vpop.f32.mrf.mxu0
      %989 = vmatprep.mubr.f32.mxu0 0.0
      %990 = vmatmul.mubr.f32.gmra.mxu0 %v900
      %v991 = vpop.f32.mrf.mxu0
      %v992 = vadd.f32 0.0, %v991
      %v993 = vpop.f32.mrf.mxu0
      %994 = vmatprep.mubr.f32.mxu0 0.0
      %995 = vmatmul.mubr.f32.gmra.mxu0 %v903
      %v996 = vpop.f32.mrf.mxu0
      %v997 = vadd.f32 0.0, %v996
      %v998 = vpop.f32.mrf.mxu0
      %999 = vmatprep.mubr.f32.mxu0 0.0
      %1000 = vmatmul.mubr.f32.gmra.mxu0 %v906
      %v1001 = vpop.f32.mrf.mxu0
      %v1002 = vadd.f32 0.0, %v1001
      %v1003 = vpop.f32.mrf.mxu0
      %1004 = vmatprep.mubr.f32.mxu0 0.0
      %1005 = vmatmul.mubr.f32.gmra.mxu0 %v909
      %v1006 = vpop.f32.mrf.mxu0
      %v1007 = vadd.f32 0.0, %v1006
      %v1008 = vpop.f32.mrf.mxu0
      %1009 = vmatprep.mubr.f32.mxu0 0.0
      %1010 = vmatmul.mubr.f32.gmra.mxu0 %v912
      %v1011 = vpop.f32.mrf.mxu0
      %v1012 = vadd.f32 0.0, %v1011
      %v1013 = vpop.f32.mrf.mxu0
      %1014 = vmatprep.mubr.f32.mxu0 0.0
      %1015 = vmatmul.mubr.f32.gmra.mxu0 %v915
      %v1016 = vpop.f32.mrf.mxu0
      %v1017 = vadd.f32 0.0, %v1016
      %v1018 = vpop.f32.mrf.mxu0
      %1019 = vmatprep.mubr.f32.mxu0 0.0
      %1020 = vmatmul.mubr.f32.gmra.mxu0 %v918
      %v1021 = vpop.f32.mrf.mxu0
      %v1022 = vadd.f32 0.0, %v1021
      %v1023 = vpop.f32.mrf.mxu0
      %1024 = vdwg.mxu0
      %v1025 = vadd.f32 %v878, %v987
      %v1026 = vadd.f32 %v879, %v992
      %v1027 = vadd.f32 %v880, %v997
      %v1028 = vadd.f32 %v881, %v1002
      %v1029 = vadd.f32 %v882, %v1007
      %v1030 = vadd.f32 %v883, %v1012
      %v1031 = vadd.f32 %v884, %v1017
      %v1032 = vadd.f32 %v885, %v1022
      %v1033 = vld [vmem:[%s306 + $0x2] sm:$0xff]
      %v1034 = vld [vmem:[%s306 + $0x12] sm:$0xff]
      %v1035 = vld [vmem:[%s306 + $0x22] sm:$0xff]
      %v1036 = vld [vmem:[%s306 + $0x32] sm:$0xff]
      %v1037 = vld [vmem:[%s306 + $0x42] sm:$0xff]
      %v1038 = vld [vmem:[%s306 + $0x52] sm:$0xff]
      %v1039 = vld [vmem:[%s306 + $0x62] sm:$0xff]
      %v1040 = vld [vmem:[%s306 + $0x72] sm:$0xff]
      %s1041 = scalar_lea.vmem %s2, 40
      %v1042 = vld [vmem:[%s1041] sm:$0xff]
      %v1044 = vsel %vm284, %v1033, 0
      %v1047 = vsel %vm284, %v1034, 0
      %v1050 = vsel %vm284, %v1035, 0
      %v1053 = vsel %vm284, %v1036, 0
      %v1056 = vsel %vm284, %v1037, 0
      %v1059 = vsel %vm284, %v1038, 0
      %v1062 = vsel %vm284, %v1039, 0
      %v1065 = vsel %vm284, %v1040, 0
      %1067 = vmatprep.subr.mxu0 0.0
      %1068 = vmatpush1.msra.mxu0 0.0
      %1069 = vmatprep.subr.mxu0 0.0
      %1070 = vmatpush1.msra.mxu0 0.0
      %1071 = vmatprep.subr.mxu0 0.0
      %1072 = vmatpush1.msra.mxu0 0.0
      %1073 = vmatprep.subr.mxu0 0.0
      %1074 = vmatpush1.msra.mxu0 0.0
      %1075 = vmatprep.subr.mxu0 0.0
      %1076 = vmatpush1.msra.mxu0 0.0
      %1077 = vmatprep.subr.mxu0 0.0
      %1078 = vmatpush1.msra.mxu0 0.0
      %1079 = vmatprep.subr.mxu0 0.0
      %1080 = vmatpush1.msra.mxu0 0.0
      %1081 = vmatprep.subr.mxu0 0.0
      %1082 = vmatpush1.msra.mxu0 0.0
      %1083 = vmatprep.subr.mxu0 0.0
      %1084 = vmatpush1.msra.mxu0 0.0
      %1085 = vmatprep.subr.mxu0 0.0
      %1086 = vmatpush1.msra.mxu0 0.0
      %1087 = vmatprep.subr.mxu0 0.0
      %1088 = vmatpush1.msra.mxu0 0.0
      %1089 = vmatprep.subr.mxu0 0.0
      %1090 = vmatpush1.msra.mxu0 0.0
      %1091 = vmatprep.subr.mxu0 0.0
      %1092 = vmatpush1.msra.mxu0 0.0
      %1093 = vmatprep.subr.mxu0 0.0
      %1094 = vmatpush1.msra.mxu0 0.0
      %1095 = vmatprep.subr.mxu0 0.0
      %1096 = vmatpush1.msra.mxu0 0.0
      %1097 = vmatprep.subr.mxu0 0.0
      %1098 = vmatpush1.msra.mxu0 %v1042
      %1099 = vmatprep.subr.mxu0 0.0
      %1100 = vmatpush2.msra.mxu0 0.0
      %1101 = vmatprep.subr.mxu0 0.0
      %1102 = vmatpush2.msra.mxu0 0.0
      %1103 = vmatprep.subr.mxu0 0.0
      %1104 = vmatpush2.msra.mxu0 0.0
      %1105 = vmatprep.subr.mxu0 0.0
      %1106 = vmatpush2.msra.mxu0 0.0
      %1107 = vmatprep.subr.mxu0 0.0
      %1108 = vmatpush2.msra.mxu0 0.0
      %1109 = vmatprep.subr.mxu0 0.0
      %1110 = vmatpush2.msra.mxu0 0.0
      %1111 = vmatprep.subr.mxu0 0.0
      %1112 = vmatpush2.msra.mxu0 0.0
      %1113 = vmatprep.subr.mxu0 0.0
      %1114 = vmatpush2.msra.mxu0 0.0
      %1115 = vmatprep.subr.mxu0 0.0
      %1116 = vmatpush2.msra.mxu0 0.0
      %1117 = vmatprep.subr.mxu0 0.0
      %1118 = vmatpush2.msra.mxu0 0.0
      %1119 = vmatprep.subr.mxu0 0.0
      %1120 = vmatpush2.msra.mxu0 0.0
      %1121 = vmatprep.subr.mxu0 0.0
      %1122 = vmatpush2.msra.mxu0 0.0
      %1123 = vmatprep.subr.mxu0 0.0
      %1124 = vmatpush2.msra.mxu0 0.0
      %1125 = vmatprep.subr.mxu0 0.0
      %1126 = vmatpush2.msra.mxu0 0.0
      %1127 = vmatprep.subr.mxu0 0.0
      %1128 = vmatpush2.msra.mxu0 0.0
      %1129 = vmatprep.subr.mxu0 0.0
      %1130 = vmatpush2.msra.mxu0 0.0
      %1131 = vmatprep.mubr.f32.mxu0 0.0
      %1132 = vmatmul.mubr.f32.gmra.mxu0 %v1044
      %v1133 = vpop.f32.mrf.mxu0
      %v1134 = vadd.f32 0.0, %v1133
      %v1135 = vpop.f32.mrf.mxu0
      %1136 = vmatprep.mubr.f32.mxu0 0.0
      %1137 = vmatmul.mubr.f32.gmra.mxu0 %v1047
      %v1138 = vpop.f32.mrf.mxu0
      %v1139 = vadd.f32 0.0, %v1138
      %v1140 = vpop.f32.mrf.mxu0
      %1141 = vmatprep.mubr.f32.mxu0 0.0
      %1142 = vmatmul.mubr.f32.gmra.mxu0 %v1050
      %v1143 = vpop.f32.mrf.mxu0
      %v1144 = vadd.f32 0.0, %v1143
      %v1145 = vpop.f32.mrf.mxu0
      %1146 = vmatprep.mubr.f32.mxu0 0.0
      %1147 = vmatmul.mubr.f32.gmra.mxu0 %v1053
      %v1148 = vpop.f32.mrf.mxu0
      %v1149 = vadd.f32 0.0, %v1148
      %v1150 = vpop.f32.mrf.mxu0
      %1151 = vmatprep.mubr.f32.mxu0 0.0
      %1152 = vmatmul.mubr.f32.gmra.mxu0 %v1056
      %v1153 = vpop.f32.mrf.mxu0
      %v1154 = vadd.f32 0.0, %v1153
      %v1155 = vpop.f32.mrf.mxu0
      %1156 = vmatprep.mubr.f32.mxu0 0.0
      %1157 = vmatmul.mubr.f32.gmra.mxu0 %v1059
      %v1158 = vpop.f32.mrf.mxu0
      %v1159 = vadd.f32 0.0, %v1158
      %v1160 = vpop.f32.mrf.mxu0
      %1161 = vmatprep.mubr.f32.mxu0 0.0
      %1162 = vmatmul.mubr.f32.gmra.mxu0 %v1062
      %v1163 = vpop.f32.mrf.mxu0
      %v1164 = vadd.f32 0.0, %v1163
      %v1165 = vpop.f32.mrf.mxu0
      %1166 = vmatprep.mubr.f32.mxu0 0.0
      %1167 = vmatmul.mubr.f32.gmra.mxu0 %v1065
      %v1168 = vpop.f32.mrf.mxu0
      %v1169 = vadd.f32 0.0, %v1168
      %v1170 = vpop.f32.mrf.mxu0
      %1171 = vdwg.mxu0
      %v1172 = vadd.f32 %v1025, %v1134
      %v1173 = vadd.f32 %v1026, %v1139
      %v1174 = vadd.f32 %v1027, %v1144
      %v1175 = vadd.f32 %v1028, %v1149
      %v1176 = vadd.f32 %v1029, %v1154
      %v1177 = vadd.f32 %v1030, %v1159
      %v1178 = vadd.f32 %v1031, %v1164
      %v1179 = vadd.f32 %v1032, %v1169
      %s1180 = scalar_lea.vmem [#allocation2], 32
      %v1181 = vld [vmem:[%s1180] sm:$0xff]
      %v1182 = vld [vmem:[%s1180 + $0x10] sm:$0xff]
      %v1183 = vld [vmem:[%s1180 + $0x20] sm:$0xff]
      %v1184 = vld [vmem:[%s1180 + $0x30] sm:$0xff]
      %v1185 = vld [vmem:[%s1180 + $0x40] sm:$0xff]
      %v1186 = vld [vmem:[%s1180 + $0x50] sm:$0xff]
      %v1187 = vld [vmem:[%s1180 + $0x60] sm:$0xff]
      %v1188 = vld [vmem:[%s1180 + $0x70] sm:$0xff]
      %s1189 = scalar_lea.vmem %s2, 48
      %v1190 = vld [vmem:[%s1189] sm:$0xff]
      %v1192 = vsel %vm284, %v1181, 0
      %v1195 = vsel %vm284, %v1182, 0
      %v1198 = vsel %vm284, %v1183, 0
      %v1201 = vsel %vm284, %v1184, 0
      %v1204 = vsel %vm284, %v1185, 0
      %v1207 = vsel %vm284, %v1186, 0
      %v1210 = vsel %vm284, %v1187, 0
      %v1213 = vsel %vm284, %v1188, 0
      %1215 = vmatprep.subr.mxu0 0.0
      %1216 = vmatpush1.msra.mxu0 0.0
      %1217 = vmatprep.subr.mxu0 0.0
      %1218 = vmatpush1.msra.mxu0 0.0
      %1219 = vmatprep.subr.mxu0 0.0
      %1220 = vmatpush1.msra.mxu0 0.0
      %1221 = vmatprep.subr.mxu0 0.0
      %1222 = vmatpush1.msra.mxu0 0.0
      %1223 = vmatprep.subr.mxu0 0.0
      %1224 = vmatpush1.msra.mxu0 0.0
      %1225 = vmatprep.subr.mxu0 0.0
      %1226 = vmatpush1.msra.mxu0 0.0
      %1227 = vmatprep.subr.mxu0 0.0
      %1228 = vmatpush1.msra.mxu0 0.0
      %1229 = vmatprep.subr.mxu0 0.0
      %1230 = vmatpush1.msra.mxu0 0.0
      %1231 = vmatprep.subr.mxu0 0.0
      %1232 = vmatpush1.msra.mxu0 0.0
      %1233 = vmatprep.subr.mxu0 0.0
      %1234 = vmatpush1.msra.mxu0 0.0
      %1235 = vmatprep.subr.mxu0 0.0
      %1236 = vmatpush1.msra.mxu0 0.0
      %1237 = vmatprep.subr.mxu0 0.0
      %1238 = vmatpush1.msra.mxu0 0.0
      %1239 = vmatprep.subr.mxu0 0.0
      %1240 = vmatpush1.msra.mxu0 0.0
      %1241 = vmatprep.subr.mxu0 0.0
      %1242 = vmatpush1.msra.mxu0 0.0
      %1243 = vmatprep.subr.mxu0 0.0
      %1244 = vmatpush1.msra.mxu0 0.0
      %1245 = vmatprep.subr.mxu0 0.0
      %1246 = vmatpush1.msra.mxu0 %v1190
      %1247 = vmatprep.subr.mxu0 0.0
      %1248 = vmatpush2.msra.mxu0 0.0
      %1249 = vmatprep.subr.mxu0 0.0
      %1250 = vmatpush2.msra.mxu0 0.0
      %1251 = vmatprep.subr.mxu0 0.0
      %1252 = vmatpush2.msra.mxu0 0.0
      %1253 = vmatprep.subr.mxu0 0.0
      %1254 = vmatpush2.msra.mxu0 0.0
      %1255 = vmatprep.subr.mxu0 0.0
      %1256 = vmatpush2.msra.mxu0 0.0
      %1257 = vmatprep.subr.mxu0 0.0
      %1258 = vmatpush2.msra.mxu0 0.0
      %1259 = vmatprep.subr.mxu0 0.0
      %1260 = vmatpush2.msra.mxu0 0.0
      %1261 = vmatprep.subr.mxu0 0.0
      %1262 = vmatpush2.msra.mxu0 0.0
      %1263 = vmatprep.subr.mxu0 0.0
      %1264 = vmatpush2.msra.mxu0 0.0
      %1265 = vmatprep.subr.mxu0 0.0
      %1266 = vmatpush2.msra.mxu0 0.0
      %1267 = vmatprep.subr.mxu0 0.0
      %1268 = vmatpush2.msra.mxu0 0.0
      %1269 = vmatprep.subr.mxu0 0.0
      %1270 = vmatpush2.msra.mxu0 0.0
      %1271 = vmatprep.subr.mxu0 0.0
      %1272 = vmatpush2.msra.mxu0 0.0
      %1273 = vmatprep.subr.mxu0 0.0
      %1274 = vmatpush2.msra.mxu0 0.0
      %1275 = vmatprep.subr.mxu0 0.0
      %1276 = vmatpush2.msra.mxu0 0.0
      %1277 = vmatprep.subr.mxu0 0.0
      %1278 = vmatpush2.msra.mxu0 0.0
      %1279 = vmatprep.mubr.f32.mxu0 0.0
      %1280 = vmatmul.mubr.f32.gmra.mxu0 %v1192
      %v1281 = vpop.f32.mrf.mxu0
      %v1282 = vadd.f32 0.0, %v1281
      %v1283 = vpop.f32.mrf.mxu0
      %1284 = vmatprep.mubr.f32.mxu0 0.0
      %1285 = vmatmul.mubr.f32.gmra.mxu0 %v1195
      %v1286 = vpop.f32.mrf.mxu0
      %v1287 = vadd.f32 0.0, %v1286
      %v1288 = vpop.f32.mrf.mxu0
      %1289 = vmatprep.mubr.f32.mxu0 0.0
      %1290 = vmatmul.mubr.f32.gmra.mxu0 %v1198
      %v1291 = vpop.f32.mrf.mxu0
      %v1292 = vadd.f32 0.0, %v1291
      %v1293 = vpop.f32.mrf.mxu0
      %1294 = vmatprep.mubr.f32.mxu0 0.0
      %1295 = vmatmul.mubr.f32.gmra.mxu0 %v1201
      %v1296 = vpop.f32.mrf.mxu0
      %v1297 = vadd.f32 0.0, %v1296
      %v1298 = vpop.f32.mrf.mxu0
      %1299 = vmatprep.mubr.f32.mxu0 0.0
      %1300 = vmatmul.mubr.f32.gmra.mxu0 %v1204
      %v1301 = vpop.f32.mrf.mxu0
      %v1302 = vadd.f32 0.0, %v1301
      %v1303 = vpop.f32.mrf.mxu0
      %1304 = vmatprep.mubr.f32.mxu0 0.0
      %1305 = vmatmul.mubr.f32.gmra.mxu0 %v1207
      %v1306 = vpop.f32.mrf.mxu0
      %v1307 = vadd.f32 0.0, %v1306
      %v1308 = vpop.f32.mrf.mxu0
      %1309 = vmatprep.mubr.f32.mxu0 0.0
      %1310 = vmatmul.mubr.f32.gmra.mxu0 %v1210
      %v1311 = vpop.f32.mrf.mxu0
      %v1312 = vadd.f32 0.0, %v1311
      %v1313 = vpop.f32.mrf.mxu0
      %1314 = vmatprep.mubr.f32.mxu0 0.0
      %1315 = vmatmul.mubr.f32.gmra.mxu0 %v1213
      %v1316 = vpop.f32.mrf.mxu0
      %v1317 = vadd.f32 0.0, %v1316
      %v1318 = vpop.f32.mrf.mxu0
      %1319 = vdwg.mxu0
      %v1320 = vadd.f32 %v1172, %v1282
      %v1321 = vadd.f32 %v1173, %v1287
      %v1322 = vadd.f32 %v1174, %v1292
      %v1323 = vadd.f32 %v1175, %v1297
      %v1324 = vadd.f32 %v1176, %v1302
      %v1325 = vadd.f32 %v1177, %v1307
      %v1326 = vadd.f32 %v1178, %v1312
      %v1327 = vadd.f32 %v1179, %v1317
      %v1328 = vld [vmem:[%s1180 + $0x1] sm:$0xff]
      %v1329 = vld [vmem:[%s1180 + $0x11] sm:$0xff]
      %v1330 = vld [vmem:[%s1180 + $0x21] sm:$0xff]
      %v1331 = vld [vmem:[%s1180 + $0x31] sm:$0xff]
      %v1332 = vld [vmem:[%s1180 + $0x41] sm:$0xff]
      %v1333 = vld [vmem:[%s1180 + $0x51] sm:$0xff]
      %v1334 = vld [vmem:[%s1180 + $0x61] sm:$0xff]
      %v1335 = vld [vmem:[%s1180 + $0x71] sm:$0xff]
      %s1336 = scalar_lea.vmem %s2, 56
      %v1337 = vld [vmem:[%s1336] sm:$0xff]
      %v1339 = vsel %vm284, %v1328, 0
      %v1342 = vsel %vm284, %v1329, 0
      %v1345 = vsel %vm284, %v1330, 0
      %v1348 = vsel %vm284, %v1331, 0
      %v1351 = vsel %vm284, %v1332, 0
      %v1354 = vsel %vm284, %v1333, 0
      %v1357 = vsel %vm284, %v1334, 0
      %v1360 = vsel %vm284, %v1335, 0
      %1362 = vmatprep.subr.mxu0 0.0
      %1363 = vmatpush1.msra.mxu0 0.0
      %1364 = vmatprep.subr.mxu0 0.0
      %1365 = vmatpush1.msra.mxu0 0.0
      %1366 = vmatprep.subr.mxu0 0.0
      %1367 = vmatpush1.msra.mxu0 0.0
      %1368 = vmatprep.subr.mxu0 0.0
      %1369 = vmatpush1.msra.mxu0 0.0
      %1370 = vmatprep.subr.mxu0 0.0
      %1371 = vmatpush1.msra.mxu0 0.0
      %1372 = vmatprep.subr.mxu0 0.0
      %1373 = vmatpush1.msra.mxu0 0.0
      %1374 = vmatprep.subr.mxu0 0.0
      %1375 = vmatpush1.msra.mxu0 0.0
      %1376 = vmatprep.subr.mxu0 0.0
      %1377 = vmatpush1.msra.mxu0 0.0
      %1378 = vmatprep.subr.mxu0 0.0
      %1379 = vmatpush1.msra.mxu0 0.0
      %1380 = vmatprep.subr.mxu0 0.0
      %1381 = vmatpush1.msra.mxu0 0.0
      %1382 = vmatprep.subr.mxu0 0.0
      %1383 = vmatpush1.msra.mxu0 0.0
      %1384 = vmatprep.subr.mxu0 0.0
      %1385 = vmatpush1.msra.mxu0 0.0
      %1386 = vmatprep.subr.mxu0 0.0
      %1387 = vmatpush1.msra.mxu0 0.0
      %1388 = vmatprep.subr.mxu0 0.0
      %1389 = vmatpush1.msra.mxu0 0.0
      %1390 = vmatprep.subr.mxu0 0.0
      %1391 = vmatpush1.msra.mxu0 0.0
      %1392 = vmatprep.subr.mxu0 0.0
      %1393 = vmatpush1.msra.mxu0 %v1337
      %1394 = vmatprep.subr.mxu0 0.0
      %1395 = vmatpush2.msra.mxu0 0.0
      %1396 = vmatprep.subr.mxu0 0.0
      %1397 = vmatpush2.msra.mxu0 0.0
      %1398 = vmatprep.subr.mxu0 0.0
      %1399 = vmatpush2.msra.mxu0 0.0
      %1400 = vmatprep.subr.mxu0 0.0
      %1401 = vmatpush2.msra.mxu0 0.0
      %1402 = vmatprep.subr.mxu0 0.0
      %1403 = vmatpush2.msra.mxu0 0.0
      %1404 = vmatprep.subr.mxu0 0.0
      %1405 = vmatpush2.msra.mxu0 0.0
      %1406 = vmatprep.subr.mxu0 0.0
      %1407 = vmatpush2.msra.mxu0 0.0
      %1408 = vmatprep.subr.mxu0 0.0
      %1409 = vmatpush2.msra.mxu0 0.0
      %1410 = vmatprep.subr.mxu0 0.0
      %1411 = vmatpush2.msra.mxu0 0.0
      %1412 = vmatprep.subr.mxu0 0.0
      %1413 = vmatpush2.msra.mxu0 0.0
      %1414 = vmatprep.subr.mxu0 0.0
      %1415 = vmatpush2.msra.mxu0 0.0
      %1416 = vmatprep.subr.mxu0 0.0
      %1417 = vmatpush2.msra.mxu0 0.0
      %1418 = vmatprep.subr.mxu0 0.0
      %1419 = vmatpush2.msra.mxu0 0.0
      %1420 = vmatprep.subr.mxu0 0.0
      %1421 = vmatpush2.msra.mxu0 0.0
      %1422 = vmatprep.subr.mxu0 0.0
      %1423 = vmatpush2.msra.mxu0 0.0
      %1424 = vmatprep.subr.mxu0 0.0
      %1425 = vmatpush2.msra.mxu0 0.0
      %1426 = vmatprep.mubr.f32.mxu0 0.0
      %1427 = vmatmul.mubr.f32.gmra.mxu0 %v1339
      %v1428 = vpop.f32.mrf.mxu0
      %v1429 = vadd.f32 0.0, %v1428
      %v1430 = vpop.f32.mrf.mxu0
      %1431 = vmatprep.mubr.f32.mxu0 0.0
      %1432 = vmatmul.mubr.f32.gmra.mxu0 %v1342
      %v1433 = vpop.f32.mrf.mxu0
      %v1434 = vadd.f32 0.0, %v1433
      %v1435 = vpop.f32.mrf.mxu0
      %1436 = vmatprep.mubr.f32.mxu0 0.0
      %1437 = vmatmul.mubr.f32.gmra.mxu0 %v1345
      %v1438 = vpop.f32.mrf.mxu0
      %v1439 = vadd.f32 0.0, %v1438
      %v1440 = vpop.f32.mrf.mxu0
      %1441 = vmatprep.mubr.f32.mxu0 0.0
      %1442 = vmatmul.mubr.f32.gmra.mxu0 %v1348
      %v1443 = vpop.f32.mrf.mxu0
      %v1444 = vadd.f32 0.0, %v1443
      %v1445 = vpop.f32.mrf.mxu0
      %1446 = vmatprep.mubr.f32.mxu0 0.0
      %1447 = vmatmul.mubr.f32.gmra.mxu0 %v1351
      %v1448 = vpop.f32.mrf.mxu0
      %v1449 = vadd.f32 0.0, %v1448
      %v1450 = vpop.f32.mrf.mxu0
      %1451 = vmatprep.mubr.f32.mxu0 0.0
      %1452 = vmatmul.mubr.f32.gmra.mxu0 %v1354
      %v1453 = vpop.f32.mrf.mxu0
      %v1454 = vadd.f32 0.0, %v1453
      %v1455 = vpop.f32.mrf.mxu0
      %1456 = vmatprep.mubr.f32.mxu0 0.0
      %1457 = vmatmul.mubr.f32.gmra.mxu0 %v1357
      %v1458 = vpop.f32.mrf.mxu0
      %v1459 = vadd.f32 0.0, %v1458
      %v1460 = vpop.f32.mrf.mxu0
      %1461 = vmatprep.mubr.f32.mxu0 0.0
      %1462 = vmatmul.mubr.f32.gmra.mxu0 %v1360
      %v1463 = vpop.f32.mrf.mxu0
      %v1464 = vadd.f32 0.0, %v1463
      %v1465 = vpop.f32.mrf.mxu0
      %1466 = vdwg.mxu0
      %v1467 = vadd.f32 %v1320, %v1429
      %v1468 = vadd.f32 %v1321, %v1434
      %v1469 = vadd.f32 %v1322, %v1439
      %v1470 = vadd.f32 %v1323, %v1444
      %v1471 = vadd.f32 %v1324, %v1449
      %v1472 = vadd.f32 %v1325, %v1454
      %v1473 = vadd.f32 %v1326, %v1459
      %v1474 = vadd.f32 %v1327, %v1464
      %v1475 = vld [vmem:[%s1180 + $0x2] sm:$0xff]
      %v1476 = vld [vmem:[%s1180 + $0x12] sm:$0xff]
      %v1477 = vld [vmem:[%s1180 + $0x22] sm:$0xff]
      %v1478 = vld [vmem:[%s1180 + $0x32] sm:$0xff]
      %v1479 = vld [vmem:[%s1180 + $0x42] sm:$0xff]
      %v1480 = vld [vmem:[%s1180 + $0x52] sm:$0xff]
      %v1481 = vld [vmem:[%s1180 + $0x62] sm:$0xff]
      %v1482 = vld [vmem:[%s1180 + $0x72] sm:$0xff]
      %s1483 = scalar_lea.vmem %s2, 64
      %v1484 = vld [vmem:[%s1483] sm:$0xff]
      %v1486 = vsel %vm284, %v1475, 0
      %v1489 = vsel %vm284, %v1476, 0
      %v1492 = vsel %vm284, %v1477, 0
      %v1495 = vsel %vm284, %v1478, 0
      %v1498 = vsel %vm284, %v1479, 0
      %v1501 = vsel %vm284, %v1480, 0
      %v1504 = vsel %vm284, %v1481, 0
      %v1507 = vsel %vm284, %v1482, 0
      %1509 = vmatprep.subr.mxu0 0.0
      %1510 = vmatpush1.msra.mxu0 0.0
      %1511 = vmatprep.subr.mxu0 0.0
      %1512 = vmatpush1.msra.mxu0 0.0
      %1513 = vmatprep.subr.mxu0 0.0
      %1514 = vmatpush1.msra.mxu0 0.0
      %1515 = vmatprep.subr.mxu0 0.0
      %1516 = vmatpush1.msra.mxu0 0.0
      %1517 = vmatprep.subr.mxu0 0.0
      %1518 = vmatpush1.msra.mxu0 0.0
      %1519 = vmatprep.subr.mxu0 0.0
      %1520 = vmatpush1.msra.mxu0 0.0
      %1521 = vmatprep.subr.mxu0 0.0
      %1522 = vmatpush1.msra.mxu0 0.0
      %1523 = vmatprep.subr.mxu0 0.0
      %1524 = vmatpush1.msra.mxu0 0.0
      %1525 = vmatprep.subr.mxu0 0.0
      %1526 = vmatpush1.msra.mxu0 0.0
      %1527 = vmatprep.subr.mxu0 0.0
      %1528 = vmatpush1.msra.mxu0 0.0
      %1529 = vmatprep.subr.mxu0 0.0
      %1530 = vmatpush1.msra.mxu0 0.0
      %1531 = vmatprep.subr.mxu0 0.0
      %1532 = vmatpush1.msra.mxu0 0.0
      %1533 = vmatprep.subr.mxu0 0.0
      %1534 = vmatpush1.msra.mxu0 0.0
      %1535 = vmatprep.subr.mxu0 0.0
      %1536 = vmatpush1.msra.mxu0 0.0
      %1537 = vmatprep.subr.mxu0 0.0
      %1538 = vmatpush1.msra.mxu0 0.0
      %1539 = vmatprep.subr.mxu0 0.0
      %1540 = vmatpush1.msra.mxu0 %v1484
      %1541 = vmatprep.subr.mxu0 0.0
      %1542 = vmatpush2.msra.mxu0 0.0
      %1543 = vmatprep.subr.mxu0 0.0
      %1544 = vmatpush2.msra.mxu0 0.0
      %1545 = vmatprep.subr.mxu0 0.0
      %1546 = vmatpush2.msra.mxu0 0.0
      %1547 = vmatprep.subr.mxu0 0.0
      %1548 = vmatpush2.msra.mxu0 0.0
      %1549 = vmatprep.subr.mxu0 0.0
      %1550 = vmatpush2.msra.mxu0 0.0
      %1551 = vmatprep.subr.mxu0 0.0
      %1552 = vmatpush2.msra.mxu0 0.0
      %1553 = vmatprep.subr.mxu0 0.0
      %1554 = vmatpush2.msra.mxu0 0.0
      %1555 = vmatprep.subr.mxu0 0.0
      %1556 = vmatpush2.msra.mxu0 0.0
      %1557 = vmatprep.subr.mxu0 0.0
      %1558 = vmatpush2.msra.mxu0 0.0
      %1559 = vmatprep.subr.mxu0 0.0
      %1560 = vmatpush2.msra.mxu0 0.0
      %1561 = vmatprep.subr.mxu0 0.0
      %1562 = vmatpush2.msra.mxu0 0.0
      %1563 = vmatprep.subr.mxu0 0.0
      %1564 = vmatpush2.msra.mxu0 0.0
      %1565 = vmatprep.subr.mxu0 0.0
      %1566 = vmatpush2.msra.mxu0 0.0
      %1567 = vmatprep.subr.mxu0 0.0
      %1568 = vmatpush2.msra.mxu0 0.0
      %1569 = vmatprep.subr.mxu0 0.0
      %1570 = vmatpush2.msra.mxu0 0.0
      %1571 = vmatprep.subr.mxu0 0.0
      %1572 = vmatpush2.msra.mxu0 0.0
      %1573 = vmatprep.mubr.f32.mxu0 0.0
      %1574 = vmatmul.mubr.f32.gmra.mxu0 %v1486
      %v1575 = vpop.f32.mrf.mxu0
      %v1576 = vadd.f32 0.0, %v1575
      %v1577 = vpop.f32.mrf.mxu0
      %1578 = vmatprep.mubr.f32.mxu0 0.0
      %1579 = vmatmul.mubr.f32.gmra.mxu0 %v1489
      %v1580 = vpop.f32.mrf.mxu0
      %v1581 = vadd.f32 0.0, %v1580
      %v1582 = vpop.f32.mrf.mxu0
      %1583 = vmatprep.mubr.f32.mxu0 0.0
      %1584 = vmatmul.mubr.f32.gmra.mxu0 %v1492
      %v1585 = vpop.f32.mrf.mxu0
      %v1586 = vadd.f32 0.0, %v1585
      %v1587 = vpop.f32.mrf.mxu0
      %1588 = vmatprep.mubr.f32.mxu0 0.0
      %1589 = vmatmul.mubr.f32.gmra.mxu0 %v1495
      %v1590 = vpop.f32.mrf.mxu0
      %v1591 = vadd.f32 0.0, %v1590
      %v1592 = vpop.f32.mrf.mxu0
      %1593 = vmatprep.mubr.f32.mxu0 0.0
      %1594 = vmatmul.mubr.f32.gmra.mxu0 %v1498
      %v1595 = vpop.f32.mrf.mxu0
      %v1596 = vadd.f32 0.0, %v1595
      %v1597 = vpop.f32.mrf.mxu0
      %1598 = vmatprep.mubr.f32.mxu0 0.0
      %1599 = vmatmul.mubr.f32.gmra.mxu0 %v1501
      %v1600 = vpop.f32.mrf.mxu0
      %v1601 = vadd.f32 0.0, %v1600
      %v1602 = vpop.f32.mrf.mxu0
      %1603 = vmatprep.mubr.f32.mxu0 0.0
      %1604 = vmatmul.mubr.f32.gmra.mxu0 %v1504
      %v1605 = vpop.f32.mrf.mxu0
      %v1606 = vadd.f32 0.0, %v1605
      %v1607 = vpop.f32.mrf.mxu0
      %1608 = vmatprep.mubr.f32.mxu0 0.0
      %1609 = vmatmul.mubr.f32.gmra.mxu0 %v1507
      %v1610 = vpop.f32.mrf.mxu0
      %v1611 = vadd.f32 0.0, %v1610
      %v1612 = vpop.f32.mrf.mxu0
      %1613 = vdwg.mxu0
      %v1614 = vadd.f32 %v1467, %v1576
      %v1615 = vadd.f32 %v1468, %v1581
      %v1616 = vadd.f32 %v1469, %v1586
      %v1617 = vadd.f32 %v1470, %v1591
      %v1618 = vadd.f32 %v1471, %v1596
      %v1619 = vadd.f32 %v1472, %v1601
      %v1620 = vadd.f32 %v1473, %v1606
      %v1621 = vadd.f32 %v1474, %v1611
      %1622 = vst.msk [vmem:[%s235] sm:$0xff] %vm284, %v1614
      %1623 = vst.msk [vmem:[%s235 + $0x8] sm:$0xff] %vm284, %v1615
      %1624 = vst.msk [vmem:[%s235 + $0x10] sm:$0xff] %vm284, %v1616
      %1625 = vst.msk [vmem:[%s235 + $0x18] sm:$0xff] %vm284, %v1617
      %1626 = vst.msk [vmem:[%s235 + $0x20] sm:$0xff] %vm284, %v1618
      %1627 = vst.msk [vmem:[%s235 + $0x28] sm:$0xff] %vm284, %v1619
      %1628 = vst.msk [vmem:[%s235 + $0x30] sm:$0xff] %vm284, %v1620
      %1629 = vst.msk [vmem:[%s235 + $0x38] sm:$0xff] %vm284, %v1621
      %v1630 = vsel %vm284, %v1614, 0.0
      %v1631 = vsel %vm284, %v1615, 0.0
      %v1632 = vadd.f32 %v1630, %v1631
      %v1633 = vsel %vm284, %v1616, 0.0
      %v1634 = vadd.f32 %v1632, %v1633
      %v1635 = vsel %vm284, %v1617, 0.0
      %v1636 = vadd.f32 %v1634, %v1635
      %v1637 = vsel %vm284, %v1618, 0.0
      %v1638 = vadd.f32 %v1636, %v1637
      %v1639 = vsel %vm284, %v1619, 0.0
      %v1640 = vadd.f32 %v1638, %v1639
      %v1641 = vsel %vm284, %v1620, 0.0
      %v1642 = vadd.f32 %v1640, %v1641
      %v1643 = vsel %vm284, %v1621, 0.0
      %v1644 = vadd.f32 %v1642, %v1643
      %v1645 = vrot.slane %v1644, 4
      %v1646 = vadd.f32 %v1644, %v1645
      %v1647 = vrot.slane %v1646, 2
      %v1648 = vadd.f32 %v1646, %v1647
      %v1649 = vrot.slane %v1648, 1
      %v1650 = vadd.f32 %v1648, %v1649
      %vm1651 = vcmask 57344
      %1652 = vst.msk [vmem:[%s238] sm:$0x1] %vm1651, %v1650
      %v1653 = vmul.f32 %v1614, %v1614
      %v1654 = vmul.f32 %v1615, %v1615
      %v1655 = vmul.f32 %v1616, %v1616
      %v1656 = vmul.f32 %v1617, %v1617
      %v1657 = vmul.f32 %v1618, %v1618
      %v1658 = vmul.f32 %v1619, %v1619
      %v1659 = vmul.f32 %v1620, %v1620
      %v1660 = vmul.f32 %v1621, %v1621
      %v1661 = vsel %vm284, %v1653, 0.0
      %v1662 = vsel %vm284, %v1654, 0.0
      %v1663 = vadd.f32 %v1661, %v1662
      %v1664 = vsel %vm284, %v1655, 0.0
      %v1665 = vadd.f32 %v1663, %v1664
      %v1666 = vsel %vm284, %v1656, 0.0
      %v1667 = vadd.f32 %v1665, %v1666
      %v1668 = vsel %vm284, %v1657, 0.0
      %v1669 = vadd.f32 %v1667, %v1668
      %v1670 = vsel %vm284, %v1658, 0.0
      %v1671 = vadd.f32 %v1669, %v1670
      %v1672 = vsel %vm284, %v1659, 0.0
      %v1673 = vadd.f32 %v1671, %v1672
      %v1674 = vsel %vm284, %v1660, 0.0
      %v1675 = vadd.f32 %v1673, %v1674
      %v1676 = vrot.slane %v1675, 4
      %v1677 = vadd.f32 %v1675, %v1676
      %v1678 = vrot.slane %v1677, 2
      %v1679 = vadd.f32 %v1677, %v1678
      %v1680 = vrot.slane %v1679, 1
      %v1681 = vadd.f32 %v1679, %v1680
      %1682 = vst.msk [vmem:[%s241] sm:$0x1] %vm1651, %v1681
      %p1683 = scmp.lt.s32.totalorder %s17, 1
      %s1684 = scalar_select %p1683, %s17, 1
      %s1685 = smul.addr %s1684, 8
      %s1686 = smul.addr %s1685, 8
      %s1687 = scalar_lea.vmem %s3, %s1686
      %p1688 = scmp.lt.s32.totalorder %s17, 1
      %s1689 = scalar_select %p1688, %s17, 1
      %s1690 = scalar_lea.vmem %s4, %s1689
      %p1691 = scmp.lt.s32.totalorder %s17, 1
      %s1692 = scalar_select %p1691, %s17, 1
      %s1693 = scalar_lea.vmem %s5, %s1692
      // Predicated region
      $region33: #{compression_layer_forward.4} parent=31 // pred_check
        %p1694 = pneg %p103
      $region34: #{compression_layer_forward.4} parent=31 // pred_check_branch
        %1696 = sbr.rel (%p1694) target = $region36
      $region35: #{compression_layer_forward.4} parent=31 // pred_region
        _
      $region36: #{compression_layer_forward.4} parent=31 // pred_fallthru
        _
      // Predicated region
      $region37: #{compression_layer_forward.4} parent=31 // pred_check
        %p1697 = pneg %p129
      $region38: #{compression_layer_forward.4} parent=31 // pred_check_branch
        %1699 = sbr.rel (%p1697) target = $region40
      $region39: #{compression_layer_forward.4} parent=31 // pred_region
        _
      $region40: #{compression_layer_forward.4} parent=31 // pred_fallthru
        _
      // Predicated region
      $region41: #{compression_layer_forward.4} parent=31 // pred_check
        %p1700 = pneg %p155
      $region42: #{compression_layer_forward.4} parent=31 // pred_check_branch
        %1702 = sbr.rel (%p1700) target = $region44
      $region43: #{compression_layer_forward.4} parent=31 // pred_region
        _
      $region44: #{compression_layer_forward.4} parent=31 // pred_fallthru
        _
    $region32: #{compression_layer_forward.4} parent=5 // pred_fallthru
      _
    %p1703 = scmp.le.s32.totalorder 2, %s12
    // Predicated region
    $region45: #{compression_layer_forward.4} parent=5 // pred_check
      %p1704 = pneg %p1703
    $region46: #{compression_layer_forward.4} parent=5 // pred_check_branch
      %1706 = sbr.rel (%p1704) target = $region48
    $region47: #{compression_layer_forward.4} parent=5 // pred_region
      %s1707 = ssub.s32 %s12, 2
      // Predicated region
      $region49: #{compression_layer_forward.4} parent=47 // pred_check
        %p1708 = pneg %p109
      $region50: #{compression_layer_forward.4} parent=47 // pred_check_branch
        %1710 = sbr.rel (%p1708) target = $region52
      $region51: #{compression_layer_forward.4} parent=47 // pred_region
        %p1711 = scmp.lt.s32.totalorder %s18, 1
        %s1712 = scalar_select %p1711, %s18, 1
        %s1713 = smul.addr %s1712, 8
        %s1714 = smul.addr %s1713, 8
        %s1715 = scalar_lea.vmem %s3, %s1714
      $region52: #{compression_layer_forward.4} parent=47 // pred_fallthru
        _
      // Predicated region
      $region53: #{compression_layer_forward.4} parent=47 // pred_check
        %p1716 = pneg %p135
      $region54: #{compression_layer_forward.4} parent=47 // pred_check_branch
        %1718 = sbr.rel (%p1716) target = $region56
      $region55: #{compression_layer_forward.4} parent=47 // pred_region
        %p1719 = scmp.lt.s32.totalorder %s18, 1
        %s1720 = scalar_select %p1719, %s18, 1
        %s1721 = scalar_lea.vmem %s4, %s1720
      $region56: #{compression_layer_forward.4} parent=47 // pred_fallthru
        _
      // Predicated region
      $region57: #{compression_layer_forward.4} parent=47 // pred_check
        %p1722 = pneg %p161
      $region58: #{compression_layer_forward.4} parent=47 // pred_check_branch
        %1724 = sbr.rel (%p1722) target = $region60
      $region59: #{compression_layer_forward.4} parent=47 // pred_region
        %p1725 = scmp.lt.s32.totalorder %s18, 1
        %s1726 = scalar_select %p1725, %s18, 1
        %s1727 = scalar_lea.vmem %s5, %s1726
      $region60: #{compression_layer_forward.4} parent=47 // pred_fallthru
        _
    $region48: #{compression_layer_forward.4} parent=5 // pred_fallthru
      _
  $region6: #{compression_layer_forward.4} parent=0 // loop_footer
    %s16 = sadd.s32 1, %s12
  $region7: #{compression_layer_forward.4} parent=0 // loop_footer_branch
    %11 = sbr.rel target = $region3
  $region8: #{compression_layer_forward.4} parent=0 // loop_exit
    _

// kernel: compression_layer_forward.3
$region0: #{compression_layer_forward.3}
  #allocation0 [shape = 'u32[]', space=smem, size = 0x4, offset = 0x4, fixed_abs, tag = 'smem constant byte address 0x4 - core index']
  #allocation1 [shape = 'u32[144,128]{1,0:T(1,128)}', space=vmem, size = 0x12000, scoped, tag = 'internal scratch']
  #allocation2 [shape = 'f32[10,10,4]{2,1,0:T(8,128)}', space=vmem, size = 0x14000, scoped, tag = 'scratch operand']
  %s0 = inlined_call_operand.vmem [shape: f32[2,32,8,4], index: 0, kind: input, shape index: {}]
  %s1 = inlined_call_operand.vmem [shape: f32[9,4,8], index: 1, kind: input, shape index: {}]
  %s2 = inlined_call_operand.vmem [shape: f32[2,64,8], index: 2, kind: output, shape index: {0}]
  %s3 = inlined_call_operand.vmem [shape: f32[2,1,8], index: 3, kind: output, shape index: {1}]
  %s4 = inlined_call_operand.vmem [shape: f32[2,1,8], index: 4, kind: output, shape index: {2}]
  %5 = xla_tuple %s2, %s3, %s4
  %s6 = sld [smem:[#allocation0]]
  $region57: #{compression_layer_forward.3} parent=0
    _
  %s8 = ssub.s32 1, %s6
  %s9 = scalar_select 0, %s8, %s6
  loop: start=0, step=1, limit=4
  $region2: #{compression_layer_forward.3} parent=0 // loop_pre_header
    _
  $region3: #{compression_layer_forward.3} parent=0 // loop_header
    %s11 = sphi 0, %s15
    %p12 = scmp.ge.s32.totalorder %s11, 4
    %s21 = sphi 0, %s23
    %s24 = sphi 0, %s21
    %s25 = sphi 0, %s24
    %s41 = sphi 0, %s25
    %s45 = sphi 0, %s45
    %s47 = sphi 0, %s45
    %s48 = sphi 0, %s47
    %s62 = sphi 0, %s48
    %s68 = sphi 0, %s70
    %s71 = sphi 0, %s68
    %s72 = sphi 0, %s71
    %s88 = sphi 0, %s72
    %s94 = sphi 0, %s96
    %s97 = sphi 0, %s94
    %s98 = sphi 0, %s97
    %s114 = sphi 0, %s98
    %s120 = sphi 0, %s122
    %s123 = sphi 0, %s120
    %s124 = sphi 0, %s123
    %s140 = sphi 0, %s124
  $region4: #{compression_layer_forward.3} parent=0 // loop_header_branch
    %14 = sbr.rel (%p12) target = $region8
  $region5: #{compression_layer_forward.3} parent=0 // loop_body
    %s16 = ssub.s32 %s11, 1
    %s17 = ssub.s32 %s11, 2
    %s18 = sadd.s32 %s11, 1
    %s19 = ssub.s32 %s11, %s18
    %p20 = scmp.eq.s32.totalorder %s19, 0
    %s22 = sadd.s32 %s21, 1
    %s23 = scalar_select %p20, %s21, %s22
    %p26 = pneg %p20
    %p27 = scmp.eq.s32.totalorder %s11, 1
    %p28 = por %p26, %p27
    %p29 = scmp.ne.s32.totalorder %s21, %s24
    %p30 = scmp.eq.s32.totalorder %s11, 0
    %p31 = por %p29, %p30
    %p32 = scmp.ne.s32.totalorder %s21, %s24
    %p33 = scmp.eq.s32.totalorder %s16, 1
    %p34 = por %p32, %p33
    %p35 = scmp.ne.s32.totalorder %s24, %s25
    %p36 = scmp.eq.s32.totalorder %s16, 0
    %p37 = por %p35, %p36
    %p38 = scmp.ne.s32.totalorder %s24, %s25
    %p39 = scmp.eq.s32.totalorder %s17, 1
    %p40 = por %p38, %p39
    %p42 = scmp.ne.s32.totalorder %s25, %s41
    %p43 = scmp.eq.s32.totalorder %s17, 0
    %p44 = por %p42, %p43
    %s46 = sadd.s32 %s45, 1
    %p49 = scmp.eq.s32.totalorder %s11, 1
    %p50 = scmp.ne.s32.totalorder %s45, %s47
    %p51 = scmp.eq.s32.totalorder %s11, 0
    %p52 = por %p50, %p51
    %p53 = scmp.ne.s32.totalorder %s45, %s47
    %p54 = scmp.eq.s32.totalorder %s16, 1
    %p55 = por %p53, %p54
    %p56 = scmp.ne.s32.totalorder %s47, %s48
    %p57 = scmp.eq.s32.totalorder %s16, 0
    %p58 = por %p56, %p57
    %p59 = scmp.ne.s32.totalorder %s47, %s48
    %p60 = scmp.eq.s32.totalorder %s17, 1
    %p61 = por %p59, %p60
    %p63 = scmp.ne.s32.totalorder %s48, %s62
    %p64 = scmp.eq.s32.totalorder %s17, 0
    %p65 = por %p63, %p64
    %s66 = ssub.s32 %s11, %s18
    %p67 = scmp.eq.s32.totalorder %s66, 0
    %s69 = sadd.s32 %s68, 1
    %s70 = scalar_select %p67, %s68, %s69
    %p73 = pneg %p67
    %p74 = scmp.eq.s32.totalorder %s11, 1
    %p75 = por %p73, %p74
    %p76 = scmp.ne.s32.totalorder %s68, %s71
    %p77 = scmp.eq.s32.totalorder %s11, 0
    %p78 = por %p76, %p77
    %p79 = scmp.ne.s32.totalorder %s68, %s71
    %p80 = scmp.eq.s32.totalorder %s16, 1
    %p81 = por %p79, %p80
    %p82 = scmp.ne.s32.totalorder %s71, %s72
    %p83 = scmp.eq.s32.totalorder %s16, 0
    %p84 = por %p82, %p83
    %p85 = scmp.ne.s32.totalorder %s71, %s72
    %p86 = scmp.eq.s32.totalorder %s17, 1
    %p87 = por %p85, %p86
    %p89 = scmp.ne.s32.totalorder %s72, %s88
    %p90 = scmp.eq.s32.totalorder %s17, 0
    %p91 = por %p89, %p90
    %s92 = ssub.s32 %s11, %s18
    %p93 = scmp.eq.s32.totalorder %s92, 0
    %s95 = sadd.s32 %s94, 1
    %s96 = scalar_select %p93, %s94, %s95
    %p99 = pneg %p93
    %p100 = scmp.eq.s32.totalorder %s11, 1
    %p101 = por %p99, %p100
    %p102 = scmp.ne.s32.totalorder %s94, %s97
    %p103 = scmp.eq.s32.totalorder %s11, 0
    %p104 = por %p102, %p103
    %p105 = scmp.ne.s32.totalorder %s94, %s97
    %p106 = scmp.eq.s32.totalorder %s16, 1
    %p107 = por %p105, %p106
    %p108 = scmp.ne.s32.totalorder %s97, %s98
    %p109 = scmp.eq.s32.totalorder %s16, 0
    %p110 = por %p108, %p109
    %p111 = scmp.ne.s32.totalorder %s97, %s98
    %p112 = scmp.eq.s32.totalorder %s17, 1
    %p113 = por %p111, %p112
    %p115 = scmp.ne.s32.totalorder %s98, %s114
    %p116 = scmp.eq.s32.totalorder %s17, 0
    %p117 = por %p115, %p116
    %s118 = ssub.s32 %s11, %s18
    %p119 = scmp.eq.s32.totalorder %s118, 0
    %s121 = sadd.s32 %s120, 1
    %s122 = scalar_select %p119, %s120, %s121
    %p125 = pneg %p119
    %p126 = scmp.eq.s32.totalorder %s11, 1
    %p127 = por %p125, %p126
    %p128 = scmp.ne.s32.totalorder %s120, %s123
    %p129 = scmp.eq.s32.totalorder %s11, 0
    %p130 = por %p128, %p129
    %p131 = scmp.ne.s32.totalorder %s120, %s123
    %p132 = scmp.eq.s32.totalorder %s16, 1
    %p133 = por %p131, %p132
    %p134 = scmp.ne.s32.totalorder %s123, %s124
    %p135 = scmp.eq.s32.totalorder %s16, 0
    %p136 = por %p134, %p135
    %p137 = scmp.ne.s32.totalorder %s123, %s124
    %p138 = scmp.eq.s32.totalorder %s17, 1
    %p139 = por %p137, %p138
    %p141 = scmp.ne.s32.totalorder %s124, %s140
    %p142 = scmp.eq.s32.totalorder %s17, 0
    %p143 = por %p141, %p142
    %p144 = scmp.le.s32.totalorder 1, %s11
    %p145 = scmp.lt.s32.totalorder %s11, 3
    %p146 = pnand %p144, %p145
    %p147 = pneg %p146
    // Predicated region
    $region9: #{compression_layer_forward.3} parent=5 // pred_check
      _
    $region10: #{compression_layer_forward.3} parent=5 // pred_check_branch
      %149 = sbr.rel (%p146) target = $region12
    $region11: #{compression_layer_forward.3} parent=5 // pred_region
      %s150 = ssub.s32 %s11, 1
      // Predicated region
      $region13: #{compression_layer_forward.3} parent=11 // pred_check
        %p151 = pneg %p58
      $region14: #{compression_layer_forward.3} parent=11 // pred_check_branch
        %153 = sbr.rel (%p151) target = $region16
      $region15: #{compression_layer_forward.3} parent=11 // pred_region
        _
      $region16: #{compression_layer_forward.3} parent=11 // pred_fallthru
        _
    $region12: #{compression_layer_forward.3} parent=5 // pred_fallthru
      _
    %p154 = scmp.lt.s32.totalorder %s11, 2
    // Predicated region
    $region17: #{compression_layer_forward.3} parent=5 // pred_check
      %p155 = pneg %p154
    $region18: #{compression_layer_forward.3} parent=5 // pred_check_branch
      %157 = sbr.rel (%p155) target = $region20
    $region19: #{compression_layer_forward.3} parent=5 // pred_region
      // Predicated region
      $region21: #{compression_layer_forward.3} parent=19 // pred_check
        %p158 = pneg %p31
      $region22: #{compression_layer_forward.3} parent=19 // pred_check_branch
        %160 = sbr.rel (%p158) target = $region24
      $region23: #{compression_layer_forward.3} parent=19 // pred_region
        %p161 = scmp.lt.s32.totalorder %s11, 1
        %s162 = scalar_select %p161, %s11, 1
        %s163 = smul.addr %s162, 32
        %s164 = smul.addr %s163, 8
        %s165 = scalar_lea.vmem %s0, %s164
      $region24: #{compression_layer_forward.3} parent=19 // pred_fallthru
        _
    $region20: #{compression_layer_forward.3} parent=5 // pred_fallthru
      _
    %p166 = scmp.le.s32.totalorder 1, %s11
    %p167 = scmp.lt.s32.totalorder %s11, 3
    %p168 = pnand %p166, %p167
    %p169 = pneg %p168
    // Predicated region
    $region25: #{compression_layer_forward.3} parent=5 // pred_check
      _
    $region26: #{compression_layer_forward.3} parent=5 // pred_check_branch
      %171 = sbr.rel (%p168) target = $region28
    $region27: #{compression_layer_forward.3} parent=5 // pred_region
      %s172 = ssub.s32 %s11, 1
      %p173 = scmp.lt.s32.totalorder %s16, 1
      %s174 = scalar_select %p173, %s16, 1
      %s175 = smul.addr %s174, 32
      %s176 = smul.addr %s175, 8
      %s177 = scalar_lea.vmem %s0, %s176
      %p178 = pneg %p37
      %p179 = pneg %p34
      %p180 = pneg %p58
      %p181 = pneg %p55
      %p182 = pneg %p84
      %p183 = pneg %p81
      %p184 = scmp.lt.s32.totalorder %s16, 1
      %s185 = scalar_select %p184, %s16, 1
      %s186 = smul.addr %s185, 8
      %s187 = smul.addr %s186, 8
      %s188 = scalar_lea.vmem %s2, %s187
      %p189 = pneg %p110
      %p190 = pneg %p107
      %p191 = scmp.lt.s32.totalorder %s16, 1
      %s192 = scalar_select %p191, %s16, 1
      %s193 = scalar_lea.vmem %s3, %s192
      %p194 = pneg %p136
      %p195 = pneg %p133
      %p196 = scmp.lt.s32.totalorder %s16, 1
      %s197 = scalar_select %p196, %s16, 1
      %s198 = scalar_lea.vmem %s4, %s197
      %p199 = scmp.lt.s32.totalorder %s16, 1
      %s200 = scalar_select %p199, %s16, 1
      %s201 = smul.addr %s200, 32
      %s202 = smul.addr %s201, 8
      %s203 = scalar_lea.vmem %s0, %s202
      %p204 = scmp.lt.s32.totalorder %s16, 1
      %s205 = scalar_select %p204, %s16, 1
      %s206 = smul.addr %s205, 8
      %s207 = smul.addr %s206, 8
      %s208 = scalar_lea.vmem %s2, %s207
      %p209 = scmp.lt.s32.totalorder %s16, 1
      %s210 = scalar_select %p209, %s16, 1
      %s211 = scalar_lea.vmem %s3, %s210
      %p212 = scmp.lt.s32.totalorder %s16, 1
      %s213 = scalar_select %p212, %s16, 1
      %s214 = scalar_lea.vmem %s4, %s213
      %v215 = vld [vmem:[%s203] sm:$0xff]
      %v216 = vld [vmem:[%s203 + $0x8] sm:$0xff]
      %v217 = vld [vmem:[%s203 + $0x10] sm:$0xff]
      %v218 = vld [vmem:[%s203 + $0x18] sm:$0xff]
      %v219 = vld [vmem:[%s203 + $0x20] sm:$0xff]
      %v220 = vld [vmem:[%s203 + $0x28] sm:$0xff]
      %v221 = vld [vmem:[%s203 + $0x30] sm:$0xff]
      %v222 = vld [vmem:[%s203 + $0x38] sm:$0xff]
      %s223 = scalar_lea.vmem %s203, 64
      %v224 = vld [vmem:[%s223] sm:$0xff]
      %v225 = vld [vmem:[%s223 + $0x8] sm:$0xff]
      %v226 = vld [vmem:[%s223 + $0x10] sm:$0xff]
      %v227 = vld [vmem:[%s223 + $0x18] sm:$0xff]
      %v228 = vld [vmem:[%s223 + $0x20] sm:$0xff]
      %v229 = vld [vmem:[%s223 + $0x28] sm:$0xff]
      %v230 = vld [vmem:[%s223 + $0x30] sm:$0xff]
      %v231 = vld [vmem:[%s223 + $0x38] sm:$0xff]
      %v232 = vmax.f32 %v215, %v224
      %v233 = vmax.f32 %v216, %v225
      %v234 = vmax.f32 %v217, %v226
      %v235 = vmax.f32 %v218, %v227
      %v236 = vmax.f32 %v219, %v228
      %v237 = vmax.f32 %v220, %v229
      %v238 = vmax.f32 %v221, %v230
      %v239 = vmax.f32 %v222, %v231
      %s240 = scalar_lea.vmem %s203, 128
      %v241 = vld [vmem:[%s240] sm:$0xff]
      %v242 = vld [vmem:[%s240 + $0x8] sm:$0xff]
      %v243 = vld [vmem:[%s240 + $0x10] sm:$0xff]
      %v244 = vld [vmem:[%s240 + $0x18] sm:$0xff]
      %v245 = vld [vmem:[%s240 + $0x20] sm:$0xff]
      %v246 = vld [vmem:[%s240 + $0x28] sm:$0xff]
      %v247 = vld [vmem:[%s240 + $0x30] sm:$0xff]
      %v248 = vld [vmem:[%s240 + $0x38] sm:$0xff]
      %v249 = vmax.f32 %v232, %v241
      %v250 = vmax.f32 %v233, %v242
      %v251 = vmax.f32 %v234, %v243
      %v252 = vmax.f32 %v235, %v244
      %v253 = vmax.f32 %v236, %v245
      %v254 = vmax.f32 %v237, %v246
      %v255 = vmax.f32 %v238, %v247
      %v256 = vmax.f32 %v239, %v248
      %s257 = scalar_lea.vmem %s203, 192
      %v258 = vld [vmem:[%s257] sm:$0xff]
      %v259 = vld [vmem:[%s257 + $0x8] sm:$0xff]
      %v260 = vld [vmem:[%s257 + $0x10] sm:$0xff]
      %v261 = vld [vmem:[%s257 + $0x18] sm:$0xff]
      %v262 = vld [vmem:[%s257 + $0x20] sm:$0xff]
      %v263 = vld [vmem:[%s257 + $0x28] sm:$0xff]
      %v264 = vld [vmem:[%s257 + $0x30] sm:$0xff]
      %v265 = vld [vmem:[%s257 + $0x38] sm:$0xff]
      %v266 = vmax.f32 %v249, %v258
      %v267 = vmax.f32 %v250, %v259
      %v268 = vmax.f32 %v251, %v260
      %v269 = vmax.f32 %v252, %v261
      %v270 = vmax.f32 %v253, %v262
      %v271 = vmax.f32 %v254, %v263
      %v272 = vmax.f32 %v255, %v264
      %v273 = vmax.f32 %v256, %v265
      %vm274 = vcmask 31744
      %275 = vst.msk [vmem:[#allocation2] sm:$0xff] %vm274, 0.0
      %vm276 = vcmask 25600
      %277 = vst.msk [vmem:[#allocation2 + $0x8] sm:$0x3] %vm276, 0.0
      %278 = vst.msk [vmem:[#allocation2 + $0x10] sm:$0xff] %vm274, 0.0
      %279 = vst.msk [vmem:[#allocation2 + $0x18] sm:$0x3] %vm276, 0.0
      %280 = vst.msk [vmem:[#allocation2 + $0x20] sm:$0xff] %vm274, 0.0
      %281 = vst.msk [vmem:[#allocation2 + $0x28] sm:$0x3] %vm276, 0.0
      %282 = vst.msk [vmem:[#allocation2 + $0x30] sm:$0xff] %vm274, 0.0
      %283 = vst.msk [vmem:[#allocation2 + $0x38] sm:$0x3] %vm276, 0.0
      %284 = vst.msk [vmem:[#allocation2 + $0x40] sm:$0xff] %vm274, 0.0
      %285 = vst.msk [vmem:[#allocation2 + $0x48] sm:$0x3] %vm276, 0.0
      %286 = vst.msk [vmem:[#allocation2 + $0x50] sm:$0xff] %vm274, 0.0
      %287 = vst.msk [vmem:[#allocation2 + $0x58] sm:$0x3] %vm276, 0.0
      %288 = vst.msk [vmem:[#allocation2 + $0x60] sm:$0xff] %vm274, 0.0
      %289 = vst.msk [vmem:[#allocation2 + $0x68] sm:$0x3] %vm276, 0.0
      %290 = vst.msk [vmem:[#allocation2 + $0x70] sm:$0xff] %vm274, 0.0
      %291 = vst.msk [vmem:[#allocation2 + $0x78] sm:$0x3] %vm276, 0.0
      %292 = vst.msk [vmem:[#allocation2 + $0x80] sm:$0xff] %vm274, 0.0
      %293 = vst.msk [vmem:[#allocation2 + $0x88] sm:$0x3] %vm276, 0.0
      %294 = vst.msk [vmem:[#allocation2 + $0x90] sm:$0xff] %vm274, 0.0
      %295 = vst.msk [vmem:[#allocation2 + $0x98] sm:$0x3] %vm276, 0.0
      %s296 = scalar_lea.vmem [#allocation2], 16
      %297 = vst.msk [vmem:[%s296 + $0x1] sm:$0xff] %vm274, %v266
      %298 = vst.msk [vmem:[%s296 + $0x11] sm:$0xff] %vm274, %v267
      %299 = vst.msk [vmem:[%s296 + $0x21] sm:$0xff] %vm274, %v268
      %300 = vst.msk [vmem:[%s296 + $0x31] sm:$0xff] %vm274, %v269
      %301 = vst.msk [vmem:[%s296 + $0x41] sm:$0xff] %vm274, %v270
      %302 = vst.msk [vmem:[%s296 + $0x51] sm:$0xff] %vm274, %v271
      %303 = vst.msk [vmem:[%s296 + $0x61] sm:$0xff] %vm274, %v272
      %304 = vst.msk [vmem:[%s296 + $0x71] sm:$0xff] %vm274, %v273
      %v305 = vld [vmem:[#allocation2] sm:$0xff]
      %v306 = vld [vmem:[#allocation2 + $0x10] sm:$0xff]
      %v307 = vld [vmem:[#allocation2 + $0x20] sm:$0xff]
      %v308 = vld [vmem:[#allocation2 + $0x30] sm:$0xff]
      %v309 = vld [vmem:[#allocation2 + $0x40] sm:$0xff]
      %v310 = vld [vmem:[#allocation2 + $0x50] sm:$0xff]
      %v311 = vld [vmem:[#allocation2 + $0x60] sm:$0xff]
      %v312 = vld [vmem:[#allocation2 + $0x70] sm:$0xff]
      %v313 = vld [vmem:[%s1] sm:$0xf]
      %v314 = vld [vmem:[#allocation2 + $0x1] sm:$0xff]
      %v315 = vld [vmem:[#allocation2 + $0x11] sm:$0xff]
      %v316 = vld [vmem:[#allocation2 + $0x21] sm:$0xff]
      %v317 = vld [vmem:[#allocation2 + $0x31] sm:$0xff]
      %v318 = vld [vmem:[#allocation2 + $0x41] sm:$0xff]
      %v319 = vld [vmem:[#allocation2 + $0x51] sm:$0xff]
      %v320 = vld [vmem:[#allocation2 + $0x61] sm:$0xff]
      %v321 = vld [vmem:[#allocation2 + $0x71] sm:$0xff]
      %s322 = scalar_lea.vmem %s1, 4
      %v323 = vld [vmem:[%s322] sm:$0xf]
      %v325 = vsel %vm274, %v314, 0
      %v328 = vsel %vm274, %v315, 0
      %v331 = vsel %vm274, %v316, 0
      %v334 = vsel %vm274, %v317, 0
      %v337 = vsel %vm274, %v318, 0
      %v340 = vsel %vm274, %v319, 0
      %v343 = vsel %vm274, %v320, 0
      %v346 = vsel %vm274, %v321, 0
      %vm348 = vcmask 1043456
      %v350 = vsel %vm348, %v323, 0
      %352 = vmatprep.subr.mxu0 0.0
      %353 = vmatpush1.msra.mxu0 0.0
      %354 = vmatprep.subr.mxu0 0.0
      %355 = vmatpush1.msra.mxu0 0.0
      %356 = vmatprep.subr.mxu0 0.0
      %357 = vmatpush1.msra.mxu0 0.0
      %358 = vmatprep.subr.mxu0 0.0
      %359 = vmatpush1.msra.mxu0 0.0
      %360 = vmatprep.subr.mxu0 0.0
      %361 = vmatpush1.msra.mxu0 0.0
      %362 = vmatprep.subr.mxu0 0.0
      %363 = vmatpush1.msra.mxu0 0.0
      %364 = vmatprep.subr.mxu0 0.0
      %365 = vmatpush1.msra.mxu0 0.0
      %366 = vmatprep.subr.mxu0 0.0
      %367 = vmatpush1.msra.mxu0 0.0
      %368 = vmatprep.subr.mxu0 0.0
      %369 = vmatpush1.msra.mxu0 0.0
      %370 = vmatprep.subr.mxu0 0.0
      %371 = vmatpush1.msra.mxu0 0.0
      %372 = vmatprep.subr.mxu0 0.0
      %373 = vmatpush1.msra.mxu0 0.0
      %374 = vmatprep.subr.mxu0 0.0
      %375 = vmatpush1.msra.mxu0 0.0
      %376 = vmatprep.subr.mxu0 0.0
      %377 = vmatpush1.msra.mxu0 0.0
      %378 = vmatprep.subr.mxu0 0.0
      %379 = vmatpush1.msra.mxu0 0.0
      %380 = vmatprep.subr.mxu0 0.0
      %381 = vmatpush1.msra.mxu0 0.0
      %382 = vmatprep.subr.mxu0 0.0
      %383 = vmatpush1.msra.mxu0 %v350
      %384 = vmatprep.subr.mxu0 0.0
      %385 = vmatpush2.msra.mxu0 0.0
      %386 = vmatprep.subr.mxu0 0.0
      %387 = vmatpush2.msra.mxu0 0.0
      %388 = vmatprep.subr.mxu0 0.0
      %389 = vmatpush2.msra.mxu0 0.0
      %390 = vmatprep.subr.mxu0 0.0
      %391 = vmatpush2.msra.mxu0 0.0
      %392 = vmatprep.subr.mxu0 0.0
      %393 = vmatpush2.msra.mxu0 0.0
      %394 = vmatprep.subr.mxu0 0.0
      %395 = vmatpush2.msra.mxu0 0.0
      %396 = vmatprep.subr.mxu0 0.0
      %397 = vmatpush2.msra.mxu0 0.0
      %398 = vmatprep.subr.mxu0 0.0
      %399 = vmatpush2.msra.mxu0 0.0
      %400 = vmatprep.subr.mxu0 0.0
      %401 = vmatpush2.msra.mxu0 0.0
      %402 = vmatprep.subr.mxu0 0.0
      %403 = vmatpush2.msra.mxu0 0.0
      %404 = vmatprep.subr.mxu0 0.0
      %405 = vmatpush2.msra.mxu0 0.0
      %406 = vmatprep.subr.mxu0 0.0
      %407 = vmatpush2.msra.mxu0 0.0
      %408 = vmatprep.subr.mxu0 0.0
      %409 = vmatpush2.msra.mxu0 0.0
      %410 = vmatprep.subr.mxu0 0.0
      %411 = vmatpush2.msra.mxu0 0.0
      %412 = vmatprep.subr.mxu0 0.0
      %413 = vmatpush2.msra.mxu0 0.0
      %414 = vmatprep.subr.mxu0 0.0
      %415 = vmatpush2.msra.mxu0 0.0
      %416 = vmatprep.mubr.f32.mxu0 0.0
      %417 = vmatmul.mubr.f32.gmra.mxu0 %v325
      %v418 = vpop.f32.mrf.mxu0
      %v419 = vadd.f32 0.0, %v418
      %v420 = vpop.f32.mrf.mxu0
      %421 = vmatprep.mubr.f32.mxu0 0.0
      %422 = vmatmul.mubr.f32.gmra.mxu0 %v328
      %v423 = vpop.f32.mrf.mxu0
      %v424 = vadd.f32 0.0, %v423
      %v425 = vpop.f32.mrf.mxu0
      %426 = vmatprep.mubr.f32.mxu0 0.0
      %427 = vmatmul.mubr.f32.gmra.mxu0 %v331
      %v428 = vpop.f32.mrf.mxu0
      %v429 = vadd.f32 0.0, %v428
      %v430 = vpop.f32.mrf.mxu0
      %431 = vmatprep.mubr.f32.mxu0 0.0
      %432 = vmatmul.mubr.f32.gmra.mxu0 %v334
      %v433 = vpop.f32.mrf.mxu0
      %v434 = vadd.f32 0.0, %v433
      %v435 = vpop.f32.mrf.mxu0
      %436 = vmatprep.mubr.f32.mxu0 0.0
      %437 = vmatmul.mubr.f32.gmra.mxu0 %v337
      %v438 = vpop.f32.mrf.mxu0
      %v439 = vadd.f32 0.0, %v438
      %v440 = vpop.f32.mrf.mxu0
      %441 = vmatprep.mubr.f32.mxu0 0.0
      %442 = vmatmul.mubr.f32.gmra.mxu0 %v340
      %v443 = vpop.f32.mrf.mxu0
      %v444 = vadd.f32 0.0, %v443
      %v445 = vpop.f32.mrf.mxu0
      %446 = vmatprep.mubr.f32.mxu0 0.0
      %447 = vmatmul.mubr.f32.gmra.mxu0 %v343
      %v448 = vpop.f32.mrf.mxu0
      %v449 = vadd.f32 0.0, %v448
      %v450 = vpop.f32.mrf.mxu0
      %451 = vmatprep.mubr.f32.mxu0 0.0
      %452 = vmatmul.mubr.f32.gmra.mxu0 %v346
      %v453 = vpop.f32.mrf.mxu0
      %v454 = vadd.f32 0.0, %v453
      %v455 = vpop.f32.mrf.mxu0
      %456 = vdwg.mxu0
      %v458 = vsel %vm274, %v305, 0
      %v461 = vsel %vm274, %v306, 0
      %v464 = vsel %vm274, %v307, 0
      %v467 = vsel %vm274, %v308, 0
      %v470 = vsel %vm274, %v309, 0
      %v473 = vsel %vm274, %v310, 0
      %v476 = vsel %vm274, %v311, 0
      %v479 = vsel %vm274, %v312, 0
      %v482 = vsel %vm348, %v313, 0
      %484 = vmatprep.subr.mxu0 0.0
      %485 = vmatpush1.msra.mxu0 0.0
      %486 = vmatprep.subr.mxu0 0.0
      %487 = vmatpush1.msra.mxu0 0.0
      %488 = vmatprep.subr.mxu0 0.0
      %489 = vmatpush1.msra.mxu0 0.0
      %490 = vmatprep.subr.mxu0 0.0
      %491 = vmatpush1.msra.mxu0 0.0
      %492 = vmatprep.subr.mxu0 0.0
      %493 = vmatpush1.msra.mxu0 0.0
      %494 = vmatprep.subr.mxu0 0.0
      %495 = vmatpush1.msra.mxu0 0.0
      %496 = vmatprep.subr.mxu0 0.0
      %497 = vmatpush1.msra.mxu0 0.0
      %498 = vmatprep.subr.mxu0 0.0
      %499 = vmatpush1.msra.mxu0 0.0
      %500 = vmatprep.subr.mxu0 0.0
      %501 = vmatpush1.msra.mxu0 0.0
      %502 = vmatprep.subr.mxu0 0.0
      %503 = vmatpush1.msra.mxu0 0.0
      %504 = vmatprep.subr.mxu0 0.0
      %505 = vmatpush1.msra.mxu0 0.0
      %506 = vmatprep.subr.mxu0 0.0
      %507 = vmatpush1.msra.mxu0 0.0
      %508 = vmatprep.subr.mxu0 0.0
      %509 = vmatpush1.msra.mxu0 0.0
      %510 = vmatprep.subr.mxu0 0.0
      %511 = vmatpush1.msra.mxu0 0.0
      %512 = vmatprep.subr.mxu0 0.0
      %513 = vmatpush1.msra.mxu0 0.0
      %514 = vmatprep.subr.mxu0 0.0
      %515 = vmatpush1.msra.mxu0 %v482
      %516 = vmatprep.subr.mxu0 0.0
      %517 = vmatpush2.msra.mxu0 0.0
      %518 = vmatprep.subr.mxu0 0.0
      %519 = vmatpush2.msra.mxu0 0.0
      %520 = vmatprep.subr.mxu0 0.0
      %521 = vmatpush2.msra.mxu0 0.0
      %522 = vmatprep.subr.mxu0 0.0
      %523 = vmatpush2.msra.mxu0 0.0
      %524 = vmatprep.subr.mxu0 0.0
      %525 = vmatpush2.msra.mxu0 0.0
      %526 = vmatprep.subr.mxu0 0.0
      %527 = vmatpush2.msra.mxu0 0.0
      %528 = vmatprep.subr.mxu0 0.0
      %529 = vmatpush2.msra.mxu0 0.0
      %530 = vmatprep.subr.mxu0 0.0
      %531 = vmatpush2.msra.mxu0 0.0
      %532 = vmatprep.subr.mxu0 0.0
      %533 = vmatpush2.msra.mxu0 0.0
      %534 = vmatprep.subr.mxu0 0.0
      %535 = vmatpush2.msra.mxu0 0.0
      %536 = vmatprep.subr.mxu0 0.0
      %537 = vmatpush2.msra.mxu0 0.0
      %538 = vmatprep.subr.mxu0 0.0
      %539 = vmatpush2.msra.mxu0 0.0
      %540 = vmatprep.subr.mxu0 0.0
      %541 = vmatpush2.msra.mxu0 0.0
      %542 = vmatprep.subr.mxu0 0.0
      %543 = vmatpush2.msra.mxu0 0.0
      %544 = vmatprep.subr.mxu0 0.0
      %545 = vmatpush2.msra.mxu0 0.0
      %546 = vmatprep.subr.mxu0 0.0
      %547 = vmatpush2.msra.mxu0 0.0
      %548 = vmatprep.mubr.f32.mxu0 0.0
      %549 = vmatmul.mubr.f32.gmra.mxu0 %v458
      %v550 = vpop.f32.mrf.mxu0
      %v551 = vadd.f32 %v419, %v550
      %v552 = vpop.f32.mrf.mxu0
      %553 = vmatprep.mubr.f32.mxu0 0.0
      %554 = vmatmul.mubr.f32.gmra.mxu0 %v461
      %v555 = vpop.f32.mrf.mxu0
      %v556 = vadd.f32 %v424, %v555
      %v557 = vpop.f32.mrf.mxu0
      %558 = vmatprep.mubr.f32.mxu0 0.0
      %559 = vmatmul.mubr.f32.gmra.mxu0 %v464
      %v560 = vpop.f32.mrf.mxu0
      %v561 = vadd.f32 %v429, %v560
      %v562 = vpop.f32.mrf.mxu0
      %563 = vmatprep.mubr.f32.mxu0 0.0
      %564 = vmatmul.mubr.f32.gmra.mxu0 %v467
      %v565 = vpop.f32.mrf.mxu0
      %v566 = vadd.f32 %v434, %v565
      %v567 = vpop.f32.mrf.mxu0
      %568 = vmatprep.mubr.f32.mxu0 0.0
      %569 = vmatmul.mubr.f32.gmra.mxu0 %v470
      %v570 = vpop.f32.mrf.mxu0
      %v571 = vadd.f32 %v439, %v570
      %v572 = vpop.f32.mrf.mxu0
      %573 = vmatprep.mubr.f32.mxu0 0.0
      %574 = vmatmul.mubr.f32.gmra.mxu0 %v473
      %v575 = vpop.f32.mrf.mxu0
      %v576 = vadd.f32 %v444, %v575
      %v577 = vpop.f32.mrf.mxu0
      %578 = vmatprep.mubr.f32.mxu0 0.0
      %579 = vmatmul.mubr.f32.gmra.mxu0 %v476
      %v580 = vpop.f32.mrf.mxu0
      %v581 = vadd.f32 %v449, %v580
      %v582 = vpop.f32.mrf.mxu0
      %583 = vmatprep.mubr.f32.mxu0 0.0
      %584 = vmatmul.mubr.f32.gmra.mxu0 %v479
      %v585 = vpop.f32.mrf.mxu0
      %v586 = vadd.f32 %v454, %v585
      %v587 = vpop.f32.mrf.mxu0
      %588 = vdwg.mxu0
      %v589 = vld [vmem:[#allocation2 + $0x2] sm:$0xff]
      %v590 = vld [vmem:[#allocation2 + $0x12] sm:$0xff]
      %v591 = vld [vmem:[#allocation2 + $0x22] sm:$0xff]
      %v592 = vld [vmem:[#allocation2 + $0x32] sm:$0xff]
      %v593 = vld [vmem:[#allocation2 + $0x42] sm:$0xff]
      %v594 = vld [vmem:[#allocation2 + $0x52] sm:$0xff]
      %v595 = vld [vmem:[#allocation2 + $0x62] sm:$0xff]
      %v596 = vld [vmem:[#allocation2 + $0x72] sm:$0xff]
      %s597 = scalar_lea.vmem %s1, 8
      %v598 = vld [vmem:[%s597] sm:$0xf]
      %v600 = vsel %vm274, %v589, 0
      %v603 = vsel %vm274, %v590, 0
      %v606 = vsel %vm274, %v591, 0
      %v609 = vsel %vm274, %v592, 0
      %v612 = vsel %vm274, %v593, 0
      %v615 = vsel %vm274, %v594, 0
      %v618 = vsel %vm274, %v595, 0
      %v621 = vsel %vm274, %v596, 0
      %v624 = vsel %vm348, %v598, 0
      %626 = vmatprep.subr.mxu0 0.0
      %627 = vmatpush1.msra.mxu0 0.0
      %628 = vmatprep.subr.mxu0 0.0
      %629 = vmatpush1.msra.mxu0 0.0
      %630 = vmatprep.subr.mxu0 0.0
      %631 = vmatpush1.msra.mxu0 0.0
      %632 = vmatprep.subr.mxu0 0.0
      %633 = vmatpush1.msra.mxu0 0.0
      %634 = vmatprep.subr.mxu0 0.0
      %635 = vmatpush1.msra.mxu0 0.0
      %636 = vmatprep.subr.mxu0 0.0
      %637 = vmatpush1.msra.mxu0 0.0
      %638 = vmatprep.subr.mxu0 0.0
      %639 = vmatpush1.msra.mxu0 0.0
      %640 = vmatprep.subr.mxu0 0.0
      %641 = vmatpush1.msra.mxu0 0.0
      %642 = vmatprep.subr.mxu0 0.0
      %643 = vmatpush1.msra.mxu0 0.0
      %644 = vmatprep.subr.mxu0 0.0
      %645 = vmatpush1.msra.mxu0 0.0
      %646 = vmatprep.subr.mxu0 0.0
      %647 = vmatpush1.msra.mxu0 0.0
      %648 = vmatprep.subr.mxu0 0.0
      %649 = vmatpush1.msra.mxu0 0.0
      %650 = vmatprep.subr.mxu0 0.0
      %651 = vmatpush1.msra.mxu0 0.0
      %652 = vmatprep.subr.mxu0 0.0
      %653 = vmatpush1.msra.mxu0 0.0
      %654 = vmatprep.subr.mxu0 0.0
      %655 = vmatpush1.msra.mxu0 0.0
      %656 = vmatprep.subr.mxu0 0.0
      %657 = vmatpush1.msra.mxu0 %v624
      %658 = vmatprep.subr.mxu0 0.0
      %659 = vmatpush2.msra.mxu0 0.0
      %660 = vmatprep.subr.mxu0 0.0
      %661 = vmatpush2.msra.mxu0 0.0
      %662 = vmatprep.subr.mxu0 0.0
      %663 = vmatpush2.msra.mxu0 0.0
      %664 = vmatprep.subr.mxu0 0.0
      %665 = vmatpush2.msra.mxu0 0.0
      %666 = vmatprep.subr.mxu0 0.0
      %667 = vmatpush2.msra.mxu0 0.0
      %668 = vmatprep.subr.mxu0 0.0
      %669 = vmatpush2.msra.mxu0 0.0
      %670 = vmatprep.subr.mxu0 0.0
      %671 = vmatpush2.msra.mxu0 0.0
      %672 = vmatprep.subr.mxu0 0.0
      %673 = vmatpush2.msra.mxu0 0.0
      %674 = vmatprep.subr.mxu0 0.0
      %675 = vmatpush2.msra.mxu0 0.0
      %676 = vmatprep.subr.mxu0 0.0
      %677 = vmatpush2.msra.mxu0 0.0
      %678 = vmatprep.subr.mxu0 0.0
      %679 = vmatpush2.msra.mxu0 0.0
      %680 = vmatprep.subr.mxu0 0.0
      %681 = vmatpush2.msra.mxu0 0.0
      %682 = vmatprep.subr.mxu0 0.0
      %683 = vmatpush2.msra.mxu0 0.0
      %684 = vmatprep.subr.mxu0 0.0
      %685 = vmatpush2.msra.mxu0 0.0
      %686 = vmatprep.subr.mxu0 0.0
      %687 = vmatpush2.msra.mxu0 0.0
      %688 = vmatprep.subr.mxu0 0.0
      %689 = vmatpush2.msra.mxu0 0.0
      %690 = vmatprep.mubr.f32.mxu0 0.0
      %691 = vmatmul.mubr.f32.gmra.mxu0 %v600
      %v692 = vpop.f32.mrf.mxu0
      %v693 = vadd.f32 0.0, %v692
      %v694 = vpop.f32.mrf.mxu0
      %695 = vmatprep.mubr.f32.mxu0 0.0
      %696 = vmatmul.mubr.f32.gmra.mxu0 %v603
      %v697 = vpop.f32.mrf.mxu0
      %v698 = vadd.f32 0.0, %v697
      %v699 = vpop.f32.mrf.mxu0
      %700 = vmatprep.mubr.f32.mxu0 0.0
      %701 = vmatmul.mubr.f32.gmra.mxu0 %v606
      %v702 = vpop.f32.mrf.mxu0
      %v703 = vadd.f32 0.0, %v702
      %v704 = vpop.f32.mrf.mxu0
      %705 = vmatprep.mubr.f32.mxu0 0.0
      %706 = vmatmul.mubr.f32.gmra.mxu0 %v609
      %v707 = vpop.f32.mrf.mxu0
      %v708 = vadd.f32 0.0, %v707
      %v709 = vpop.f32.mrf.mxu0
      %710 = vmatprep.mubr.f32.mxu0 0.0
      %711 = vmatmul.mubr.f32.gmra.mxu0 %v612
      %v712 = vpop.f32.mrf.mxu0
      %v713 = vadd.f32 0.0, %v712
      %v714 = vpop.f32.mrf.mxu0
      %715 = vmatprep.mubr.f32.mxu0 0.0
      %716 = vmatmul.mubr.f32.gmra.mxu0 %v615
      %v717 = vpop.f32.mrf.mxu0
      %v718 = vadd.f32 0.0, %v717
      %v719 = vpop.f32.mrf.mxu0
      %720 = vmatprep.mubr.f32.mxu0 0.0
      %721 = vmatmul.mubr.f32.gmra.mxu0 %v618
      %v722 = vpop.f32.mrf.mxu0
      %v723 = vadd.f32 0.0, %v722
      %v724 = vpop.f32.mrf.mxu0
      %725 = vmatprep.mubr.f32.mxu0 0.0
      %726 = vmatmul.mubr.f32.gmra.mxu0 %v621
      %v727 = vpop.f32.mrf.mxu0
      %v728 = vadd.f32 0.0, %v727
      %v729 = vpop.f32.mrf.mxu0
      %730 = vdwg.mxu0
      %v731 = vadd.f32 %v551, %v693
      %v732 = vadd.f32 %v556, %v698
      %v733 = vadd.f32 %v561, %v703
      %v734 = vadd.f32 %v566, %v708
      %v735 = vadd.f32 %v571, %v713
      %v736 = vadd.f32 %v576, %v718
      %v737 = vadd.f32 %v581, %v723
      %v738 = vadd.f32 %v586, %v728
      %v739 = vld [vmem:[%s296] sm:$0xff]
      %v740 = vld [vmem:[%s296 + $0x10] sm:$0xff]
      %v741 = vld [vmem:[%s296 + $0x20] sm:$0xff]
      %v742 = vld [vmem:[%s296 + $0x30] sm:$0xff]
      %v743 = vld [vmem:[%s296 + $0x40] sm:$0xff]
      %v744 = vld [vmem:[%s296 + $0x50] sm:$0xff]
      %v745 = vld [vmem:[%s296 + $0x60] sm:$0xff]
      %v746 = vld [vmem:[%s296 + $0x70] sm:$0xff]
      %s747 = scalar_lea.vmem %s1, 12
      %v748 = vld [vmem:[%s747] sm:$0xf]
      %v750 = vsel %vm274, %v739, 0
      %v753 = vsel %vm274, %v740, 0
      %v756 = vsel %vm274, %v741, 0
      %v759 = vsel %vm274, %v742, 0
      %v762 = vsel %vm274, %v743, 0
      %v765 = vsel %vm274, %v744, 0
      %v768 = vsel %vm274, %v745, 0
      %v771 = vsel %vm274, %v746, 0
      %v774 = vsel %vm348, %v748, 0
      %776 = vmatprep.subr.mxu0 0.0
      %777 = vmatpush1.msra.mxu0 0.0
      %778 = vmatprep.subr.mxu0 0.0
      %779 = vmatpush1.msra.mxu0 0.0
      %780 = vmatprep.subr.mxu0 0.0
      %781 = vmatpush1.msra.mxu0 0.0
      %782 = vmatprep.subr.mxu0 0.0
      %783 = vmatpush1.msra.mxu0 0.0
      %784 = vmatprep.subr.mxu0 0.0
      %785 = vmatpush1.msra.mxu0 0.0
      %786 = vmatprep.subr.mxu0 0.0
      %787 = vmatpush1.msra.mxu0 0.0
      %788 = vmatprep.subr.mxu0 0.0
      %789 = vmatpush1.msra.mxu0 0.0
      %790 = vmatprep.subr.mxu0 0.0
      %791 = vmatpush1.msra.mxu0 0.0
      %792 = vmatprep.subr.mxu0 0.0
      %793 = vmatpush1.msra.mxu0 0.0
      %794 = vmatprep.subr.mxu0 0.0
      %795 = vmatpush1.msra.mxu0 0.0
      %796 = vmatprep.subr.mxu0 0.0
      %797 = vmatpush1.msra.mxu0 0.0
      %798 = vmatprep.subr.mxu0 0.0
      %799 = vmatpush1.msra.mxu0 0.0
      %800 = vmatprep.subr.mxu0 0.0
      %801 = vmatpush1.msra.mxu0 0.0
      %802 = vmatprep.subr.mxu0 0.0
      %803 = vmatpush1.msra.mxu0 0.0
      %804 = vmatprep.subr.mxu0 0.0
      %805 = vmatpush1.msra.mxu0 0.0
      %806 = vmatprep.subr.mxu0 0.0
      %807 = vmatpush1.msra.mxu0 %v774
      %808 = vmatprep.subr.mxu0 0.0
      %809 = vmatpush2.msra.mxu0 0.0
      %810 = vmatprep.subr.mxu0 0.0
      %811 = vmatpush2.msra.mxu0 0.0
      %812 = vmatprep.subr.mxu0 0.0
      %813 = vmatpush2.msra.mxu0 0.0
      %814 = vmatprep.subr.mxu0 0.0
      %815 = vmatpush2.msra.mxu0 0.0
      %816 = vmatprep.subr.mxu0 0.0
      %817 = vmatpush2.msra.mxu0 0.0
      %818 = vmatprep.subr.mxu0 0.0
      %819 = vmatpush2.msra.mxu0 0.0
      %820 = vmatprep.subr.mxu0 0.0
      %821 = vmatpush2.msra.mxu0 0.0
      %822 = vmatprep.subr.mxu0 0.0
      %823 = vmatpush2.msra.mxu0 0.0
      %824 = vmatprep.subr.mxu0 0.0
      %825 = vmatpush2.msra.mxu0 0.0
      %826 = vmatprep.subr.mxu0 0.0
      %827 = vmatpush2.msra.mxu0 0.0
      %828 = vmatprep.subr.mxu0 0.0
      %829 = vmatpush2.msra.mxu0 0.0
      %830 = vmatprep.subr.mxu0 0.0
      %831 = vmatpush2.msra.mxu0 0.0
      %832 = vmatprep.subr.mxu0 0.0
      %833 = vmatpush2.msra.mxu0 0.0
      %834 = vmatprep.subr.mxu0 0.0
      %835 = vmatpush2.msra.mxu0 0.0
      %836 = vmatprep.subr.mxu0 0.0
      %837 = vmatpush2.msra.mxu0 0.0
      %838 = vmatprep.subr.mxu0 0.0
      %839 = vmatpush2.msra.mxu0 0.0
      %840 = vmatprep.mubr.f32.mxu0 0.0
      %841 = vmatmul.mubr.f32.gmra.mxu0 %v750
      %v842 = vpop.f32.mrf.mxu0
      %v843 = vadd.f32 0.0, %v842
      %v844 = vpop.f32.mrf.mxu0
      %845 = vmatprep.mubr.f32.mxu0 0.0
      %846 = vmatmul.mubr.f32.gmra.mxu0 %v753
      %v847 = vpop.f32.mrf.mxu0
      %v848 = vadd.f32 0.0, %v847
      %v849 = vpop.f32.mrf.mxu0
      %850 = vmatprep.mubr.f32.mxu0 0.0
      %851 = vmatmul.mubr.f32.gmra.mxu0 %v756
      %v852 = vpop.f32.mrf.mxu0
      %v853 = vadd.f32 0.0, %v852
      %v854 = vpop.f32.mrf.mxu0
      %855 = vmatprep.mubr.f32.mxu0 0.0
      %856 = vmatmul.mubr.f32.gmra.mxu0 %v759
      %v857 = vpop.f32.mrf.mxu0
      %v858 = vadd.f32 0.0, %v857
      %v859 = vpop.f32.mrf.mxu0
      %860 = vmatprep.mubr.f32.mxu0 0.0
      %861 = vmatmul.mubr.f32.gmra.mxu0 %v762
      %v862 = vpop.f32.mrf.mxu0
      %v863 = vadd.f32 0.0, %v862
      %v864 = vpop.f32.mrf.mxu0
      %865 = vmatprep.mubr.f32.mxu0 0.0
      %866 = vmatmul.mubr.f32.gmra.mxu0 %v765
      %v867 = vpop.f32.mrf.mxu0
      %v868 = vadd.f32 0.0, %v867
      %v869 = vpop.f32.mrf.mxu0
      %870 = vmatprep.mubr.f32.mxu0 0.0
      %871 = vmatmul.mubr.f32.gmra.mxu0 %v768
      %v872 = vpop.f32.mrf.mxu0
      %v873 = vadd.f32 0.0, %v872
      %v874 = vpop.f32.mrf.mxu0
      %875 = vmatprep.mubr.f32.mxu0 0.0
      %876 = vmatmul.mubr.f32.gmra.mxu0 %v771
      %v877 = vpop.f32.mrf.mxu0
      %v878 = vadd.f32 0.0, %v877
      %v879 = vpop.f32.mrf.mxu0
      %880 = vdwg.mxu0
      %v881 = vadd.f32 %v731, %v843
      %v882 = vadd.f32 %v732, %v848
      %v883 = vadd.f32 %v733, %v853
      %v884 = vadd.f32 %v734, %v858
      %v885 = vadd.f32 %v735, %v863
      %v886 = vadd.f32 %v736, %v868
      %v887 = vadd.f32 %v737, %v873
      %v888 = vadd.f32 %v738, %v878
      %v889 = vld [vmem:[%s296 + $0x1] sm:$0xff]
      %v890 = vld [vmem:[%s296 + $0x11] sm:$0xff]
      %v891 = vld [vmem:[%s296 + $0x21] sm:$0xff]
      %v892 = vld [vmem:[%s296 + $0x31] sm:$0xff]
      %v893 = vld [vmem:[%s296 + $0x41] sm:$0xff]
      %v894 = vld [vmem:[%s296 + $0x51] sm:$0xff]
      %v895 = vld [vmem:[%s296 + $0x61] sm:$0xff]
      %v896 = vld [vmem:[%s296 + $0x71] sm:$0xff]
      %s897 = scalar_lea.vmem %s1, 16
      %v898 = vld [vmem:[%s897] sm:$0xf]
      %v900 = vsel %vm274, %v889, 0
      %v903 = vsel %vm274, %v890, 0
      %v906 = vsel %vm274, %v891, 0
      %v909 = vsel %vm274, %v892, 0
      %v912 = vsel %vm274, %v893, 0
      %v915 = vsel %vm274, %v894, 0
      %v918 = vsel %vm274, %v895, 0
      %v921 = vsel %vm274, %v896, 0
      %v924 = vsel %vm348, %v898, 0
      %926 = vmatprep.subr.mxu0 0.0
      %927 = vmatpush1.msra.mxu0 0.0
      %928 = vmatprep.subr.mxu0 0.0
      %929 = vmatpush1.msra.mxu0 0.0
      %930 = vmatprep.subr.mxu0 0.0
      %931 = vmatpush1.msra.mxu0 0.0
      %932 = vmatprep.subr.mxu0 0.0
      %933 = vmatpush1.msra.mxu0 0.0
      %934 = vmatprep.subr.mxu0 0.0
      %935 = vmatpush1.msra.mxu0 0.0
      %936 = vmatprep.subr.mxu0 0.0
      %937 = vmatpush1.msra.mxu0 0.0
      %938 = vmatprep.subr.mxu0 0.0
      %939 = vmatpush1.msra.mxu0 0.0
      %940 = vmatprep.subr.mxu0 0.0
      %941 = vmatpush1.msra.mxu0 0.0
      %942 = vmatprep.subr.mxu0 0.0
      %943 = vmatpush1.msra.mxu0 0.0
      %944 = vmatprep.subr.mxu0 0.0
      %945 = vmatpush1.msra.mxu0 0.0
      %946 = vmatprep.subr.mxu0 0.0
      %947 = vmatpush1.msra.mxu0 0.0
      %948 = vmatprep.subr.mxu0 0.0
      %949 = vmatpush1.msra.mxu0 0.0
      %950 = vmatprep.subr.mxu0 0.0
      %951 = vmatpush1.msra.mxu0 0.0
      %952 = vmatprep.subr.mxu0 0.0
      %953 = vmatpush1.msra.mxu0 0.0
      %954 = vmatprep.subr.mxu0 0.0
      %955 = vmatpush1.msra.mxu0 0.0
      %956 = vmatprep.subr.mxu0 0.0
      %957 = vmatpush1.msra.mxu0 %v924
      %958 = vmatprep.subr.mxu0 0.0
      %959 = vmatpush2.msra.mxu0 0.0
      %960 = vmatprep.subr.mxu0 0.0
      %961 = vmatpush2.msra.mxu0 0.0
      %962 = vmatprep.subr.mxu0 0.0
      %963 = vmatpush2.msra.mxu0 0.0
      %964 = vmatprep.subr.mxu0 0.0
      %965 = vmatpush2.msra.mxu0 0.0
      %966 = vmatprep.subr.mxu0 0.0
      %967 = vmatpush2.msra.mxu0 0.0
      %968 = vmatprep.subr.mxu0 0.0
      %969 = vmatpush2.msra.mxu0 0.0
      %970 = vmatprep.subr.mxu0 0.0
      %971 = vmatpush2.msra.mxu0 0.0
      %972 = vmatprep.subr.mxu0 0.0
      %973 = vmatpush2.msra.mxu0 0.0
      %974 = vmatprep.subr.mxu0 0.0
      %975 = vmatpush2.msra.mxu0 0.0
      %976 = vmatprep.subr.mxu0 0.0
      %977 = vmatpush2.msra.mxu0 0.0
      %978 = vmatprep.subr.mxu0 0.0
      %979 = vmatpush2.msra.mxu0 0.0
      %980 = vmatprep.subr.mxu0 0.0
      %981 = vmatpush2.msra.mxu0 0.0
      %982 = vmatprep.subr.mxu0 0.0
      %983 = vmatpush2.msra.mxu0 0.0
      %984 = vmatprep.subr.mxu0 0.0
      %985 = vmatpush2.msra.mxu0 0.0
      %986 = vmatprep.subr.mxu0 0.0
      %987 = vmatpush2.msra.mxu0 0.0
      %988 = vmatprep.subr.mxu0 0.0
      %989 = vmatpush2.msra.mxu0 0.0
      %990 = vmatprep.mubr.f32.mxu0 0.0
      %991 = vmatmul.mubr.f32.gmra.mxu0 %v900
      %v992 = vpop.f32.mrf.mxu0
      %v993 = vadd.f32 0.0, %v992
      %v994 = vpop.f32.mrf.mxu0
      %995 = vmatprep.mubr.f32.mxu0 0.0
      %996 = vmatmul.mubr.f32.gmra.mxu0 %v903
      %v997 = vpop.f32.mrf.mxu0
      %v998 = vadd.f32 0.0, %v997
      %v999 = vpop.f32.mrf.mxu0
      %1000 = vmatprep.mubr.f32.mxu0 0.0
      %1001 = vmatmul.mubr.f32.gmra.mxu0 %v906
      %v1002 = vpop.f32.mrf.mxu0
      %v1003 = vadd.f32 0.0, %v1002
      %v1004 = vpop.f32.mrf.mxu0
      %1005 = vmatprep.mubr.f32.mxu0 0.0
      %1006 = vmatmul.mubr.f32.gmra.mxu0 %v909
      %v1007 = vpop.f32.mrf.mxu0
      %v1008 = vadd.f32 0.0, %v1007
      %v1009 = vpop.f32.mrf.mxu0
      %1010 = vmatprep.mubr.f32.mxu0 0.0
      %1011 = vmatmul.mubr.f32.gmra.mxu0 %v912
      %v1012 = vpop.f32.mrf.mxu0
      %v1013 = vadd.f32 0.0, %v1012
      %v1014 = vpop.f32.mrf.mxu0
      %1015 = vmatprep.mubr.f32.mxu0 0.0
      %1016 = vmatmul.mubr.f32.gmra.mxu0 %v915
      %v1017 = vpop.f32.mrf.mxu0
      %v1018 = vadd.f32 0.0, %v1017
      %v1019 = vpop.f32.mrf.mxu0
      %1020 = vmatprep.mubr.f32.mxu0 0.0
      %1021 = vmatmul.mubr.f32.gmra.mxu0 %v918
      %v1022 = vpop.f32.mrf.mxu0
      %v1023 = vadd.f32 0.0, %v1022
      %v1024 = vpop.f32.mrf.mxu0
      %1025 = vmatprep.mubr.f32.mxu0 0.0
      %1026 = vmatmul.mubr.f32.gmra.mxu0 %v921
      %v1027 = vpop.f32.mrf.mxu0
      %v1028 = vadd.f32 0.0, %v1027
      %v1029 = vpop.f32.mrf.mxu0
      %1030 = vdwg.mxu0
      %v1031 = vadd.f32 %v881, %v993
      %v1032 = vadd.f32 %v882, %v998
      %v1033 = vadd.f32 %v883, %v1003
      %v1034 = vadd.f32 %v884, %v1008
      %v1035 = vadd.f32 %v885, %v1013
      %v1036 = vadd.f32 %v886, %v1018
      %v1037 = vadd.f32 %v887, %v1023
      %v1038 = vadd.f32 %v888, %v1028
      %v1039 = vld [vmem:[%s296 + $0x2] sm:$0xff]
      %v1040 = vld [vmem:[%s296 + $0x12] sm:$0xff]
      %v1041 = vld [vmem:[%s296 + $0x22] sm:$0xff]
      %v1042 = vld [vmem:[%s296 + $0x32] sm:$0xff]
      %v1043 = vld [vmem:[%s296 + $0x42] sm:$0xff]
      %v1044 = vld [vmem:[%s296 + $0x52] sm:$0xff]
      %v1045 = vld [vmem:[%s296 + $0x62] sm:$0xff]
      %v1046 = vld [vmem:[%s296 + $0x72] sm:$0xff]
      %s1047 = scalar_lea.vmem %s1, 20
      %v1048 = vld [vmem:[%s1047] sm:$0xf]
      %v1050 = vsel %vm274, %v1039, 0
      %v1053 = vsel %vm274, %v1040, 0
      %v1056 = vsel %vm274, %v1041, 0
      %v1059 = vsel %vm274, %v1042, 0
      %v1062 = vsel %vm274, %v1043, 0
      %v1065 = vsel %vm274, %v1044, 0
      %v1068 = vsel %vm274, %v1045, 0
      %v1071 = vsel %vm274, %v1046, 0
      %v1074 = vsel %vm348, %v1048, 0
      %1076 = vmatprep.subr.mxu0 0.0
      %1077 = vmatpush1.msra.mxu0 0.0
      %1078 = vmatprep.subr.mxu0 0.0
      %1079 = vmatpush1.msra.mxu0 0.0
      %1080 = vmatprep.subr.mxu0 0.0
      %1081 = vmatpush1.msra.mxu0 0.0
      %1082 = vmatprep.subr.mxu0 0.0
      %1083 = vmatpush1.msra.mxu0 0.0
      %1084 = vmatprep.subr.mxu0 0.0
      %1085 = vmatpush1.msra.mxu0 0.0
      %1086 = vmatprep.subr.mxu0 0.0
      %1087 = vmatpush1.msra.mxu0 0.0
      %1088 = vmatprep.subr.mxu0 0.0
      %1089 = vmatpush1.msra.mxu0 0.0
      %1090 = vmatprep.subr.mxu0 0.0
      %1091 = vmatpush1.msra.mxu0 0.0
      %1092 = vmatprep.subr.mxu0 0.0
      %1093 = vmatpush1.msra.mxu0 0.0
      %1094 = vmatprep.subr.mxu0 0.0
      %1095 = vmatpush1.msra.mxu0 0.0
      %1096 = vmatprep.subr.mxu0 0.0
      %1097 = vmatpush1.msra.mxu0 0.0
      %1098 = vmatprep.subr.mxu0 0.0
      %1099 = vmatpush1.msra.mxu0 0.0
      %1100 = vmatprep.subr.mxu0 0.0
      %1101 = vmatpush1.msra.mxu0 0.0
      %1102 = vmatprep.subr.mxu0 0.0
      %1103 = vmatpush1.msra.mxu0 0.0
      %1104 = vmatprep.subr.mxu0 0.0
      %1105 = vmatpush1.msra.mxu0 0.0
      %1106 = vmatprep.subr.mxu0 0.0
      %1107 = vmatpush1.msra.mxu0 %v1074
      %1108 = vmatprep.subr.mxu0 0.0
      %1109 = vmatpush2.msra.mxu0 0.0
      %1110 = vmatprep.subr.mxu0 0.0
      %1111 = vmatpush2.msra.mxu0 0.0
      %1112 = vmatprep.subr.mxu0 0.0
      %1113 = vmatpush2.msra.mxu0 0.0
      %1114 = vmatprep.subr.mxu0 0.0
      %1115 = vmatpush2.msra.mxu0 0.0
      %1116 = vmatprep.subr.mxu0 0.0
      %1117 = vmatpush2.msra.mxu0 0.0
      %1118 = vmatprep.subr.mxu0 0.0
      %1119 = vmatpush2.msra.mxu0 0.0
      %1120 = vmatprep.subr.mxu0 0.0
      %1121 = vmatpush2.msra.mxu0 0.0
      %1122 = vmatprep.subr.mxu0 0.0
      %1123 = vmatpush2.msra.mxu0 0.0
      %1124 = vmatprep.subr.mxu0 0.0
      %1125 = vmatpush2.msra.mxu0 0.0
      %1126 = vmatprep.subr.mxu0 0.0
      %1127 = vmatpush2.msra.mxu0 0.0
      %1128 = vmatprep.subr.mxu0 0.0
      %1129 = vmatpush2.msra.mxu0 0.0
      %1130 = vmatprep.subr.mxu0 0.0
      %1131 = vmatpush2.msra.mxu0 0.0
      %1132 = vmatprep.subr.mxu0 0.0
      %1133 = vmatpush2.msra.mxu0 0.0
      %1134 = vmatprep.subr.mxu0 0.0
      %1135 = vmatpush2.msra.mxu0 0.0
      %1136 = vmatprep.subr.mxu0 0.0
      %1137 = vmatpush2.msra.mxu0 0.0
      %1138 = vmatprep.subr.mxu0 0.0
      %1139 = vmatpush2.msra.mxu0 0.0
      %1140 = vmatprep.mubr.f32.mxu0 0.0
      %1141 = vmatmul.mubr.f32.gmra.mxu0 %v1050
      %v1142 = vpop.f32.mrf.mxu0
      %v1143 = vadd.f32 0.0, %v1142
      %v1144 = vpop.f32.mrf.mxu0
      %1145 = vmatprep.mubr.f32.mxu0 0.0
      %1146 = vmatmul.mubr.f32.gmra.mxu0 %v1053
      %v1147 = vpop.f32.mrf.mxu0
      %v1148 = vadd.f32 0.0, %v1147
      %v1149 = vpop.f32.mrf.mxu0
      %1150 = vmatprep.mubr.f32.mxu0 0.0
      %1151 = vmatmul.mubr.f32.gmra.mxu0 %v1056
      %v1152 = vpop.f32.mrf.mxu0
      %v1153 = vadd.f32 0.0, %v1152
      %v1154 = vpop.f32.mrf.mxu0
      %1155 = vmatprep.mubr.f32.mxu0 0.0
      %1156 = vmatmul.mubr.f32.gmra.mxu0 %v1059
      %v1157 = vpop.f32.mrf.mxu0
      %v1158 = vadd.f32 0.0, %v1157
      %v1159 = vpop.f32.mrf.mxu0
      %1160 = vmatprep.mubr.f32.mxu0 0.0
      %1161 = vmatmul.mubr.f32.gmra.mxu0 %v1062
      %v1162 = vpop.f32.mrf.mxu0
      %v1163 = vadd.f32 0.0, %v1162
      %v1164 = vpop.f32.mrf.mxu0
      %1165 = vmatprep.mubr.f32.mxu0 0.0
      %1166 = vmatmul.mubr.f32.gmra.mxu0 %v1065
      %v1167 = vpop.f32.mrf.mxu0
      %v1168 = vadd.f32 0.0, %v1167
      %v1169 = vpop.f32.mrf.mxu0
      %1170 = vmatprep.mubr.f32.mxu0 0.0
      %1171 = vmatmul.mubr.f32.gmra.mxu0 %v1068
      %v1172 = vpop.f32.mrf.mxu0
      %v1173 = vadd.f32 0.0, %v1172
      %v1174 = vpop.f32.mrf.mxu0
      %1175 = vmatprep.mubr.f32.mxu0 0.0
      %1176 = vmatmul.mubr.f32.gmra.mxu0 %v1071
      %v1177 = vpop.f32.mrf.mxu0
      %v1178 = vadd.f32 0.0, %v1177
      %v1179 = vpop.f32.mrf.mxu0
      %1180 = vdwg.mxu0
      %v1181 = vadd.f32 %v1031, %v1143
      %v1182 = vadd.f32 %v1032, %v1148
      %v1183 = vadd.f32 %v1033, %v1153
      %v1184 = vadd.f32 %v1034, %v1158
      %v1185 = vadd.f32 %v1035, %v1163
      %v1186 = vadd.f32 %v1036, %v1168
      %v1187 = vadd.f32 %v1037, %v1173
      %v1188 = vadd.f32 %v1038, %v1178
      %s1189 = scalar_lea.vmem [#allocation2], 32
      %v1190 = vld [vmem:[%s1189] sm:$0xff]
      %v1191 = vld [vmem:[%s1189 + $0x10] sm:$0xff]
      %v1192 = vld [vmem:[%s1189 + $0x20] sm:$0xff]
      %v1193 = vld [vmem:[%s1189 + $0x30] sm:$0xff]
      %v1194 = vld [vmem:[%s1189 + $0x40] sm:$0xff]
      %v1195 = vld [vmem:[%s1189 + $0x50] sm:$0xff]
      %v1196 = vld [vmem:[%s1189 + $0x60] sm:$0xff]
      %v1197 = vld [vmem:[%s1189 + $0x70] sm:$0xff]
      %s1198 = scalar_lea.vmem %s1, 24
      %v1199 = vld [vmem:[%s1198] sm:$0xf]
      %v1201 = vsel %vm274, %v1190, 0
      %v1204 = vsel %vm274, %v1191, 0
      %v1207 = vsel %vm274, %v1192, 0
      %v1210 = vsel %vm274, %v1193, 0
      %v1213 = vsel %vm274, %v1194, 0
      %v1216 = vsel %vm274, %v1195, 0
      %v1219 = vsel %vm274, %v1196, 0
      %v1222 = vsel %vm274, %v1197, 0
      %v1225 = vsel %vm348, %v1199, 0
      %1227 = vmatprep.subr.mxu0 0.0
      %1228 = vmatpush1.msra.mxu0 0.0
      %1229 = vmatprep.subr.mxu0 0.0
      %1230 = vmatpush1.msra.mxu0 0.0
      %1231 = vmatprep.subr.mxu0 0.0
      %1232 = vmatpush1.msra.mxu0 0.0
      %1233 = vmatprep.subr.mxu0 0.0
      %1234 = vmatpush1.msra.mxu0 0.0
      %1235 = vmatprep.subr.mxu0 0.0
      %1236 = vmatpush1.msra.mxu0 0.0
      %1237 = vmatprep.subr.mxu0 0.0
      %1238 = vmatpush1.msra.mxu0 0.0
      %1239 = vmatprep.subr.mxu0 0.0
      %1240 = vmatpush1.msra.mxu0 0.0
      %1241 = vmatprep.subr.mxu0 0.0
      %1242 = vmatpush1.msra.mxu0 0.0
      %1243 = vmatprep.subr.mxu0 0.0
      %1244 = vmatpush1.msra.mxu0 0.0
      %1245 = vmatprep.subr.mxu0 0.0
      %1246 = vmatpush1.msra.mxu0 0.0
      %1247 = vmatprep.subr.mxu0 0.0
      %1248 = vmatpush1.msra.mxu0 0.0
      %1249 = vmatprep.subr.mxu0 0.0
      %1250 = vmatpush1.msra.mxu0 0.0
      %1251 = vmatprep.subr.mxu0 0.0
      %1252 = vmatpush1.msra.mxu0 0.0
      %1253 = vmatprep.subr.mxu0 0.0
      %1254 = vmatpush1.msra.mxu0 0.0
      %1255 = vmatprep.subr.mxu0 0.0
      %1256 = vmatpush1.msra.mxu0 0.0
      %1257 = vmatprep.subr.mxu0 0.0
      %1258 = vmatpush1.msra.mxu0 %v1225
      %1259 = vmatprep.subr.mxu0 0.0
      %1260 = vmatpush2.msra.mxu0 0.0
      %1261 = vmatprep.subr.mxu0 0.0
      %1262 = vmatpush2.msra.mxu0 0.0
      %1263 = vmatprep.subr.mxu0 0.0
      %1264 = vmatpush2.msra.mxu0 0.0
      %1265 = vmatprep.subr.mxu0 0.0
      %1266 = vmatpush2.msra.mxu0 0.0
      %1267 = vmatprep.subr.mxu0 0.0
      %1268 = vmatpush2.msra.mxu0 0.0
      %1269 = vmatprep.subr.mxu0 0.0
      %1270 = vmatpush2.msra.mxu0 0.0
      %1271 = vmatprep.subr.mxu0 0.0
      %1272 = vmatpush2.msra.mxu0 0.0
      %1273 = vmatprep.subr.mxu0 0.0
      %1274 = vmatpush2.msra.mxu0 0.0
      %1275 = vmatprep.subr.mxu0 0.0
      %1276 = vmatpush2.msra.mxu0 0.0
      %1277 = vmatprep.subr.mxu0 0.0
      %1278 = vmatpush2.msra.mxu0 0.0
      %1279 = vmatprep.subr.mxu0 0.0
      %1280 = vmatpush2.msra.mxu0 0.0
      %1281 = vmatprep.subr.mxu0 0.0
      %1282 = vmatpush2.msra.mxu0 0.0
      %1283 = vmatprep.subr.mxu0 0.0
      %1284 = vmatpush2.msra.mxu0 0.0
      %1285 = vmatprep.subr.mxu0 0.0
      %1286 = vmatpush2.msra.mxu0 0.0
      %1287 = vmatprep.subr.mxu0 0.0
      %1288 = vmatpush2.msra.mxu0 0.0
      %1289 = vmatprep.subr.mxu0 0.0
      %1290 = vmatpush2.msra.mxu0 0.0
      %1291 = vmatprep.mubr.f32.mxu0 0.0
      %1292 = vmatmul.mubr.f32.gmra.mxu0 %v1201
      %v1293 = vpop.f32.mrf.mxu0
      %v1294 = vadd.f32 0.0, %v1293
      %v1295 = vpop.f32.mrf.mxu0
      %1296 = vmatprep.mubr.f32.mxu0 0.0
      %1297 = vmatmul.mubr.f32.gmra.mxu0 %v1204
      %v1298 = vpop.f32.mrf.mxu0
      %v1299 = vadd.f32 0.0, %v1298
      %v1300 = vpop.f32.mrf.mxu0
      %1301 = vmatprep.mubr.f32.mxu0 0.0
      %1302 = vmatmul.mubr.f32.gmra.mxu0 %v1207
      %v1303 = vpop.f32.mrf.mxu0
      %v1304 = vadd.f32 0.0, %v1303
      %v1305 = vpop.f32.mrf.mxu0
      %1306 = vmatprep.mubr.f32.mxu0 0.0
      %1307 = vmatmul.mubr.f32.gmra.mxu0 %v1210
      %v1308 = vpop.f32.mrf.mxu0
      %v1309 = vadd.f32 0.0, %v1308
      %v1310 = vpop.f32.mrf.mxu0
      %1311 = vmatprep.mubr.f32.mxu0 0.0
      %1312 = vmatmul.mubr.f32.gmra.mxu0 %v1213
      %v1313 = vpop.f32.mrf.mxu0
      %v1314 = vadd.f32 0.0, %v1313
      %v1315 = vpop.f32.mrf.mxu0
      %1316 = vmatprep.mubr.f32.mxu0 0.0
      %1317 = vmatmul.mubr.f32.gmra.mxu0 %v1216
      %v1318 = vpop.f32.mrf.mxu0
      %v1319 = vadd.f32 0.0, %v1318
      %v1320 = vpop.f32.mrf.mxu0
      %1321 = vmatprep.mubr.f32.mxu0 0.0
      %1322 = vmatmul.mubr.f32.gmra.mxu0 %v1219
      %v1323 = vpop.f32.mrf.mxu0
      %v1324 = vadd.f32 0.0, %v1323
      %v1325 = vpop.f32.mrf.mxu0
      %1326 = vmatprep.mubr.f32.mxu0 0.0
      %1327 = vmatmul.mubr.f32.gmra.mxu0 %v1222
      %v1328 = vpop.f32.mrf.mxu0
      %v1329 = vadd.f32 0.0, %v1328
      %v1330 = vpop.f32.mrf.mxu0
      %1331 = vdwg.mxu0
      %v1332 = vadd.f32 %v1181, %v1294
      %v1333 = vadd.f32 %v1182, %v1299
      %v1334 = vadd.f32 %v1183, %v1304
      %v1335 = vadd.f32 %v1184, %v1309
      %v1336 = vadd.f32 %v1185, %v1314
      %v1337 = vadd.f32 %v1186, %v1319
      %v1338 = vadd.f32 %v1187, %v1324
      %v1339 = vadd.f32 %v1188, %v1329
      %v1340 = vld [vmem:[%s1189 + $0x1] sm:$0xff]
      %v1341 = vld [vmem:[%s1189 + $0x11] sm:$0xff]
      %v1342 = vld [vmem:[%s1189 + $0x21] sm:$0xff]
      %v1343 = vld [vmem:[%s1189 + $0x31] sm:$0xff]
      %v1344 = vld [vmem:[%s1189 + $0x41] sm:$0xff]
      %v1345 = vld [vmem:[%s1189 + $0x51] sm:$0xff]
      %v1346 = vld [vmem:[%s1189 + $0x61] sm:$0xff]
      %v1347 = vld [vmem:[%s1189 + $0x71] sm:$0xff]
      %s1348 = scalar_lea.vmem %s1, 28
      %v1349 = vld [vmem:[%s1348] sm:$0xf]
      %v1351 = vsel %vm274, %v1340, 0
      %v1354 = vsel %vm274, %v1341, 0
      %v1357 = vsel %vm274, %v1342, 0
      %v1360 = vsel %vm274, %v1343, 0
      %v1363 = vsel %vm274, %v1344, 0
      %v1366 = vsel %vm274, %v1345, 0
      %v1369 = vsel %vm274, %v1346, 0
      %v1372 = vsel %vm274, %v1347, 0
      %v1375 = vsel %vm348, %v1349, 0
      %1377 = vmatprep.subr.mxu0 0.0
      %1378 = vmatpush1.msra.mxu0 0.0
      %1379 = vmatprep.subr.mxu0 0.0
      %1380 = vmatpush1.msra.mxu0 0.0
      %1381 = vmatprep.subr.mxu0 0.0
      %1382 = vmatpush1.msra.mxu0 0.0
      %1383 = vmatprep.subr.mxu0 0.0
      %1384 = vmatpush1.msra.mxu0 0.0
      %1385 = vmatprep.subr.mxu0 0.0
      %1386 = vmatpush1.msra.mxu0 0.0
      %1387 = vmatprep.subr.mxu0 0.0
      %1388 = vmatpush1.msra.mxu0 0.0
      %1389 = vmatprep.subr.mxu0 0.0
      %1390 = vmatpush1.msra.mxu0 0.0
      %1391 = vmatprep.subr.mxu0 0.0
      %1392 = vmatpush1.msra.mxu0 0.0
      %1393 = vmatprep.subr.mxu0 0.0
      %1394 = vmatpush1.msra.mxu0 0.0
      %1395 = vmatprep.subr.mxu0 0.0
      %1396 = vmatpush1.msra.mxu0 0.0
      %1397 = vmatprep.subr.mxu0 0.0
      %1398 = vmatpush1.msra.mxu0 0.0
      %1399 = vmatprep.subr.mxu0 0.0
      %1400 = vmatpush1.msra.mxu0 0.0
      %1401 = vmatprep.subr.mxu0 0.0
      %1402 = vmatpush1.msra.mxu0 0.0
      %1403 = vmatprep.subr.mxu0 0.0
      %1404 = vmatpush1.msra.mxu0 0.0
      %1405 = vmatprep.subr.mxu0 0.0
      %1406 = vmatpush1.msra.mxu0 0.0
      %1407 = vmatprep.subr.mxu0 0.0
      %1408 = vmatpush1.msra.mxu0 %v1375
      %1409 = vmatprep.subr.mxu0 0.0
      %1410 = vmatpush2.msra.mxu0 0.0
      %1411 = vmatprep.subr.mxu0 0.0
      %1412 = vmatpush2.msra.mxu0 0.0
      %1413 = vmatprep.subr.mxu0 0.0
      %1414 = vmatpush2.msra.mxu0 0.0
      %1415 = vmatprep.subr.mxu0 0.0
      %1416 = vmatpush2.msra.mxu0 0.0
      %1417 = vmatprep.subr.mxu0 0.0
      %1418 = vmatpush2.msra.mxu0 0.0
      %1419 = vmatprep.subr.mxu0 0.0
      %1420 = vmatpush2.msra.mxu0 0.0
      %1421 = vmatprep.subr.mxu0 0.0
      %1422 = vmatpush2.msra.mxu0 0.0
      %1423 = vmatprep.subr.mxu0 0.0
      %1424 = vmatpush2.msra.mxu0 0.0
      %1425 = vmatprep.subr.mxu0 0.0
      %1426 = vmatpush2.msra.mxu0 0.0
      %1427 = vmatprep.subr.mxu0 0.0
      %1428 = vmatpush2.msra.mxu0 0.0
      %1429 = vmatprep.subr.mxu0 0.0
      %1430 = vmatpush2.msra.mxu0 0.0
      %1431 = vmatprep.subr.mxu0 0.0
      %1432 = vmatpush2.msra.mxu0 0.0
      %1433 = vmatprep.subr.mxu0 0.0
      %1434 = vmatpush2.msra.mxu0 0.0
      %1435 = vmatprep.subr.mxu0 0.0
      %1436 = vmatpush2.msra.mxu0 0.0
      %1437 = vmatprep.subr.mxu0 0.0
      %1438 = vmatpush2.msra.mxu0 0.0
      %1439 = vmatprep.subr.mxu0 0.0
      %1440 = vmatpush2.msra.mxu0 0.0
      %1441 = vmatprep.mubr.f32.mxu0 0.0
      %1442 = vmatmul.mubr.f32.gmra.mxu0 %v1351
      %v1443 = vpop.f32.mrf.mxu0
      %v1444 = vadd.f32 0.0, %v1443
      %v1445 = vpop.f32.mrf.mxu0
      %1446 = vmatprep.mubr.f32.mxu0 0.0
      %1447 = vmatmul.mubr.f32.gmra.mxu0 %v1354
      %v1448 = vpop.f32.mrf.mxu0
      %v1449 = vadd.f32 0.0, %v1448
      %v1450 = vpop.f32.mrf.mxu0
      %1451 = vmatprep.mubr.f32.mxu0 0.0
      %1452 = vmatmul.mubr.f32.gmra.mxu0 %v1357
      %v1453 = vpop.f32.mrf.mxu0
      %v1454 = vadd.f32 0.0, %v1453
      %v1455 = vpop.f32.mrf.mxu0
      %1456 = vmatprep.mubr.f32.mxu0 0.0
      %1457 = vmatmul.mubr.f32.gmra.mxu0 %v1360
      %v1458 = vpop.f32.mrf.mxu0
      %v1459 = vadd.f32 0.0, %v1458
      %v1460 = vpop.f32.mrf.mxu0
      %1461 = vmatprep.mubr.f32.mxu0 0.0
      %1462 = vmatmul.mubr.f32.gmra.mxu0 %v1363
      %v1463 = vpop.f32.mrf.mxu0
      %v1464 = vadd.f32 0.0, %v1463
      %v1465 = vpop.f32.mrf.mxu0
      %1466 = vmatprep.mubr.f32.mxu0 0.0
      %1467 = vmatmul.mubr.f32.gmra.mxu0 %v1366
      %v1468 = vpop.f32.mrf.mxu0
      %v1469 = vadd.f32 0.0, %v1468
      %v1470 = vpop.f32.mrf.mxu0
      %1471 = vmatprep.mubr.f32.mxu0 0.0
      %1472 = vmatmul.mubr.f32.gmra.mxu0 %v1369
      %v1473 = vpop.f32.mrf.mxu0
      %v1474 = vadd.f32 0.0, %v1473
      %v1475 = vpop.f32.mrf.mxu0
      %1476 = vmatprep.mubr.f32.mxu0 0.0
      %1477 = vmatmul.mubr.f32.gmra.mxu0 %v1372
      %v1478 = vpop.f32.mrf.mxu0
      %v1479 = vadd.f32 0.0, %v1478
      %v1480 = vpop.f32.mrf.mxu0
      %1481 = vdwg.mxu0
      %v1482 = vadd.f32 %v1332, %v1444
      %v1483 = vadd.f32 %v1333, %v1449
      %v1484 = vadd.f32 %v1334, %v1454
      %v1485 = vadd.f32 %v1335, %v1459
      %v1486 = vadd.f32 %v1336, %v1464
      %v1487 = vadd.f32 %v1337, %v1469
      %v1488 = vadd.f32 %v1338, %v1474
      %v1489 = vadd.f32 %v1339, %v1479
      %v1490 = vld [vmem:[%s1189 + $0x2] sm:$0xff]
      %v1491 = vld [vmem:[%s1189 + $0x12] sm:$0xff]
      %v1492 = vld [vmem:[%s1189 + $0x22] sm:$0xff]
      %v1493 = vld [vmem:[%s1189 + $0x32] sm:$0xff]
      %v1494 = vld [vmem:[%s1189 + $0x42] sm:$0xff]
      %v1495 = vld [vmem:[%s1189 + $0x52] sm:$0xff]
      %v1496 = vld [vmem:[%s1189 + $0x62] sm:$0xff]
      %v1497 = vld [vmem:[%s1189 + $0x72] sm:$0xff]
      %s1498 = scalar_lea.vmem %s1, 32
      %v1499 = vld [vmem:[%s1498] sm:$0xf]
      %v1501 = vsel %vm274, %v1490, 0
      %v1504 = vsel %vm274, %v1491, 0
      %v1507 = vsel %vm274, %v1492, 0
      %v1510 = vsel %vm274, %v1493, 0
      %v1513 = vsel %vm274, %v1494, 0
      %v1516 = vsel %vm274, %v1495, 0
      %v1519 = vsel %vm274, %v1496, 0
      %v1522 = vsel %vm274, %v1497, 0
      %v1525 = vsel %vm348, %v1499, 0
      %1527 = vmatprep.subr.mxu0 0.0
      %1528 = vmatpush1.msra.mxu0 0.0
      %1529 = vmatprep.subr.mxu0 0.0
      %1530 = vmatpush1.msra.mxu0 0.0
      %1531 = vmatprep.subr.mxu0 0.0
      %1532 = vmatpush1.msra.mxu0 0.0
      %1533 = vmatprep.subr.mxu0 0.0
      %1534 = vmatpush1.msra.mxu0 0.0
      %1535 = vmatprep.subr.mxu0 0.0
      %1536 = vmatpush1.msra.mxu0 0.0
      %1537 = vmatprep.subr.mxu0 0.0
      %1538 = vmatpush1.msra.mxu0 0.0
      %1539 = vmatprep.subr.mxu0 0.0
      %1540 = vmatpush1.msra.mxu0 0.0
      %1541 = vmatprep.subr.mxu0 0.0
      %1542 = vmatpush1.msra.mxu0 0.0
      %1543 = vmatprep.subr.mxu0 0.0
      %1544 = vmatpush1.msra.mxu0 0.0
      %1545 = vmatprep.subr.mxu0 0.0
      %1546 = vmatpush1.msra.mxu0 0.0
      %1547 = vmatprep.subr.mxu0 0.0
      %1548 = vmatpush1.msra.mxu0 0.0
      %1549 = vmatprep.subr.mxu0 0.0
      %1550 = vmatpush1.msra.mxu0 0.0
      %1551 = vmatprep.subr.mxu0 0.0
      %1552 = vmatpush1.msra.mxu0 0.0
      %1553 = vmatprep.subr.mxu0 0.0
      %1554 = vmatpush1.msra.mxu0 0.0
      %1555 = vmatprep.subr.mxu0 0.0
      %1556 = vmatpush1.msra.mxu0 0.0
      %1557 = vmatprep.subr.mxu0 0.0
      %1558 = vmatpush1.msra.mxu0 %v1525
      %1559 = vmatprep.subr.mxu0 0.0
      %1560 = vmatpush2.msra.mxu0 0.0
      %1561 = vmatprep.subr.mxu0 0.0
      %1562 = vmatpush2.msra.mxu0 0.0
      %1563 = vmatprep.subr.mxu0 0.0
      %1564 = vmatpush2.msra.mxu0 0.0
      %1565 = vmatprep.subr.mxu0 0.0
      %1566 = vmatpush2.msra.mxu0 0.0
      %1567 = vmatprep.subr.mxu0 0.0
      %1568 = vmatpush2.msra.mxu0 0.0
      %1569 = vmatprep.subr.mxu0 0.0
      %1570 = vmatpush2.msra.mxu0 0.0
      %1571 = vmatprep.subr.mxu0 0.0
      %1572 = vmatpush2.msra.mxu0 0.0
      %1573 = vmatprep.subr.mxu0 0.0
      %1574 = vmatpush2.msra.mxu0 0.0
      %1575 = vmatprep.subr.mxu0 0.0
      %1576 = vmatpush2.msra.mxu0 0.0
      %1577 = vmatprep.subr.mxu0 0.0
      %1578 = vmatpush2.msra.mxu0 0.0
      %1579 = vmatprep.subr.mxu0 0.0
      %1580 = vmatpush2.msra.mxu0 0.0
      %1581 = vmatprep.subr.mxu0 0.0
      %1582 = vmatpush2.msra.mxu0 0.0
      %1583 = vmatprep.subr.mxu0 0.0
      %1584 = vmatpush2.msra.mxu0 0.0
      %1585 = vmatprep.subr.mxu0 0.0
      %1586 = vmatpush2.msra.mxu0 0.0
      %1587 = vmatprep.subr.mxu0 0.0
      %1588 = vmatpush2.msra.mxu0 0.0
      %1589 = vmatprep.subr.mxu0 0.0
      %1590 = vmatpush2.msra.mxu0 0.0
      %1591 = vmatprep.mubr.f32.mxu0 0.0
      %1592 = vmatmul.mubr.f32.gmra.mxu0 %v1501
      %v1593 = vpop.f32.mrf.mxu0
      %v1594 = vadd.f32 0.0, %v1593
      %v1595 = vpop.f32.mrf.mxu0
      %1596 = vmatprep.mubr.f32.mxu0 0.0
      %1597 = vmatmul.mubr.f32.gmra.mxu0 %v1504
      %v1598 = vpop.f32.mrf.mxu0
      %v1599 = vadd.f32 0.0, %v1598
      %v1600 = vpop.f32.mrf.mxu0
      %1601 = vmatprep.mubr.f32.mxu0 0.0
      %1602 = vmatmul.mubr.f32.gmra.mxu0 %v1507
      %v1603 = vpop.f32.mrf.mxu0
      %v1604 = vadd.f32 0.0, %v1603
      %v1605 = vpop.f32.mrf.mxu0
      %1606 = vmatprep.mubr.f32.mxu0 0.0
      %1607 = vmatmul.mubr.f32.gmra.mxu0 %v1510
      %v1608 = vpop.f32.mrf.mxu0
      %v1609 = vadd.f32 0.0, %v1608
      %v1610 = vpop.f32.mrf.mxu0
      %1611 = vmatprep.mubr.f32.mxu0 0.0
      %1612 = vmatmul.mubr.f32.gmra.mxu0 %v1513
      %v1613 = vpop.f32.mrf.mxu0
      %v1614 = vadd.f32 0.0, %v1613
      %v1615 = vpop.f32.mrf.mxu0
      %1616 = vmatprep.mubr.f32.mxu0 0.0
      %1617 = vmatmul.mubr.f32.gmra.mxu0 %v1516
      %v1618 = vpop.f32.mrf.mxu0
      %v1619 = vadd.f32 0.0, %v1618
      %v1620 = vpop.f32.mrf.mxu0
      %1621 = vmatprep.mubr.f32.mxu0 0.0
      %1622 = vmatmul.mubr.f32.gmra.mxu0 %v1519
      %v1623 = vpop.f32.mrf.mxu0
      %v1624 = vadd.f32 0.0, %v1623
      %v1625 = vpop.f32.mrf.mxu0
      %1626 = vmatprep.mubr.f32.mxu0 0.0
      %1627 = vmatmul.mubr.f32.gmra.mxu0 %v1522
      %v1628 = vpop.f32.mrf.mxu0
      %v1629 = vadd.f32 0.0, %v1628
      %v1630 = vpop.f32.mrf.mxu0
      %1631 = vdwg.mxu0
      %v1632 = vadd.f32 %v1482, %v1594
      %v1633 = vadd.f32 %v1483, %v1599
      %v1634 = vadd.f32 %v1484, %v1604
      %v1635 = vadd.f32 %v1485, %v1609
      %v1636 = vadd.f32 %v1486, %v1614
      %v1637 = vadd.f32 %v1487, %v1619
      %v1638 = vadd.f32 %v1488, %v1624
      %v1639 = vadd.f32 %v1489, %v1629
      %vm1640 = vcmask 64512
      %1641 = vst.msk [vmem:[%s208] sm:$0xff] %vm1640, %v1632
      %1642 = vst.msk [vmem:[%s208 + $0x8] sm:$0xff] %vm1640, %v1633
      %1643 = vst.msk [vmem:[%s208 + $0x10] sm:$0xff] %vm1640, %v1634
      %1644 = vst.msk [vmem:[%s208 + $0x18] sm:$0xff] %vm1640, %v1635
      %1645 = vst.msk [vmem:[%s208 + $0x20] sm:$0xff] %vm1640, %v1636
      %1646 = vst.msk [vmem:[%s208 + $0x28] sm:$0xff] %vm1640, %v1637
      %1647 = vst.msk [vmem:[%s208 + $0x30] sm:$0xff] %vm1640, %v1638
      %1648 = vst.msk [vmem:[%s208 + $0x38] sm:$0xff] %vm1640, %v1639
      %v1649 = vsel %vm1640, %v1632, 0.0
      %v1650 = vsel %vm1640, %v1633, 0.0
      %v1651 = vadd.f32 %v1649, %v1650
      %v1652 = vsel %vm1640, %v1634, 0.0
      %v1653 = vadd.f32 %v1651, %v1652
      %v1654 = vsel %vm1640, %v1635, 0.0
      %v1655 = vadd.f32 %v1653, %v1654
      %v1656 = vsel %vm1640, %v1636, 0.0
      %v1657 = vadd.f32 %v1655, %v1656
      %v1658 = vsel %vm1640, %v1637, 0.0
      %v1659 = vadd.f32 %v1657, %v1658
      %v1660 = vsel %vm1640, %v1638, 0.0
      %v1661 = vadd.f32 %v1659, %v1660
      %v1662 = vsel %vm1640, %v1639, 0.0
      %v1663 = vadd.f32 %v1661, %v1662
      %v1664 = vrot.slane %v1663, 4
      %v1665 = vadd.f32 %v1663, %v1664
      %v1666 = vrot.slane %v1665, 2
      %v1667 = vadd.f32 %v1665, %v1666
      %v1668 = vrot.slane %v1667, 1
      %v1669 = vadd.f32 %v1667, %v1668
      %vm1670 = vcmask 57344
      %1671 = vst.msk [vmem:[%s211] sm:$0x1] %vm1670, %v1669
      %v1672 = vmul.f32 %v1632, %v1632
      %v1673 = vmul.f32 %v1633, %v1633
      %v1674 = vmul.f32 %v1634, %v1634
      %v1675 = vmul.f32 %v1635, %v1635
      %v1676 = vmul.f32 %v1636, %v1636
      %v1677 = vmul.f32 %v1637, %v1637
      %v1678 = vmul.f32 %v1638, %v1638
      %v1679 = vmul.f32 %v1639, %v1639
      %v1680 = vsel %vm1640, %v1672, 0.0
      %v1681 = vsel %vm1640, %v1673, 0.0
      %v1682 = vadd.f32 %v1680, %v1681
      %v1683 = vsel %vm1640, %v1674, 0.0
      %v1684 = vadd.f32 %v1682, %v1683
      %v1685 = vsel %vm1640, %v1675, 0.0
      %v1686 = vadd.f32 %v1684, %v1685
      %v1687 = vsel %vm1640, %v1676, 0.0
      %v1688 = vadd.f32 %v1686, %v1687
      %v1689 = vsel %vm1640, %v1677, 0.0
      %v1690 = vadd.f32 %v1688, %v1689
      %v1691 = vsel %vm1640, %v1678, 0.0
      %v1692 = vadd.f32 %v1690, %v1691
      %v1693 = vsel %vm1640, %v1679, 0.0
      %v1694 = vadd.f32 %v1692, %v1693
      %v1695 = vrot.slane %v1694, 4
      %v1696 = vadd.f32 %v1694, %v1695
      %v1697 = vrot.slane %v1696, 2
      %v1698 = vadd.f32 %v1696, %v1697
      %v1699 = vrot.slane %v1698, 1
      %v1700 = vadd.f32 %v1698, %v1699
      %1701 = vst.msk [vmem:[%s214] sm:$0x1] %vm1670, %v1700
      %p1702 = scmp.lt.s32.totalorder %s16, 1
      %s1703 = scalar_select %p1702, %s16, 1
      %s1704 = smul.addr %s1703, 8
      %s1705 = smul.addr %s1704, 8
      %s1706 = scalar_lea.vmem %s2, %s1705
      %p1707 = scmp.lt.s32.totalorder %s16, 1
      %s1708 = scalar_select %p1707, %s16, 1
      %s1709 = scalar_lea.vmem %s3, %s1708
      %p1710 = scmp.lt.s32.totalorder %s16, 1
      %s1711 = scalar_select %p1710, %s16, 1
      %s1712 = scalar_lea.vmem %s4, %s1711
      // Predicated region
      $region29: #{compression_layer_forward.3} parent=27 // pred_check
        %p1713 = pneg %p81
      $region30: #{compression_layer_forward.3} parent=27 // pred_check_branch
        %1715 = sbr.rel (%p1713) target = $region32
      $region31: #{compression_layer_forward.3} parent=27 // pred_region
        _
      $region32: #{compression_layer_forward.3} parent=27 // pred_fallthru
        _
      // Predicated region
      $region33: #{compression_layer_forward.3} parent=27 // pred_check
        %p1716 = pneg %p107
      $region34: #{compression_layer_forward.3} parent=27 // pred_check_branch
        %1718 = sbr.rel (%p1716) target = $region36
      $region35: #{compression_layer_forward.3} parent=27 // pred_region
        _
      $region36: #{compression_layer_forward.3} parent=27 // pred_fallthru
        _
      // Predicated region
      $region37: #{compression_layer_forward.3} parent=27 // pred_check
        %p1719 = pneg %p133
      $region38: #{compression_layer_forward.3} parent=27 // pred_check_branch
        %1721 = sbr.rel (%p1719) target = $region40
      $region39: #{compression_layer_forward.3} parent=27 // pred_region
        _
      $region40: #{compression_layer_forward.3} parent=27 // pred_fallthru
        _
    $region28: #{compression_layer_forward.3} parent=5 // pred_fallthru
      _
    %p1722 = scmp.le.s32.totalorder 2, %s11
    // Predicated region
    $region41: #{compression_layer_forward.3} parent=5 // pred_check
      %p1723 = pneg %p1722
    $region42: #{compression_layer_forward.3} parent=5 // pred_check_branch
      %1725 = sbr.rel (%p1723) target = $region44
    $region43: #{compression_layer_forward.3} parent=5 // pred_region
      %s1726 = ssub.s32 %s11, 2
      // Predicated region
      $region45: #{compression_layer_forward.3} parent=43 // pred_check
        %p1727 = pneg %p87
      $region46: #{compression_layer_forward.3} parent=43 // pred_check_branch
        %1729 = sbr.rel (%p1727) target = $region48
      $region47: #{compression_layer_forward.3} parent=43 // pred_region
        %p1730 = scmp.lt.s32.totalorder %s17, 1
        %s1731 = scalar_select %p1730, %s17, 1
        %s1732 = smul.addr %s1731, 8
        %s1733 = smul.addr %s1732, 8
        %s1734 = scalar_lea.vmem %s2, %s1733
      $region48: #{compression_layer_forward.3} parent=43 // pred_fallthru
        _
      // Predicated region
      $region49: #{compression_layer_forward.3} parent=43 // pred_check
        %p1735 = pneg %p113
      $region50: #{compression_layer_forward.3} parent=43 // pred_check_branch
        %1737 = sbr.rel (%p1735) target = $region52
      $region51: #{compression_layer_forward.3} parent=43 // pred_region
        %p1738 = scmp.lt.s32.totalorder %s17, 1
        %s1739 = scalar_select %p1738, %s17, 1
        %s1740 = scalar_lea.vmem %s3, %s1739
      $region52: #{compression_layer_forward.3} parent=43 // pred_fallthru
        _
      // Predicated region
      $region53: #{compression_layer_forward.3} parent=43 // pred_check
        %p1741 = pneg %p139
      $region54: #{compression_layer_forward.3} parent=43 // pred_check_branch
        %1743 = sbr.rel (%p1741) target = $region56
      $region55: #{compression_layer_forward.3} parent=43 // pred_region
        %p1744 = scmp.lt.s32.totalorder %s17, 1
        %s1745 = scalar_select %p1744, %s17, 1
        %s1746 = scalar_lea.vmem %s4, %s1745
      $region56: #{compression_layer_forward.3} parent=43 // pred_fallthru
        _
    $region44: #{compression_layer_forward.3} parent=5 // pred_fallthru
      _
  $region6: #{compression_layer_forward.3} parent=0 // loop_footer
    %s15 = sadd.s32 1, %s11
  $region7: #{compression_layer_forward.3} parent=0 // loop_footer_branch
    %10 = sbr.rel target = $region3
  $region8: #{compression_layer_forward.3} parent=0 // loop_exit
    _

</llo_original>
